<compile_context>
chip_gen: v6e
topology: v6e:2x2x1
jax: 0.10.0
libtpu: 0.0.40
codegen_flags: <defaults>
</compile_context>

<pallas_src>
import numpy as np
import jax
import jax.numpy as jnp
from jax.experimental import pallas as pl
from jax.experimental.pallas import tpu as pltpu

NDF = 18
EPS = 1e-5
_VMEM = pl.BlockSpec(memory_space=pltpu.MemorySpace.VMEM)


# ----------------------------------------------------------------------------
# Host-side helpers (pure layout / constants baked at trace time)
# ----------------------------------------------------------------------------
def _tap_masks(n, h, w):
    """(N*H*W, 9) f32 validity mask per 3x3 tap, tap order t=(dh+1)*3+(dw+1).

    Zeroes both image-edge taps and cross-image reads of the flat staging
    buffer used for enc2's shifted-window reads."""
    hw = h * w
    m = np.arange(n * hw)
    i = (m % hw) // w
    j = m % w
    cols = []
    for dh in (-1, 0, 1):
        for dw in (-1, 0, 1):
            ok = (i + dh >= 0) & (i + dh < h) & (j + dw >= 0) & (j + dw < w)
            cols.append(ok.astype(np.float32))
    return jnp.asarray(np.stack(cols, axis=1))


def _segment_mats(n, hw):
    """Constant segment matrices: mean-pool (N, M) and one-hot broadcast (M, N)."""
    m = n * hw
    seg = np.arange(m) // hw
    segb = (seg[:, None] == np.arange(n)[None, :]).astype(np.float32)   # (M, N)
    segm = segb.T / float(hw)                                           # (N, M)
    return jnp.asarray(segm), jnp.asarray(segb)


def im2col(x, k, stride, pad):
    """x: (N,H,W,C) NHWC -> (N*Ho*Wo, k*k*C) patches, column order [kh,kw,cin]."""
    n, h, w, c = x.shape
    xp = jnp.pad(x, ((0, 0), (pad, pad), (pad, pad), (0, 0)))
    ho = (h + 2 * pad - k) // stride + 1
    wo = (w + 2 * pad - k) // stride + 1
    cols = []
    for kh in range(k):
        for kw in range(k):
            cols.append(xp[:, kh:kh + stride * (ho - 1) + 1:stride,
                              kw:kw + stride * (wo - 1) + 1:stride, :])
    patches = jnp.stack(cols, axis=3)                  # (N, Ho, Wo, k*k, C)
    return patches.reshape(n * ho * wo, k * k * c), ho, wo


# ----------------------------------------------------------------------------
# Fused Pallas kernel
# ----------------------------------------------------------------------------
def _make_fused_kernel(N, HW, W, C1, C2, CR1, CR2, OFF):
    M = N * HW
    inv_m = 1.0 / M

    def bn_lrelu(y, gamma, beta):
        # Batch-stat BN (biased var, eps=1e-5) + LeakyReLU(0.1).
        # sum and sum-of-squares fused into one cross-sublane reduction.
        c = y.shape[1]
        stats = jnp.sum(jnp.concatenate([y, y * y], axis=1),
                        axis=0, keepdims=True)          # (1, 2c)
        mean = stats[:, :c] * inv_m
        var = stats[:, c:] * inv_m - mean * mean
        scale = gamma * jax.lax.rsqrt(var + EPS)
        shift = beta - mean * scale
        z = y * scale + shift
        return jnp.where(z >= 0, z, 0.1 * z)

    def se_gate(gap, w1t, w2t, cr):
        # gap: (N,C); w1t,w2t: (Cr,C).  Tiny FCs on the VPU; sigmoid via
        # exp (EUP) + approximate reciprocal (EUP) instead of a VPU divide.
        z = jnp.zeros_like(gap)
        for r in range(cr):
            h = jnp.maximum(
                jnp.sum(gap * w1t[r:r + 1, :], axis=1, keepdims=True), 0.0)
            z = z + h * w2t[r:r + 1, :]
        return pl.reciprocal(1.0 + jnp.exp(-z), approx=True)   # (N, C)

    def mxu(a, b):
        # bf16 operands, f32 accumulation on the MXU.
        return jnp.dot(a.astype(jnp.bfloat16), b.astype(jnp.bfloat16),
                       preferred_element_type=jnp.float32)

    def kernel(p1_ref, w1_ref, b1_ref, gam1_ref, bet1_ref,
               se1w1_ref, se1w2_ref,
               w2_ref, b2_ref, gam2_ref, bet2_ref,
               se2w1_ref, se2w2_ref,
               masks_ref, segm_ref, segb_ref,
               wr_ref, br_ref, wf_ref, bf_ref,
               o_ref, xpad_ref):
        # ---- enc1: im2col matmul (+bias) -> BN(batch) -> LeakyReLU(0.1) ----
        y1 = mxu(p1_ref[...], w1_ref[...]) + b1_ref[...]
        x1 = bn_lrelu(y1, gam1_ref[...], bet1_ref[...])       # (M, C1) = 'enc1'

        # ---- se1: segment-mean GAP -> fc/relu/fc/sigmoid -> broadcast scale ----
        segm = segm_ref[...]                                  # (N, M), rows mean
        segb = segb_ref[...]                                  # (M, N), one-hot
        gap1 = jnp.dot(segm, x1, preferred_element_type=jnp.float32)   # (N, C1)
        gate1 = se_gate(gap1, se1w1_ref[...], se1w2_ref[...], CR1)     # (N, C1)
        x1s = x1 * jnp.dot(segb, gate1, preferred_element_type=jnp.float32)

        # ---- stage SE1 output into the flat zero-padded scratch (bulk stores) ----
        xpad_ref[0:OFF, :] = jnp.zeros((OFF, C1), jnp.float32)
        xpad_ref[OFF:OFF + M, :] = x1s
        xpad_ref[OFF + M:OFF + M + OFF, :] = jnp.zeros((OFF, C1), jnp.float32)

        # ---- enc2: pack the 9 masked 3x3 taps into ONE (M, 9*C1) patch block ----
        cols = []
        t = 0
        for dh in (-1, 0, 1):
            for dw in (-1, 0, 1):
                shift = dh * W + dw
                win = xpad_ref[OFF + shift: OFF + shift + M, :]   # (M, C1)
                cols.append(win * masks_ref[:, t:t + 1])          # mask folded in
                t += 1
        packed = jnp.concatenate(cols, axis=1)                    # (M, 9*C1)
        y2 = mxu(packed, w2_ref[...]) + b2_ref[...]               # single K=162 dot
        x2 = bn_lrelu(y2, gam2_ref[...], bet2_ref[...])           # (M, C2)

        # ---- review 1x1 conv + ReLU on the pre-SE enc1 activations ----
        r = jnp.maximum(mxu(x1, wr_ref[...]) + br_ref[...], 0.0)  # (M, C2)

        # ---- se2 gate, residual add, GAP, final Linear ----
        gap2 = jnp.dot(segm, x2, preferred_element_type=jnp.float32)   # (N, C2)
        gate2 = se_gate(gap2, se2w1_ref[...], se2w2_ref[...], CR2)
        z = x2 * jnp.dot(segb, gate2, preferred_element_type=jnp.float32) + r
        pooled = jnp.dot(segm, z, preferred_element_type=jnp.float32)  # (N, C2)
        o_ref[...] = jnp.dot(pooled, wf_ref[...],
                             preferred_element_type=jnp.float32) + bf_ref[...]

    return kernel


def unet_forward(x_nchw, params):
    N = x_nchw.shape[0]
    x = jnp.transpose(x_nchw, (0, 2, 3, 1))            # NCHW -> NHWC

    # TODO(synk): the enc1 im2col (stride-2 4x4 gather) stays in XLA glue — the
    # strided gather has no contiguous-shift form, and strided slices on middle
    # dims of a VMEM ref do not lower reliably in Mosaic.  Everything after the
    # (N*HW, 64) patch matrix runs inside the single fused kernel.
    p1, ho, wo = im2col(x, 4, 2, 2)
    HW = ho * wo
    M = N * HW
    C1, C2 = NDF, 2 * NDF
    CR1 = params["se1_w1"].shape[0]
    CR2 = params["se2_w1"].shape[0]
    OFF = 16                                           # > max 3x3 tap shift (10)

    masks = _tap_masks(N, ho, wo)                      # (M, 9) constant
    segm, segb = _segment_mats(N, HW)                  # (N, M), (M, N) constants

    kernel = _make_fused_kernel(N, HW, wo, C1, C2, CR1, CR2, OFF)
    # TODO(synk): second TensorCore (v7x) intentionally idle; BN batch stats
    # couple all N*HW rows, so a core split only pays off once N*HW >> 1000.
    return pl.pallas_call(
        kernel,
        out_shape=jax.ShapeDtypeStruct((N, 2), jnp.float32),
        in_specs=[_VMEM] * 20,
        out_specs=_VMEM,
        scratch_shapes=[pltpu.VMEM((M + 2 * OFF, C1), jnp.float32)],
    )(p1, params["w1"], params["b1"], params["g1"], params["be1"],
      params["se1_w1"], params["se1_w2"],
      params["w2"], params["b2"], params["g2"], params["be2"],
      params["se2_w1"], params["se2_w2"],
      masks, segm, segb,
      params["wr"], params["br"], params["wf"], params["bf"])


# ----------------------------------------------------------------------------
# Deterministic parameter init (synthetic weights; shapes from __init__)
# ----------------------------------------------------------------------------
def init_params(key, input_nc, ndf):
    ks = jax.random.split(key, 12)
    rnd = lambda k, shape, s: jax.random.normal(k, shape, jnp.float32) * s
    red1 = max(ndf // 16, 1)          # 18 // 16 = 1
    red2 = max((2 * ndf) // 16, 1)    # 36 // 16 = 2
    return {
        "w1": rnd(ks[0], (4 * 4 * input_nc, ndf), 0.1),
        "b1": rnd(ks[1], (1, ndf), 0.1),
        "g1": jnp.ones((1, ndf), jnp.float32),
        "be1": jnp.zeros((1, ndf), jnp.float32),
        "se1_w1": rnd(ks[2], (red1, ndf), 0.2),        # (Cr, C)
        "se1_w2": rnd(ks[3], (red1, ndf), 0.2),        # (Cr, C)
        "w2": rnd(ks[4], (3 * 3 * ndf, 2 * ndf), 0.1), # (162, 36), rows [kh,kw,cin]
        "b2": rnd(ks[5], (1, 2 * ndf), 0.1),
        "g2": jnp.ones((1, 2 * ndf), jnp.float32),
        "be2": jnp.zeros((1, 2 * ndf), jnp.float32),
        "se2_w1": rnd(ks[6], (red2, 2 * ndf), 0.2),    # (Cr, C)
        "se2_w2": rnd(ks[7], (red2, 2 * ndf), 0.2),    # (Cr, C)
        "wr": rnd(ks[8], (ndf, 2 * ndf), 0.1),         # review 1x1 conv
        "br": rnd(ks[9], (1, 2 * ndf), 0.1),
        "wf": rnd(ks[10], (2 * ndf, 2), 0.1),          # final Linear
        "bf": rnd(ks[11], (1, 2), 0.1),
    }


# ----------------------------------------------------------------------------
# Pure-JAX f32 reference (same math) for a sanity check
# ----------------------------------------------------------------------------
def reference_forward(x_nchw, params):
    N = x_nchw.shape[0]
    x = jnp.transpose(x_nchw, (0, 2, 3, 1))

    def conv_bn_lrelu_ref(p, w, b, g, be):
        y = p @ w + b
        mean = jnp.mean(y, axis=0, keepdims=True)
        var = jnp.mean((y - mean) ** 2, axis=0, keepdims=True)
        yn = (y - mean) * jax.lax.rsqrt(var + EPS) * g + be
        return jnp.where(yn >= 0, yn, 0.1 * yn)

    def se_ref(x3, w1t, w2t):
        y = jnp.mean(x3, axis=1)                               # (N, C)
        h = jnp.maximum(jnp.einsum("nc,rc->nr", y, w1t), 0.0)
        s = jax.nn.sigmoid(jnp.einsum("nr,rc->nc", h, w2t))
        return x3 * s[:, None, :]

    p1, ho1, wo1 = im2col(x, 4, 2, 2)
    x1 = conv_bn_lrelu_ref(p1, params["w1"], params["b1"], params["g1"], params["be1"])
    x1_img = x1.reshape(N, ho1 * wo1, NDF)
    x1_se = se_ref(x1_img, params["se1_w1"], params["se1_w2"])
    p2, ho2, wo2 = im2col(x1_se.reshape(N, ho1, wo1, NDF), 3, 1, 1)
    x2 = conv_bn_lrelu_ref(p2, params["w2"], params["b2"], params["g2"], params["be2"])
    x2_img = x2.reshape(N, ho2 * wo2, 2 * NDF)
    x2_se = se_ref(x2_img, params["se2_w1"], params["se2_w2"])
    r = jnp.maximum(jnp.einsum("npc,cd->npd", x1_img, params["wr"]) + params["br"], 0.0)
    pooled = jnp.mean(x2_se + r, axis=1)
    return pooled @ params["wf"] + params["bf"]


if __name__ == "__main__":
    key = jax.random.PRNGKey(0)
    k_x, k_p = jax.random.split(key)
    N, Cin, H, W = 2, 4, 16, 16
    x = jax.random.normal(k_x, (N, Cin, H, W), jnp.float32)
    params = init_params(k_p, Cin, NDF)

    fwd = jax.jit(unet_forward)
    out = jax.block_until_ready(fwd(x, params))
    ref = jax.block_until_ready(reference_forward(x, params))

    assert out.shape == (N, 2), out.shape
    # Kernel runs its matmuls with bf16 MXU operands (f32 accumulate); the
    # reference is pure f32, hence the 2e-2 tolerance.
    assert jnp.allclose(out, ref, rtol=2e-2, atol=2e-2), (out, ref)
    print("KERNEL_OK")
</pallas_src>

<mosaic_0001>
module attributes {stable_mosaic.version = 11 : i64} {
  func.func @kernel(%arg0: memref<162x64xf32, #tpu.memory_space<vmem>>, %arg1: memref<64x18xf32, #tpu.memory_space<vmem>>, %arg2: memref<1x18xf32, #tpu.memory_space<vmem>>, %arg3: memref<1x18xf32, #tpu.memory_space<vmem>>, %arg4: memref<1x18xf32, #tpu.memory_space<vmem>>, %arg5: memref<1x18xf32, #tpu.memory_space<vmem>>, %arg6: memref<1x18xf32, #tpu.memory_space<vmem>>, %arg7: memref<162x36xf32, #tpu.memory_space<vmem>>, %arg8: memref<1x36xf32, #tpu.memory_space<vmem>>, %arg9: memref<1x36xf32, #tpu.memory_space<vmem>>, %arg10: memref<1x36xf32, #tpu.memory_space<vmem>>, %arg11: memref<2x36xf32, #tpu.memory_space<vmem>>, %arg12: memref<2x36xf32, #tpu.memory_space<vmem>>, %arg13: memref<162x9xf32, #tpu.memory_space<vmem>>, %arg14: memref<2x162xf32, #tpu.memory_space<vmem>>, %arg15: memref<162x2xf32, #tpu.memory_space<vmem>>, %arg16: memref<18x36xf32, #tpu.memory_space<vmem>>, %arg17: memref<1x36xf32, #tpu.memory_space<vmem>>, %arg18: memref<36x2xf32, #tpu.memory_space<vmem>>, %arg19: memref<1x2xf32, #tpu.memory_space<vmem>>, %arg20: memref<2x2xf32, #tpu.memory_space<vmem>>, %arg21: memref<194x18xf32, #tpu.memory_space<vmem>>) attributes {dimension_semantics = [], scalar_prefetch = 0 : i64, scratch_operands = 1 : i64, tpu.core_type = #tpu.core_type<tc>} {
    %c0 = arith.constant 0 : index
    %c0_0 = arith.constant 0 : index
    %0 = vector.load %arg0[%c0, %c0_0] : memref<162x64xf32, #tpu.memory_space<vmem>>, vector<162x64xf32>
    %c0_1 = arith.constant 0 : index
    %c0_2 = arith.constant 0 : index
    %1 = vector.load %arg1[%c0_1, %c0_2] : memref<64x18xf32, #tpu.memory_space<vmem>>, vector<64x18xf32>
    %2 = arith.truncf %0 : vector<162x64xf32> to vector<162x64xbf16>
    %3 = arith.truncf %1 : vector<64x18xf32> to vector<64x18xbf16>
    %cst = arith.constant dense<0.000000e+00> : vector<162x18xf32>
    %4 = tpu.matmul %2, %3, %cst {dimension_numbers = #tpu.dot_dimension_numbers<[1], [0], [0], [1], [0, 0, 1, 1], [], []>} : vector<162x64xbf16>, vector<64x18xbf16>, vector<162x18xf32> -> vector<162x18xf32>
    %c0_3 = arith.constant 0 : index
    %c0_4 = arith.constant 0 : index
    %5 = vector.load %arg2[%c0_3, %c0_4] : memref<1x18xf32, #tpu.memory_space<vmem>>, vector<1x18xf32>
    %6 = vector.broadcast %5 : vector<1x18xf32> to vector<162x18xf32>
    %7 = arith.addf %4, %6 : vector<162x18xf32>
    %c0_5 = arith.constant 0 : index
    %c0_6 = arith.constant 0 : index
    %8 = vector.load %arg3[%c0_5, %c0_6] : memref<1x18xf32, #tpu.memory_space<vmem>>, vector<1x18xf32>
    %c0_7 = arith.constant 0 : index
    %c0_8 = arith.constant 0 : index
    %9 = vector.load %arg4[%c0_7, %c0_8] : memref<1x18xf32, #tpu.memory_space<vmem>>, vector<1x18xf32>
    %10 = arith.mulf %7, %7 : vector<162x18xf32>
    %11 = tpu.concatenate %7, %10 in 1 : vector<162x18xf32>, vector<162x18xf32> -> vector<162x36xf32>
    %cst_9 = arith.constant dense<0.000000e+00> : vector<36xf32>
    %12 = vector.multi_reduction <add>, %11, %cst_9 [0] : vector<162x36xf32> to vector<36xf32>
    %13 = vector.shape_cast %12 : vector<36xf32> to vector<1x36xf32>
    %14 = vector.extract_strided_slice %13 {offsets = [0, 0], sizes = [1, 18], strides = [1, 1]} : vector<1x36xf32> to vector<1x18xf32>
    %cst_10 = arith.constant 0.00617283955 : f32
    %15 = vector.broadcast %cst_10 : f32 to vector<1x18xf32>
    %16 = arith.mulf %14, %15 : vector<1x18xf32>
    %17 = vector.extract_strided_slice %13 {offsets = [0, 18], sizes = [1, 18], strides = [1, 1]} : vector<1x36xf32> to vector<1x18xf32>
    %cst_11 = arith.constant 0.00617283955 : f32
    %18 = vector.broadcast %cst_11 : f32 to vector<1x18xf32>
    %19 = arith.mulf %17, %18 : vector<1x18xf32>
    %20 = arith.mulf %16, %16 : vector<1x18xf32>
    %21 = arith.subf %19, %20 : vector<1x18xf32>
    %cst_12 = arith.constant 9.99999974E-6 : f32
    %22 = vector.broadcast %cst_12 : f32 to vector<1x18xf32>
    %23 = arith.addf %21, %22 : vector<1x18xf32>
    %24 = math.rsqrt %23 : vector<1x18xf32>
    %25 = arith.mulf %8, %24 : vector<1x18xf32>
    %26 = arith.mulf %16, %25 : vector<1x18xf32>
    %27 = arith.subf %9, %26 : vector<1x18xf32>
    %28 = vector.broadcast %25 : vector<1x18xf32> to vector<162x18xf32>
    %29 = arith.mulf %7, %28 : vector<162x18xf32>
    %30 = vector.broadcast %27 : vector<1x18xf32> to vector<162x18xf32>
    %31 = arith.addf %29, %30 : vector<162x18xf32>
    %cst_13 = arith.constant 0.000000e+00 : f32
    %32 = vector.broadcast %cst_13 : f32 to vector<162x18xf32>
    %33 = arith.cmpf oge, %31, %32 : vector<162x18xf32>
    %cst_14 = arith.constant 1.000000e-01 : f32
    %34 = vector.broadcast %cst_14 : f32 to vector<162x18xf32>
    %35 = arith.mulf %34, %31 : vector<162x18xf32>
    %36 = arith.select %33, %31, %35 : vector<162x18xi1>, vector<162x18xf32>
    %c0_15 = arith.constant 0 : index
    %c0_16 = arith.constant 0 : index
    %37 = vector.load %arg14[%c0_15, %c0_16] : memref<2x162xf32, #tpu.memory_space<vmem>>, vector<2x162xf32>
    %c0_17 = arith.constant 0 : index
    %c0_18 = arith.constant 0 : index
    %38 = vector.load %arg15[%c0_17, %c0_18] : memref<162x2xf32, #tpu.memory_space<vmem>>, vector<162x2xf32>
    %cst_19 = arith.constant dense<0.000000e+00> : vector<2x18xf32>
    %39 = tpu.matmul %37, %36, %cst_19 {dimension_numbers = #tpu.dot_dimension_numbers<[1], [0], [0], [1], [0, 0, 1, 1], [], []>} : vector<2x162xf32>, vector<162x18xf32>, vector<2x18xf32> -> vector<2x18xf32>
    %c0_20 = arith.constant 0 : index
    %c0_21 = arith.constant 0 : index
    %40 = vector.load %arg5[%c0_20, %c0_21] : memref<1x18xf32, #tpu.memory_space<vmem>>, vector<1x18xf32>
    %c0_22 = arith.constant 0 : index
    %c0_23 = arith.constant 0 : index
    %41 = vector.load %arg6[%c0_22, %c0_23] : memref<1x18xf32, #tpu.memory_space<vmem>>, vector<1x18xf32>
    %cst_24 = arith.constant 0.000000e+00 : f32
    %42 = vector.broadcast %cst_24 : f32 to vector<2x18xf32>
    %43 = vector.broadcast %40 : vector<1x18xf32> to vector<2x18xf32>
    %44 = arith.mulf %39, %43 : vector<2x18xf32>
    %cst_25 = arith.constant dense<0.000000e+00> : vector<2xf32>
    %45 = vector.multi_reduction <add>, %44, %cst_25 [1] : vector<2x18xf32> to vector<2xf32>
    %46 = vector.shape_cast %45 : vector<2xf32> to vector<2x1xf32>
    %cst_26 = arith.constant 0.000000e+00 : f32
    %47 = vector.broadcast %cst_26 : f32 to vector<2x1xf32>
    %48 = arith.maximumf %46, %47 : vector<2x1xf32>
    %49 = vector.broadcast %48 : vector<2x1xf32> to vector<2x18xf32>
    %50 = vector.broadcast %41 : vector<1x18xf32> to vector<2x18xf32>
    %51 = arith.mulf %49, %50 : vector<2x18xf32>
    %52 = arith.addf %42, %51 : vector<2x18xf32>
    %cst_27 = arith.constant 0.000000e+00 : f32
    %53 = vector.broadcast %cst_27 : f32 to vector<2x18xf32>
    %54 = arith.subf %53, %52 : vector<2x18xf32>
    %55 = math.exp %54 : vector<2x18xf32>
    %cst_28 = arith.constant 1.000000e+00 : f32
    %56 = vector.broadcast %cst_28 : f32 to vector<2x18xf32>
    %57 = arith.addf %56, %55 : vector<2x18xf32>
    %58 = tpu.reciprocal %57 {approx = true} : vector<2x18xf32> -> vector<2x18xf32>
    %cst_29 = arith.constant dense<0.000000e+00> : vector<162x18xf32>
    %59 = tpu.matmul %38, %58, %cst_29 {dimension_numbers = #tpu.dot_dimension_numbers<[1], [0], [0], [1], [0, 0, 1, 1], [], []>} : vector<162x2xf32>, vector<2x18xf32>, vector<162x18xf32> -> vector<162x18xf32>
    %60 = arith.mulf %36, %59 : vector<162x18xf32>
    %cst_30 = arith.constant 0.000000e+00 : f32
    %61 = vector.broadcast %cst_30 : f32 to vector<16x18xf32>
    %c0_31 = arith.constant 0 : index
    %c0_32 = arith.constant 0 : index
    %62 = vector.load %arg21[%c0_31, %c0_32] : memref<194x18xf32, #tpu.memory_space<vmem>>, vector<16x18xf32>
    tpu.vector_store %arg21[%c0_31, %c0_32], %61 {strides = array<i32>} : memref<194x18xf32, #tpu.memory_space<vmem>>, vector<16x18xf32>,
    %c16 = arith.constant 16 : index
    %c0_33 = arith.constant 0 : index
    %63 = vector.load %arg21[%c16, %c0_33] : memref<194x18xf32, #tpu.memory_space<vmem>>, vector<162x18xf32>
    tpu.vector_store %arg21[%c16, %c0_33], %60 {strides = array<i32>} : memref<194x18xf32, #tpu.memory_space<vmem>>, vector<162x18xf32>,
    %cst_34 = arith.constant 0.000000e+00 : f32
    %64 = vector.broadcast %cst_34 : f32 to vector<16x18xf32>
    %c178 = arith.constant 178 : index
    %c0_35 = arith.constant 0 : index
    %65 = vector.load %arg21[%c178, %c0_35] : memref<194x18xf32, #tpu.memory_space<vmem>>, vector<16x18xf32>
    tpu.vector_store %arg21[%c178, %c0_35], %64 {strides = array<i32>} : memref<194x18xf32, #tpu.memory_space<vmem>>, vector<16x18xf32>,
    %c6 = arith.constant 6 : index
    %c0_36 = arith.constant 0 : index
    %66 = vector.load %arg21[%c6, %c0_36] : memref<194x18xf32, #tpu.memory_space<vmem>>, vector<162x18xf32>
    %c0_37 = arith.constant 0 : index
    %c0_38 = arith.constant 0 : index
    %67 = vector.load %arg13[%c0_37, %c0_38] : memref<162x9xf32, #tpu.memory_space<vmem>>, vector<162x1xf32>
    %68 = vector.broadcast %67 : vector<162x1xf32> to vector<162x18xf32>
    %69 = arith.mulf %66, %68 : vector<162x18xf32>
    %c7 = arith.constant 7 : index
    %c0_39 = arith.constant 0 : index
    %70 = vector.load %arg21[%c7, %c0_39] : memref<194x18xf32, #tpu.memory_space<vmem>>, vector<162x18xf32>
    %c0_40 = arith.constant 0 : index
    %c1 = arith.constant 1 : index
    %71 = vector.load %arg13[%c0_40, %c1] : memref<162x9xf32, #tpu.memory_space<vmem>>, vector<162x1xf32>
    %72 = vector.broadcast %71 : vector<162x1xf32> to vector<162x18xf32>
    %73 = arith.mulf %70, %72 : vector<162x18xf32>
    %c8 = arith.constant 8 : index
    %c0_41 = arith.constant 0 : index
    %74 = vector.load %arg21[%c8, %c0_41] : memref<194x18xf32, #tpu.memory_space<vmem>>, vector<162x18xf32>
    %c0_42 = arith.constant 0 : index
    %c2 = arith.constant 2 : index
    %75 = vector.load %arg13[%c0_42, %c2] : memref<162x9xf32, #tpu.memory_space<vmem>>, vector<162x1xf32>
    %76 = vector.broadcast %75 : vector<162x1xf32> to vector<162x18xf32>
    %77 = arith.mulf %74, %76 : vector<162x18xf32>
    %c15 = arith.constant 15 : index
    %c0_43 = arith.constant 0 : index
    %78 = vector.load %arg21[%c15, %c0_43] : memref<194x18xf32, #tpu.memory_space<vmem>>, vector<162x18xf32>
    %c0_44 = arith.constant 0 : index
    %c3 = arith.constant 3 : index
    %79 = vector.load %arg13[%c0_44, %c3] : memref<162x9xf32, #tpu.memory_space<vmem>>, vector<162x1xf32>
    %80 = vector.broadcast %79 : vector<162x1xf32> to vector<162x18xf32>
    %81 = arith.mulf %78, %80 : vector<162x18xf32>
    %c16_45 = arith.constant 16 : index
    %c0_46 = arith.constant 0 : index
    %82 = vector.load %arg21[%c16_45, %c0_46] : memref<194x18xf32, #tpu.memory_space<vmem>>, vector<162x18xf32>
    %c0_47 = arith.constant 0 : index
    %c4 = arith.constant 4 : index
    %83 = vector.load %arg13[%c0_47, %c4] : memref<162x9xf32, #tpu.memory_space<vmem>>, vector<162x1xf32>
    %84 = vector.broadcast %83 : vector<162x1xf32> to vector<162x18xf32>
    %85 = arith.mulf %82, %84 : vector<162x18xf32>
    %c17 = arith.constant 17 : index
    %c0_48 = arith.constant 0 : index
    %86 = vector.load %arg21[%c17, %c0_48] : memref<194x18xf32, #tpu.memory_space<vmem>>, vector<162x18xf32>
    %c0_49 = arith.constant 0 : index
    %c5 = arith.constant 5 : index
    %87 = vector.load %arg13[%c0_49, %c5] : memref<162x9xf32, #tpu.memory_space<vmem>>, vector<162x1xf32>
    %88 = vector.broadcast %87 : vector<162x1xf32> to vector<162x18xf32>
    %89 = arith.mulf %86, %88 : vector<162x18xf32>
    %c24 = arith.constant 24 : index
    %c0_50 = arith.constant 0 : index
    %90 = vector.load %arg21[%c24, %c0_50] : memref<194x18xf32, #tpu.memory_space<vmem>>, vector<162x18xf32>
    %c0_51 = arith.constant 0 : index
    %c6_52 = arith.constant 6 : index
    %91 = vector.load %arg13[%c0_51, %c6_52] : memref<162x9xf32, #tpu.memory_space<vmem>>, vector<162x1xf32>
    %92 = vector.broadcast %91 : vector<162x1xf32> to vector<162x18xf32>
    %93 = arith.mulf %90, %92 : vector<162x18xf32>
    %c25 = arith.constant 25 : index
    %c0_53 = arith.constant 0 : index
    %94 = vector.load %arg21[%c25, %c0_53] : memref<194x18xf32, #tpu.memory_space<vmem>>, vector<162x18xf32>
    %c0_54 = arith.constant 0 : index
    %c7_55 = arith.constant 7 : index
    %95 = vector.load %arg13[%c0_54, %c7_55] : memref<162x9xf32, #tpu.memory_space<vmem>>, vector<162x1xf32>
    %96 = vector.broadcast %95 : vector<162x1xf32> to vector<162x18xf32>
    %97 = arith.mulf %94, %96 : vector<162x18xf32>
    %c26 = arith.constant 26 : index
    %c0_56 = arith.constant 0 : index
    %98 = vector.load %arg21[%c26, %c0_56] : memref<194x18xf32, #tpu.memory_space<vmem>>, vector<162x18xf32>
    %c0_57 = arith.constant 0 : index
    %c8_58 = arith.constant 8 : index
    %99 = vector.load %arg13[%c0_57, %c8_58] : memref<162x9xf32, #tpu.memory_space<vmem>>, vector<162x1xf32>
    %100 = vector.broadcast %99 : vector<162x1xf32> to vector<162x18xf32>
    %101 = arith.mulf %98, %100 : vector<162x18xf32>
    %102 = tpu.concatenate %69, %73, %77, %81, %85, %89, %93, %97, %101 in 1 : vector<162x18xf32>, vector<162x18xf32>, vector<162x18xf32>, vector<162x18xf32>, vector<162x18xf32>, vector<162x18xf32>, vector<162x18xf32>, vector<162x18xf32>, vector<162x18xf32> -> vector<162x162xf32>
    %c0_59 = arith.constant 0 : index
    %c0_60 = arith.constant 0 : index
    %103 = vector.load %arg7[%c0_59, %c0_60] : memref<162x36xf32, #tpu.memory_space<vmem>>, vector<162x36xf32>
    %104 = arith.truncf %102 : vector<162x162xf32> to vector<162x162xbf16>
    %105 = arith.truncf %103 : vector<162x36xf32> to vector<162x36xbf16>
    %cst_61 = arith.constant dense<0.000000e+00> : vector<162x36xf32>
    %106 = tpu.matmul %104, %105, %cst_61 {dimension_numbers = #tpu.dot_dimension_numbers<[1], [0], [0], [1], [0, 0, 1, 1], [], []>} : vector<162x162xbf16>, vector<162x36xbf16>, vector<162x36xf32> -> vector<162x36xf32>
    %c0_62 = arith.constant 0 : index
    %c0_63 = arith.constant 0 : index
    %107 = vector.load %arg8[%c0_62, %c0_63] : memref<1x36xf32, #tpu.memory_space<vmem>>, vector<1x36xf32>
    %108 = vector.broadcast %107 : vector<1x36xf32> to vector<162x36xf32>
    %109 = arith.addf %106, %108 : vector<162x36xf32>
    %c0_64 = arith.constant 0 : index
    %c0_65 = arith.constant 0 : index
    %110 = vector.load %arg9[%c0_64, %c0_65] : memref<1x36xf32, #tpu.memory_space<vmem>>, vector<1x36xf32>
    %c0_66 = arith.constant 0 : index
    %c0_67 = arith.constant 0 : index
    %111 = vector.load %arg10[%c0_66, %c0_67] : memref<1x36xf32, #tpu.memory_space<vmem>>, vector<1x36xf32>
    %112 = arith.mulf %109, %109 : vector<162x36xf32>
    %113 = tpu.concatenate %109, %112 in 1 : vector<162x36xf32>, vector<162x36xf32> -> vector<162x72xf32>
    %cst_68 = arith.constant dense<0.000000e+00> : vector<72xf32>
    %114 = vector.multi_reduction <add>, %113, %cst_68 [0] : vector<162x72xf32> to vector<72xf32>
    %115 = vector.shape_cast %114 : vector<72xf32> to vector<1x72xf32>
    %116 = vector.extract_strided_slice %115 {offsets = [0, 0], sizes = [1, 36], strides = [1, 1]} : vector<1x72xf32> to vector<1x36xf32>
    %cst_69 = arith.constant 0.00617283955 : f32
    %117 = vector.broadcast %cst_69 : f32 to vector<1x36xf32>
    %118 = arith.mulf %116, %117 : vector<1x36xf32>
    %119 = vector.extract_strided_slice %115 {offsets = [0, 36], sizes = [1, 36], strides = [1, 1]} : vector<1x72xf32> to vector<1x36xf32>
    %cst_70 = arith.constant 0.00617283955 : f32
    %120 = vector.broadcast %cst_70 : f32 to vector<1x36xf32>
    %121 = arith.mulf %119, %120 : vector<1x36xf32>
    %122 = arith.mulf %118, %118 : vector<1x36xf32>
    %123 = arith.subf %121, %122 : vector<1x36xf32>
    %cst_71 = arith.constant 9.99999974E-6 : f32
    %124 = vector.broadcast %cst_71 : f32 to vector<1x36xf32>
    %125 = arith.addf %123, %124 : vector<1x36xf32>
    %126 = math.rsqrt %125 : vector<1x36xf32>
    %127 = arith.mulf %110, %126 : vector<1x36xf32>
    %128 = arith.mulf %118, %127 : vector<1x36xf32>
    %129 = arith.subf %111, %128 : vector<1x36xf32>
    %130 = vector.broadcast %127 : vector<1x36xf32> to vector<162x36xf32>
    %131 = arith.mulf %109, %130 : vector<162x36xf32>
    %132 = vector.broadcast %129 : vector<1x36xf32> to vector<162x36xf32>
    %133 = arith.addf %131, %132 : vector<162x36xf32>
    %cst_72 = arith.constant 0.000000e+00 : f32
    %134 = vector.broadcast %cst_72 : f32 to vector<162x36xf32>
    %135 = arith.cmpf oge, %133, %134 : vector<162x36xf32>
    %cst_73 = arith.constant 1.000000e-01 : f32
    %136 = vector.broadcast %cst_73 : f32 to vector<162x36xf32>
    %137 = arith.mulf %136, %133 : vector<162x36xf32>
    %138 = arith.select %135, %133, %137 : vector<162x36xi1>, vector<162x36xf32>
    %c0_74 = arith.constant 0 : index
    %c0_75 = arith.constant 0 : index
    %139 = vector.load %arg16[%c0_74, %c0_75] : memref<18x36xf32, #tpu.memory_space<vmem>>, vector<18x36xf32>
    %140 = arith.truncf %36 : vector<162x18xf32> to vector<162x18xbf16>
    %141 = arith.truncf %139 : vector<18x36xf32> to vector<18x36xbf16>
    %cst_76 = arith.constant dense<0.000000e+00> : vector<162x36xf32>
    %142 = tpu.matmul %140, %141, %cst_76 {dimension_numbers = #tpu.dot_dimension_numbers<[1], [0], [0], [1], [0, 0, 1, 1], [], []>} : vector<162x18xbf16>, vector<18x36xbf16>, vector<162x36xf32> -> vector<162x36xf32>
    %c0_77 = arith.constant 0 : index
    %c0_78 = arith.constant 0 : index
    %143 = vector.load %arg17[%c0_77, %c0_78] : memref<1x36xf32, #tpu.memory_space<vmem>>, vector<1x36xf32>
    %144 = vector.broadcast %143 : vector<1x36xf32> to vector<162x36xf32>
    %145 = arith.addf %142, %144 : vector<162x36xf32>
    %cst_79 = arith.constant 0.000000e+00 : f32
    %146 = vector.broadcast %cst_79 : f32 to vector<162x36xf32>
    %147 = arith.maximumf %145, %146 : vector<162x36xf32>
    %cst_80 = arith.constant dense<0.000000e+00> : vector<2x36xf32>
    %148 = tpu.matmul %37, %138, %cst_80 {dimension_numbers = #tpu.dot_dimension_numbers<[1], [0], [0], [1], [0, 0, 1, 1], [], []>} : vector<2x162xf32>, vector<162x36xf32>, vector<2x36xf32> -> vector<2x36xf32>
    %c0_81 = arith.constant 0 : index
    %c0_82 = arith.constant 0 : index
    %149 = vector.load %arg11[%c0_81, %c0_82] : memref<2x36xf32, #tpu.memory_space<vmem>>, vector<2x36xf32>
    %c0_83 = arith.constant 0 : index
    %c0_84 = arith.constant 0 : index
    %150 = vector.load %arg12[%c0_83, %c0_84] : memref<2x36xf32, #tpu.memory_space<vmem>>, vector<2x36xf32>
    %cst_85 = arith.constant 0.000000e+00 : f32
    %151 = vector.broadcast %cst_85 : f32 to vector<2x36xf32>
    %152 = vector.extract_strided_slice %149 {offsets = [0, 0], sizes = [1, 36], strides = [1, 1]} : vector<2x36xf32> to vector<1x36xf32>
    %153 = vector.broadcast %152 : vector<1x36xf32> to vector<2x36xf32>
    %154 = arith.mulf %148, %153 : vector<2x36xf32>
    %cst_86 = arith.constant dense<0.000000e+00> : vector<2xf32>
    %155 = vector.multi_reduction <add>, %154, %cst_86 [1] : vector<2x36xf32> to vector<2xf32>
    %156 = vector.shape_cast %155 : vector<2xf32> to vector<2x1xf32>
    %cst_87 = arith.constant 0.000000e+00 : f32
    %157 = vector.broadcast %cst_87 : f32 to vector<2x1xf32>
    %158 = arith.maximumf %156, %157 : vector<2x1xf32>
    %159 = vector.extract_strided_slice %150 {offsets = [0, 0], sizes = [1, 36], strides = [1, 1]} : vector<2x36xf32> to vector<1x36xf32>
    %160 = vector.broadcast %158 : vector<2x1xf32> to vector<2x36xf32>
    %161 = vector.broadcast %159 : vector<1x36xf32> to vector<2x36xf32>
    %162 = arith.mulf %160, %161 : vector<2x36xf32>
    %163 = arith.addf %151, %162 : vector<2x36xf32>
    %164 = vector.extract_strided_slice %149 {offsets = [1, 0], sizes = [1, 36], strides = [1, 1]} : vector<2x36xf32> to vector<1x36xf32>
    %165 = vector.broadcast %164 : vector<1x36xf32> to vector<2x36xf32>
    %166 = arith.mulf %148, %165 : vector<2x36xf32>
    %cst_88 = arith.constant dense<0.000000e+00> : vector<2xf32>
    %167 = vector.multi_reduction <add>, %166, %cst_88 [1] : vector<2x36xf32> to vector<2xf32>
    %168 = vector.shape_cast %167 : vector<2xf32> to vector<2x1xf32>
    %cst_89 = arith.constant 0.000000e+00 : f32
    %169 = vector.broadcast %cst_89 : f32 to vector<2x1xf32>
    %170 = arith.maximumf %168, %169 : vector<2x1xf32>
    %171 = vector.extract_strided_slice %150 {offsets = [1, 0], sizes = [1, 36], strides = [1, 1]} : vector<2x36xf32> to vector<1x36xf32>
    %172 = vector.broadcast %170 : vector<2x1xf32> to vector<2x36xf32>
    %173 = vector.broadcast %171 : vector<1x36xf32> to vector<2x36xf32>
    %174 = arith.mulf %172, %173 : vector<2x36xf32>
    %175 = arith.addf %163, %174 : vector<2x36xf32>
    %cst_90 = arith.constant 0.000000e+00 : f32
    %176 = vector.broadcast %cst_90 : f32 to vector<2x36xf32>
    %177 = arith.subf %176, %175 : vector<2x36xf32>
    %178 = math.exp %177 : vector<2x36xf32>
    %cst_91 = arith.constant 1.000000e+00 : f32
    %179 = vector.broadcast %cst_91 : f32 to vector<2x36xf32>
    %180 = arith.addf %179, %178 : vector<2x36xf32>
    %181 = tpu.reciprocal %180 {approx = true} : vector<2x36xf32> -> vector<2x36xf32>
    %cst_92 = arith.constant dense<0.000000e+00> : vector<162x36xf32>
    %182 = tpu.matmul %38, %181, %cst_92 {dimension_numbers = #tpu.dot_dimension_numbers<[1], [0], [0], [1], [0, 0, 1, 1], [], []>} : vector<162x2xf32>, vector<2x36xf32>, vector<162x36xf32> -> vector<162x36xf32>
    %183 = arith.mulf %138, %182 : vector<162x36xf32>
    %184 = arith.addf %183, %147 : vector<162x36xf32>
    %cst_93 = arith.constant dense<0.000000e+00> : vector<2x36xf32>
    %185 = tpu.matmul %37, %184, %cst_93 {dimension_numbers = #tpu.dot_dimension_numbers<[1], [0], [0], [1], [0, 0, 1, 1], [], []>} : vector<2x162xf32>, vector<162x36xf32>, vector<2x36xf32> -> vector<2x36xf32>
    %c0_94 = arith.constant 0 : index
    %c0_95 = arith.constant 0 : index
    %186 = vector.load %arg18[%c0_94, %c0_95] : memref<36x2xf32, #tpu.memory_space<vmem>>, vector<36x2xf32>
    %cst_96 = arith.constant dense<0.000000e+00> : vector<2x2xf32>
    %187 = tpu.matmul %185, %186, %cst_96 {dimension_numbers = #tpu.dot_dimension_numbers<[1], [0], [0], [1], [0, 0, 1, 1], [], []>} : vector<2x36xf32>, vector<36x2xf32>, vector<2x2xf32> -> vector<2x2xf32>
    %c0_97 = arith.constant 0 : index
    %c0_98 = arith.constant 0 : index
    %188 = vector.load %arg19[%c0_97, %c0_98] : memref<1x2xf32, #tpu.memory_space<vmem>>, vector<1x2xf32>
    %189 = vector.broadcast %188 : vector<1x2xf32> to vector<2x2xf32>
    %190 = arith.addf %187, %189 : vector<2x2xf32>
    %c0_99 = arith.constant 0 : index
    %c0_100 = arith.constant 0 : index
    %191 = vector.load %arg20[%c0_99, %c0_100] : memref<2x2xf32, #tpu.memory_space<vmem>>, vector<2x2xf32>
    tpu.vector_store %arg20[%c0_99, %c0_100], %190 {strides = array<i32>} : memref<2x2xf32, #tpu.memory_space<vmem>>, vector<2x2xf32>,
    return
  }
}

</mosaic_0001>

<llo_original>
// kernel: unet_forward.1
$region0: #{unet_forward.1}
  #allocation0 [shape = 'u32[]', space=smem, size = 0x4, offset = 0x4, fixed_abs, tag = 'smem constant byte address 0x4 - core index']
  #allocation1 [shape = 'u32[144,128]{1,0:T(1,128)}', space=vmem, size = 0x12000, scoped, tag = 'internal scratch']
  #allocation2 [shape = 'f32[194,18]{1,0:T(8,128)}', space=vmem, size = 0x19000, scoped, tag = 'scratch operand']
  %s0 = inlined_call_operand.vmem [shape: f32[162,64], index: 0, kind: input, shape index: {}]
  %s1 = inlined_call_operand.vmem [shape: f32[64,18], index: 1, kind: input, shape index: {}]
  %s2 = inlined_call_operand.vmem [shape: f32[1,18], index: 2, kind: input, shape index: {}]
  %s3 = inlined_call_operand.vmem [shape: f32[1,18], index: 3, kind: input, shape index: {}]
  %s4 = inlined_call_operand.vmem [shape: f32[1,18], index: 4, kind: input, shape index: {}]
  %s5 = inlined_call_operand.vmem [shape: f32[1,18], index: 5, kind: input, shape index: {}]
  %s6 = inlined_call_operand.vmem [shape: f32[1,18], index: 6, kind: input, shape index: {}]
  %s7 = inlined_call_operand.vmem [shape: f32[162,36], index: 7, kind: input, shape index: {}]
  %s8 = inlined_call_operand.vmem [shape: f32[1,36], index: 8, kind: input, shape index: {}]
  %s9 = inlined_call_operand.vmem [shape: f32[1,36], index: 9, kind: input, shape index: {}]
  %s10 = inlined_call_operand.vmem [shape: f32[1,36], index: 10, kind: input, shape index: {}]
  %s11 = inlined_call_operand.vmem [shape: f32[2,36], index: 11, kind: input, shape index: {}]
  %s12 = inlined_call_operand.vmem [shape: f32[2,36], index: 12, kind: input, shape index: {}]
  %s13 = inlined_call_operand.vmem [shape: f32[162,9], index: 13, kind: input, shape index: {}]
  %s14 = inlined_call_operand.vmem [shape: f32[2,162], index: 14, kind: input, shape index: {}]
  %s15 = inlined_call_operand.vmem [shape: f32[162,2], index: 15, kind: input, shape index: {}]
  %s16 = inlined_call_operand.vmem [shape: f32[18,36], index: 16, kind: input, shape index: {}]
  %s17 = inlined_call_operand.vmem [shape: f32[1,36], index: 17, kind: input, shape index: {}]
  %s18 = inlined_call_operand.vmem [shape: f32[36,2], index: 18, kind: input, shape index: {}]
  %s19 = inlined_call_operand.vmem [shape: f32[1,2], index: 19, kind: input, shape index: {}]
  %s20 = inlined_call_operand.hbm [shape: f32[2,2], index: 20, kind: output, shape index: {}]
  %s21 = sld [smem:[#allocation0]]
  $region90: #{unet_forward.1} parent=0
    _
  %s23 = ssub.s32 1, %s21
  %s24 = scalar_select 0, %s23, %s21
  $region1: #{unet_forward.1} parent=0
    #allocation3 [shape = 'u8[1024]{0}', space=vmem, size = 0x400, scoped, tag = 'output window, operand 0, single buffered']
    #allocation4 [shape = 's32[1]{0}', space=sflag, size = 0x4, scoped, tag = 'scoped memory for unet_forward.1']
    %25 = vsyncpa [#allocation4], 0
    // Predicated region
    $region2: #{unet_forward.1} parent=1 // pred_check
      _
    $region3: #{unet_forward.1} parent=1 // pred_check_branch
      %27 = sbr.rel (0) target = $region5
    $region4: #{unet_forward.1} parent=1 // pred_region
      _
    $region5: #{unet_forward.1} parent=1 // pred_fallthru
      _
    // Predicated region
    $region6: #{unet_forward.1} parent=1 // pred_check
      _
    $region7: #{unet_forward.1} parent=1 // pred_check_branch
      %29 = sbr.rel (0) target = $region9
    $region8: #{unet_forward.1} parent=1 // pred_region
      _
    $region9: #{unet_forward.1} parent=1 // pred_fallthru
      _
    // Predicated region
    $region10: #{unet_forward.1} parent=1 // pred_check
      _
    $region11: #{unet_forward.1} parent=1 // pred_check_branch
      %31 = sbr.rel (0) target = $region13
    $region12: #{unet_forward.1} parent=1 // pred_region
      _
    $region13: #{unet_forward.1} parent=1 // pred_fallthru
      _
    // Predicated region
    $region14: #{unet_forward.1} parent=1 // pred_check
      _
    $region15: #{unet_forward.1} parent=1 // pred_check_branch
      %33 = sbr.rel (0) target = $region17
    $region16: #{unet_forward.1} parent=1 // pred_region
      _
    $region17: #{unet_forward.1} parent=1 // pred_fallthru
      _
    // Predicated region
    $region18: #{unet_forward.1} parent=1 // pred_check
      _
    $region19: #{unet_forward.1} parent=1 // pred_check_branch
      %35 = sbr.rel (0) target = $region21
    $region20: #{unet_forward.1} parent=1 // pred_region
      _
    $region21: #{unet_forward.1} parent=1 // pred_fallthru
      _
    // Predicated region
    $region22: #{unet_forward.1} parent=1 // pred_check
      _
    $region23: #{unet_forward.1} parent=1 // pred_check_branch
      %37 = sbr.rel (0) target = $region25
    $region24: #{unet_forward.1} parent=1 // pred_region
      _
    $region25: #{unet_forward.1} parent=1 // pred_fallthru
      _
    // Predicated region
    $region26: #{unet_forward.1} parent=1 // pred_check
      _
    $region27: #{unet_forward.1} parent=1 // pred_check_branch
      %39 = sbr.rel (0) target = $region29
    $region28: #{unet_forward.1} parent=1 // pred_region
      _
    $region29: #{unet_forward.1} parent=1 // pred_fallthru
      _
    // Predicated region
    $region30: #{unet_forward.1} parent=1 // pred_check
      _
    $region31: #{unet_forward.1} parent=1 // pred_check_branch
      %41 = sbr.rel (0) target = $region33
    $region32: #{unet_forward.1} parent=1 // pred_region
      _
    $region33: #{unet_forward.1} parent=1 // pred_fallthru
      _
    // Predicated region
    $region34: #{unet_forward.1} parent=1 // pred_check
      _
    $region35: #{unet_forward.1} parent=1 // pred_check_branch
      %43 = sbr.rel (0) target = $region37
    $region36: #{unet_forward.1} parent=1 // pred_region
      _
    $region37: #{unet_forward.1} parent=1 // pred_fallthru
      _
    // Predicated region
    $region38: #{unet_forward.1} parent=1 // pred_check
      _
    $region39: #{unet_forward.1} parent=1 // pred_check_branch
      %45 = sbr.rel (0) target = $region41
    $region40: #{unet_forward.1} parent=1 // pred_region
      _
    $region41: #{unet_forward.1} parent=1 // pred_fallthru
      _
    // Predicated region
    $region42: #{unet_forward.1} parent=1 // pred_check
      _
    $region43: #{unet_forward.1} parent=1 // pred_check_branch
      %47 = sbr.rel (0) target = $region45
    $region44: #{unet_forward.1} parent=1 // pred_region
      _
    $region45: #{unet_forward.1} parent=1 // pred_fallthru
      _
    // Predicated region
    $region46: #{unet_forward.1} parent=1 // pred_check
      _
    $region47: #{unet_forward.1} parent=1 // pred_check_branch
      %49 = sbr.rel (0) target = $region49
    $region48: #{unet_forward.1} parent=1 // pred_region
      _
    $region49: #{unet_forward.1} parent=1 // pred_fallthru
      _
    // Predicated region
    $region50: #{unet_forward.1} parent=1 // pred_check
      _
    $region51: #{unet_forward.1} parent=1 // pred_check_branch
      %51 = sbr.rel (0) target = $region53
    $region52: #{unet_forward.1} parent=1 // pred_region
      _
    $region53: #{unet_forward.1} parent=1 // pred_fallthru
      _
    // Predicated region
    $region54: #{unet_forward.1} parent=1 // pred_check
      _
    $region55: #{unet_forward.1} parent=1 // pred_check_branch
      %53 = sbr.rel (0) target = $region57
    $region56: #{unet_forward.1} parent=1 // pred_region
      _
    $region57: #{unet_forward.1} parent=1 // pred_fallthru
      _
    // Predicated region
    $region58: #{unet_forward.1} parent=1 // pred_check
      _
    $region59: #{unet_forward.1} parent=1 // pred_check_branch
      %55 = sbr.rel (0) target = $region61
    $region60: #{unet_forward.1} parent=1 // pred_region
      _
    $region61: #{unet_forward.1} parent=1 // pred_fallthru
      _
    // Predicated region
    $region62: #{unet_forward.1} parent=1 // pred_check
      _
    $region63: #{unet_forward.1} parent=1 // pred_check_branch
      %57 = sbr.rel (0) target = $region65
    $region64: #{unet_forward.1} parent=1 // pred_region
      _
    $region65: #{unet_forward.1} parent=1 // pred_fallthru
      _
    // Predicated region
    $region66: #{unet_forward.1} parent=1 // pred_check
      _
    $region67: #{unet_forward.1} parent=1 // pred_check_branch
      %59 = sbr.rel (0) target = $region69
    $region68: #{unet_forward.1} parent=1 // pred_region
      _
    $region69: #{unet_forward.1} parent=1 // pred_fallthru
      _
    // Predicated region
    $region70: #{unet_forward.1} parent=1 // pred_check
      _
    $region71: #{unet_forward.1} parent=1 // pred_check_branch
      %61 = sbr.rel (0) target = $region73
    $region72: #{unet_forward.1} parent=1 // pred_region
      _
    $region73: #{unet_forward.1} parent=1 // pred_fallthru
      _
    // Predicated region
    $region74: #{unet_forward.1} parent=1 // pred_check
      _
    $region75: #{unet_forward.1} parent=1 // pred_check_branch
      %63 = sbr.rel (0) target = $region77
    $region76: #{unet_forward.1} parent=1 // pred_region
      _
    $region77: #{unet_forward.1} parent=1 // pred_fallthru
      _
    // Predicated region
    $region78: #{unet_forward.1} parent=1 // pred_check
      _
    $region79: #{unet_forward.1} parent=1 // pred_check_branch
      %65 = sbr.rel (0) target = $region81
    $region80: #{unet_forward.1} parent=1 // pred_region
      _
    $region81: #{unet_forward.1} parent=1 // pred_fallthru
      _
    %v67 = vld [vmem:[%s0] sm:$0xff]
    %v68 = vld [vmem:[%s0 + $0x8] sm:$0xff]
    %v69 = vld [vmem:[%s0 + $0x10] sm:$0xff]
    %v70 = vld [vmem:[%s0 + $0x18] sm:$0xff]
    %v71 = vld [vmem:[%s0 + $0x20] sm:$0xff]
    %v72 = vld [vmem:[%s0 + $0x28] sm:$0xff]
    %v73 = vld [vmem:[%s0 + $0x30] sm:$0xff]
    %v74 = vld [vmem:[%s0 + $0x38] sm:$0xff]
    %v75 = vld [vmem:[%s0 + $0x40] sm:$0xff]
    %v76 = vld [vmem:[%s0 + $0x48] sm:$0xff]
    %v77 = vld [vmem:[%s0 + $0x50] sm:$0xff]
    %v78 = vld [vmem:[%s0 + $0x58] sm:$0xff]
    %v79 = vld [vmem:[%s0 + $0x60] sm:$0xff]
    %v80 = vld [vmem:[%s0 + $0x68] sm:$0xff]
    %v81 = vld [vmem:[%s0 + $0x70] sm:$0xff]
    %v82 = vld [vmem:[%s0 + $0x78] sm:$0xff]
    %v83 = vld [vmem:[%s0 + $0x80] sm:$0xff]
    %v84 = vld [vmem:[%s0 + $0x88] sm:$0xff]
    %v85 = vld [vmem:[%s0 + $0x90] sm:$0xff]
    %v86 = vld [vmem:[%s0 + $0x98] sm:$0xff]
    %v87 = vld [vmem:[%s0 + $0xa0] sm:$0x3]
    %v88 = vld [vmem:[%s1] sm:$0xff]
    %v89 = vld [vmem:[%s1 + $0x8] sm:$0xff]
    %v90 = vld [vmem:[%s1 + $0x10] sm:$0xff]
    %v91 = vld [vmem:[%s1 + $0x18] sm:$0xff]
    %v92 = vld [vmem:[%s1 + $0x20] sm:$0xff]
    %v93 = vld [vmem:[%s1 + $0x28] sm:$0xff]
    %v94 = vld [vmem:[%s1 + $0x30] sm:$0xff]
    %v95 = vld [vmem:[%s1 + $0x38] sm:$0xff]
    %v96 = vpack.c.bf16 %v68, %v67
    %v97 = vpack.c.bf16 %v70, %v69
    %v98 = vpack.c.bf16 %v72, %v71
    %v99 = vpack.c.bf16 %v74, %v73
    %v100 = vpack.c.bf16 %v76, %v75
    %v101 = vpack.c.bf16 %v78, %v77
    %v102 = vpack.c.bf16 %v80, %v79
    %v103 = vpack.c.bf16 %v82, %v81
    %v104 = vpack.c.bf16 %v84, %v83
    %v105 = vpack.c.bf16 %v86, %v85
    %v106 = vpack.c.bf16 %v87, %v87
    %v107 = vpack.c.bf16 %v89, %v88
    %v108 = vpack.c.bf16 %v91, %v90
    %v109 = vpack.c.bf16 %v93, %v92
    %v110 = vpack.c.bf16 %v95, %v94
    %v111 = vld [vmem:[%s2] sm:$0x1]
    %v113 = vlaneseq
    %v114 = vshrl.u32 %v113, 7
    %v115 = vsub.s32 0, %v114
    %v116 = vrot.slane %v111, %v115
    %vm118 = vcmask 523264
    %v120 = vsel %vm118, %v96, 0
    %v123 = vsel %vm118, %v97, 0
    %v126 = vsel %vm118, %v98, 0
    %v129 = vsel %vm118, %v99, 0
    %v132 = vsel %vm118, %v100, 0
    %v135 = vsel %vm118, %v101, 0
    %v138 = vsel %vm118, %v102, 0
    %v141 = vsel %vm118, %v103, 0
    %v144 = vsel %vm118, %v104, 0
    %v147 = vsel %vm118, %v105, 0
    %v150 = vsel %vm118, %v106, 0
    %152 = vmatprep.subr.bf16.mxu0 0
    %153 = vmatpush1.bf16.msra.mxu0 0
    %154 = vmatprep.subr.bf16.mxu0 0
    %155 = vmatpush1.bf16.msra.mxu0 0
    %156 = vmatprep.subr.bf16.mxu0 0
    %157 = vmatpush1.bf16.msra.mxu0 0
    %158 = vmatprep.subr.bf16.mxu0 0
    %159 = vmatpush1.bf16.msra.mxu0 0
    %160 = vmatprep.subr.bf16.mxu0 0
    %161 = vmatpush1.bf16.msra.mxu0 %v110
    %162 = vmatprep.subr.bf16.mxu0 0
    %163 = vmatpush1.bf16.msra.mxu0 %v109
    %164 = vmatprep.subr.bf16.mxu0 0
    %165 = vmatpush1.bf16.msra.mxu0 %v108
    %166 = vmatprep.subr.bf16.mxu0 0
    %167 = vmatpush1.bf16.msra.mxu0 %v107
    %168 = vmatprep.subr.bf16.mxu0 0
    %169 = vmatpush2.bf16.msra.mxu0 0
    %170 = vmatprep.subr.bf16.mxu0 0
    %171 = vmatpush2.bf16.msra.mxu0 0
    %172 = vmatprep.subr.bf16.mxu0 0
    %173 = vmatpush2.bf16.msra.mxu0 0
    %174 = vmatprep.subr.bf16.mxu0 0
    %175 = vmatpush2.bf16.msra.mxu0 0
    %176 = vmatprep.subr.bf16.mxu0 0
    %177 = vmatpush2.bf16.msra.mxu0 0
    %178 = vmatprep.subr.bf16.mxu0 0
    %179 = vmatpush2.bf16.msra.mxu0 0
    %180 = vmatprep.subr.bf16.mxu0 0
    %181 = vmatpush2.bf16.msra.mxu0 0
    %182 = vmatprep.subr.bf16.mxu0 0
    %183 = vmatpush2.bf16.msra.mxu0 0
    %184 = vmatprep.mubr.bf16.mxu0 0
    %185 = vmatmul.mubr.bf16.gmra.mxu0 %v120
    %v186 = vpop.f32.mrf.mxu0
    %v187 = vadd.f32 %v116, %v186
    %v188 = vpop.f32.mrf.mxu0
    %v189 = vpop.f32.mrf.mxu0
    %v190 = vadd.f32 %v116, %v189
    %v191 = vpop.f32.mrf.mxu0
    %192 = vmatprep.mubr.bf16.mxu0 0
    %193 = vmatmul.mubr.bf16.gmra.mxu0 %v123
    %v194 = vpop.f32.mrf.mxu0
    %v195 = vadd.f32 %v116, %v194
    %v196 = vpop.f32.mrf.mxu0
    %v197 = vpop.f32.mrf.mxu0
    %v198 = vadd.f32 %v116, %v197
    %v199 = vpop.f32.mrf.mxu0
    %200 = vmatprep.mubr.bf16.mxu0 0
    %201 = vmatmul.mubr.bf16.gmra.mxu0 %v126
    %v202 = vpop.f32.mrf.mxu0
    %v203 = vadd.f32 %v116, %v202
    %v204 = vpop.f32.mrf.mxu0
    %v205 = vpop.f32.mrf.mxu0
    %v206 = vadd.f32 %v116, %v205
    %v207 = vpop.f32.mrf.mxu0
    %208 = vmatprep.mubr.bf16.mxu0 0
    %209 = vmatmul.mubr.bf16.gmra.mxu0 %v129
    %v210 = vpop.f32.mrf.mxu0
    %v211 = vadd.f32 %v116, %v210
    %v212 = vpop.f32.mrf.mxu0
    %v213 = vpop.f32.mrf.mxu0
    %v214 = vadd.f32 %v116, %v213
    %v215 = vpop.f32.mrf.mxu0
    %216 = vmatprep.mubr.bf16.mxu0 0
    %217 = vmatmul.mubr.bf16.gmra.mxu0 %v132
    %v218 = vpop.f32.mrf.mxu0
    %v219 = vadd.f32 %v116, %v218
    %v220 = vpop.f32.mrf.mxu0
    %v221 = vpop.f32.mrf.mxu0
    %v222 = vadd.f32 %v116, %v221
    %v223 = vpop.f32.mrf.mxu0
    %224 = vmatprep.mubr.bf16.mxu0 0
    %225 = vmatmul.mubr.bf16.gmra.mxu0 %v135
    %v226 = vpop.f32.mrf.mxu0
    %v227 = vadd.f32 %v116, %v226
    %v228 = vpop.f32.mrf.mxu0
    %v229 = vpop.f32.mrf.mxu0
    %v230 = vadd.f32 %v116, %v229
    %v231 = vpop.f32.mrf.mxu0
    %232 = vmatprep.mubr.bf16.mxu0 0
    %233 = vmatmul.mubr.bf16.gmra.mxu0 %v138
    %v234 = vpop.f32.mrf.mxu0
    %v235 = vadd.f32 %v116, %v234
    %v236 = vpop.f32.mrf.mxu0
    %v237 = vpop.f32.mrf.mxu0
    %v238 = vadd.f32 %v116, %v237
    %v239 = vpop.f32.mrf.mxu0
    %240 = vmatprep.mubr.bf16.mxu0 0
    %241 = vmatmul.mubr.bf16.gmra.mxu0 %v141
    %v242 = vpop.f32.mrf.mxu0
    %v243 = vadd.f32 %v116, %v242
    %v244 = vpop.f32.mrf.mxu0
    %v245 = vpop.f32.mrf.mxu0
    %v246 = vadd.f32 %v116, %v245
    %v247 = vpop.f32.mrf.mxu0
    %248 = vmatprep.mubr.bf16.mxu0 0
    %249 = vmatmul.mubr.bf16.gmra.mxu0 %v144
    %v250 = vpop.f32.mrf.mxu0
    %v251 = vadd.f32 %v116, %v250
    %v252 = vpop.f32.mrf.mxu0
    %v253 = vpop.f32.mrf.mxu0
    %v254 = vadd.f32 %v116, %v253
    %v255 = vpop.f32.mrf.mxu0
    %256 = vmatprep.mubr.bf16.mxu0 0
    %257 = vmatmul.mubr.bf16.gmra.mxu0 %v147
    %v258 = vpop.f32.mrf.mxu0
    %v259 = vadd.f32 %v116, %v258
    %v260 = vpop.f32.mrf.mxu0
    %v261 = vpop.f32.mrf.mxu0
    %v262 = vadd.f32 %v116, %v261
    %v263 = vpop.f32.mrf.mxu0
    %264 = vmatprep.mubr.bf16.mxu0 0
    %265 = vmatmul.mubr.bf16.gmra.mxu0 %v150
    %v266 = vpop.f32.mrf.mxu0
    %v267 = vadd.f32 %v116, %v266
    %v268 = vpop.f32.mrf.mxu0
    %v269 = vpop.f32.mrf.mxu0
    %v270 = vpop.f32.mrf.mxu0
    %271 = vdwg.mxu0
    %v272 = vld [vmem:[%s3] sm:$0x1]
    %v273 = vld [vmem:[%s4] sm:$0x1]
    %v274 = vmul.f32 %v187, %v187
    %v275 = vmul.f32 %v190, %v190
    %v276 = vmul.f32 %v195, %v195
    %v277 = vmul.f32 %v198, %v198
    %v278 = vmul.f32 %v203, %v203
    %v279 = vmul.f32 %v206, %v206
    %v280 = vmul.f32 %v211, %v211
    %v281 = vmul.f32 %v214, %v214
    %v282 = vmul.f32 %v219, %v219
    %v283 = vmul.f32 %v222, %v222
    %v284 = vmul.f32 %v227, %v227
    %v285 = vmul.f32 %v230, %v230
    %v286 = vmul.f32 %v235, %v235
    %v287 = vmul.f32 %v238, %v238
    %v288 = vmul.f32 %v243, %v243
    %v289 = vmul.f32 %v246, %v246
    %v290 = vmul.f32 %v251, %v251
    %v291 = vmul.f32 %v254, %v254
    %v292 = vmul.f32 %v259, %v259
    %v293 = vmul.f32 %v262, %v262
    %v294 = vmul.f32 %v267, %v267
    %316 = vrot.lane.b32.xlu0 %v274, 18
    %v317 = vpop.permute.xlu0 %316
    %318 = vrot.lane.b32.xlu0 %v275, 18
    %v319 = vpop.permute.xlu0 %318
    %320 = vrot.lane.b32.xlu0 %v276, 18
    %v321 = vpop.permute.xlu0 %320
    %322 = vrot.lane.b32.xlu0 %v277, 18
    %v323 = vpop.permute.xlu0 %322
    %324 = vrot.lane.b32.xlu0 %v278, 18
    %v325 = vpop.permute.xlu0 %324
    %326 = vrot.lane.b32.xlu0 %v279, 18
    %v327 = vpop.permute.xlu0 %326
    %328 = vrot.lane.b32.xlu0 %v280, 18
    %v329 = vpop.permute.xlu0 %328
    %330 = vrot.lane.b32.xlu0 %v281, 18
    %v331 = vpop.permute.xlu0 %330
    %332 = vrot.lane.b32.xlu0 %v282, 18
    %v333 = vpop.permute.xlu0 %332
    %334 = vrot.lane.b32.xlu0 %v283, 18
    %v335 = vpop.permute.xlu0 %334
    %336 = vrot.lane.b32.xlu0 %v284, 18
    %v337 = vpop.permute.xlu0 %336
    %338 = vrot.lane.b32.xlu0 %v285, 18
    %v339 = vpop.permute.xlu0 %338
    %340 = vrot.lane.b32.xlu0 %v286, 18
    %v341 = vpop.permute.xlu0 %340
    %342 = vrot.lane.b32.xlu0 %v287, 18
    %v343 = vpop.permute.xlu0 %342
    %344 = vrot.lane.b32.xlu0 %v288, 18
    %v345 = vpop.permute.xlu0 %344
    %346 = vrot.lane.b32.xlu0 %v289, 18
    %v347 = vpop.permute.xlu0 %346
    %348 = vrot.lane.b32.xlu0 %v290, 18
    %v349 = vpop.permute.xlu0 %348
    %350 = vrot.lane.b32.xlu0 %v291, 18
    %v351 = vpop.permute.xlu0 %350
    %352 = vrot.lane.b32.xlu0 %v292, 18
    %v353 = vpop.permute.xlu0 %352
    %354 = vrot.lane.b32.xlu0 %v293, 18
    %v355 = vpop.permute.xlu0 %354
    %356 = vrot.lane.b32.xlu0 %v294, 18
    %v357 = vpop.permute.xlu0 %356
    %vm379 = vcmask 146432
    %v380 = vsel %vm379, %v187, %v317
    %v381 = vsel %vm379, %v190, %v319
    %v382 = vsel %vm379, %v195, %v321
    %v383 = vsel %vm379, %v198, %v323
    %v384 = vsel %vm379, %v203, %v325
    %v385 = vsel %vm379, %v206, %v327
    %v386 = vsel %vm379, %v211, %v329
    %v387 = vsel %vm379, %v214, %v331
    %v388 = vsel %vm379, %v219, %v333
    %v389 = vsel %vm379, %v222, %v335
    %v390 = vsel %vm379, %v227, %v337
    %v391 = vsel %vm379, %v230, %v339
    %v392 = vsel %vm379, %v235, %v341
    %v393 = vsel %vm379, %v238, %v343
    %v394 = vsel %vm379, %v243, %v345
    %v395 = vsel %vm379, %v246, %v347
    %v396 = vsel %vm379, %v251, %v349
    %v397 = vsel %vm379, %v254, %v351
    %v398 = vsel %vm379, %v259, %v353
    %v399 = vsel %vm379, %v262, %v355
    %v400 = vsel %vm379, %v267, %v357
    %vm401 = vcmask 293888
    %v402 = vsel %vm401, %v380, 0.0
    %v403 = vsel %vm401, %v381, 0.0
    %v404 = vadd.f32 %v402, %v403
    %v405 = vsel %vm401, %v382, 0.0
    %v406 = vadd.f32 %v404, %v405
    %v407 = vsel %vm401, %v383, 0.0
    %v408 = vadd.f32 %v406, %v407
    %v409 = vsel %vm401, %v384, 0.0
    %v410 = vadd.f32 %v408, %v409
    %v411 = vsel %vm401, %v385, 0.0
    %v412 = vadd.f32 %v410, %v411
    %v413 = vsel %vm401, %v386, 0.0
    %v414 = vadd.f32 %v412, %v413
    %v415 = vsel %vm401, %v387, 0.0
    %v416 = vadd.f32 %v414, %v415
    %v417 = vsel %vm401, %v388, 0.0
    %v418 = vadd.f32 %v416, %v417
    %v419 = vsel %vm401, %v389, 0.0
    %v420 = vadd.f32 %v418, %v419
    %v421 = vsel %vm401, %v390, 0.0
    %v422 = vadd.f32 %v420, %v421
    %v423 = vsel %vm401, %v391, 0.0
    %v424 = vadd.f32 %v422, %v423
    %v425 = vsel %vm401, %v392, 0.0
    %v426 = vadd.f32 %v424, %v425
    %v427 = vsel %vm401, %v393, 0.0
    %v428 = vadd.f32 %v426, %v427
    %v429 = vsel %vm401, %v394, 0.0
    %v430 = vadd.f32 %v428, %v429
    %v431 = vsel %vm401, %v395, 0.0
    %v432 = vadd.f32 %v430, %v431
    %v433 = vsel %vm401, %v396, 0.0
    %v434 = vadd.f32 %v432, %v433
    %v435 = vsel %vm401, %v397, 0.0
    %v436 = vadd.f32 %v434, %v435
    %v437 = vsel %vm401, %v398, 0.0
    %v438 = vadd.f32 %v436, %v437
    %v439 = vsel %vm401, %v399, 0.0
    %v440 = vadd.f32 %v438, %v439
    %vm441 = vcmask 287744
    %v442 = vsel %vm441, %v400, 0.0
    %v443 = vadd.f32 %v440, %v442
    %v444 = vrot.slane %v443, 4
    %v445 = vadd.f32 %v443, %v444
    %v446 = vrot.slane %v445, 2
    %v447 = vadd.f32 %v445, %v446
    %v448 = vrot.slane %v447, 1
    %v449 = vadd.f32 %v447, %v448
    %v450 = vmul.f32 %v449, 0.0061728396
    %v451 = vmul.f32 %v450, %v450
    %453 = vrot.lane.b32.xlu0 %v451, 18
    %v454 = vpop.permute.xlu0 %453
    %v456 = vsub.f32 %v450, %v454
    %v457 = vadd.f32 %v456, 1e-05
    %v458 = vrsqrt.pop %v457
    %v461 = vunpack.c.l.s4 1966171168
    %v462 = vunpack.c.0.s8 %v461
    %v463 = vlaneseq
    %v464 = vshrl.u32 %v463, 7
    %v465 = vsub.s32 %v462, %v464
    %v466 = vrot.slane %v458, %v465
    %v468 = vunpack.c.l.s4 1966171168
    %v469 = vunpack.c.0.s8 %v468
    %v470 = vlaneseq
    %v471 = vshrl.u32 %v470, 7
    %v472 = vsub.s32 %v469, %v471
    %v473 = vrot.slane %v466, %v472
    %474 = vrot.lane.b32.xlu0 %v473, 110
    %v475 = vpop.permute.xlu0 %474
    %v477 = vmul.f32 %v272, %v475
    %v478 = vmul.f32 %v450, %v477
    %v479 = vsub.f32 %v273, %v478
    %v481 = vlaneseq
    %v482 = vshrl.u32 %v481, 7
    %v483 = vsub.s32 0, %v482
    %v484 = vrot.slane %v477, %v483
    %v486 = vmul.f32 %v187, %v484
    %v487 = vmul.f32 %v190, %v484
    %v488 = vmul.f32 %v195, %v484
    %v489 = vmul.f32 %v198, %v484
    %v490 = vmul.f32 %v203, %v484
    %v491 = vmul.f32 %v206, %v484
    %v492 = vmul.f32 %v211, %v484
    %v493 = vmul.f32 %v214, %v484
    %v494 = vmul.f32 %v219, %v484
    %v495 = vmul.f32 %v222, %v484
    %v496 = vmul.f32 %v227, %v484
    %v497 = vmul.f32 %v230, %v484
    %v498 = vmul.f32 %v235, %v484
    %v499 = vmul.f32 %v238, %v484
    %v500 = vmul.f32 %v243, %v484
    %v501 = vmul.f32 %v246, %v484
    %v502 = vmul.f32 %v251, %v484
    %v503 = vmul.f32 %v254, %v484
    %v504 = vmul.f32 %v259, %v484
    %v505 = vmul.f32 %v262, %v484
    %v506 = vmul.f32 %v267, %v484
    %v508 = vlaneseq
    %v509 = vshrl.u32 %v508, 7
    %v510 = vsub.s32 0, %v509
    %v511 = vrot.slane %v479, %v510
    %v513 = vadd.f32 %v486, %v511
    %v514 = vadd.f32 %v487, %v511
    %v515 = vadd.f32 %v488, %v511
    %v516 = vadd.f32 %v489, %v511
    %v517 = vadd.f32 %v490, %v511
    %v518 = vadd.f32 %v491, %v511
    %v519 = vadd.f32 %v492, %v511
    %v520 = vadd.f32 %v493, %v511
    %v521 = vadd.f32 %v494, %v511
    %v522 = vadd.f32 %v495, %v511
    %v523 = vadd.f32 %v496, %v511
    %v524 = vadd.f32 %v497, %v511
    %v525 = vadd.f32 %v498, %v511
    %v526 = vadd.f32 %v499, %v511
    %v527 = vadd.f32 %v500, %v511
    %v528 = vadd.f32 %v501, %v511
    %v529 = vadd.f32 %v502, %v511
    %v530 = vadd.f32 %v503, %v511
    %v531 = vadd.f32 %v504, %v511
    %v532 = vadd.f32 %v505, %v511
    %v533 = vadd.f32 %v506, %v511
    %vm534 = vcmp.ge.f32.partialorder %v513, 0.0
    %vm535 = vcmp.ge.f32.partialorder %v514, 0.0
    %vm536 = vcmp.ge.f32.partialorder %v515, 0.0
    %vm537 = vcmp.ge.f32.partialorder %v516, 0.0
    %vm538 = vcmp.ge.f32.partialorder %v517, 0.0
    %vm539 = vcmp.ge.f32.partialorder %v518, 0.0
    %vm540 = vcmp.ge.f32.partialorder %v519, 0.0
    %vm541 = vcmp.ge.f32.partialorder %v520, 0.0
    %vm542 = vcmp.ge.f32.partialorder %v521, 0.0
    %vm543 = vcmp.ge.f32.partialorder %v522, 0.0
    %vm544 = vcmp.ge.f32.partialorder %v523, 0.0
    %vm545 = vcmp.ge.f32.partialorder %v524, 0.0
    %vm546 = vcmp.ge.f32.partialorder %v525, 0.0
    %vm547 = vcmp.ge.f32.partialorder %v526, 0.0
    %vm548 = vcmp.ge.f32.partialorder %v527, 0.0
    %vm549 = vcmp.ge.f32.partialorder %v528, 0.0
    %vm550 = vcmp.ge.f32.partialorder %v529, 0.0
    %vm551 = vcmp.ge.f32.partialorder %v530, 0.0
    %vm552 = vcmp.ge.f32.partialorder %v531, 0.0
    %vm553 = vcmp.ge.f32.partialorder %v532, 0.0
    %vm554 = vcmp.ge.f32.partialorder %v533, 0.0
    %v555 = vmul.f32 %v513, 0.1
    %v556 = vmul.f32 %v514, 0.1
    %v557 = vmul.f32 %v515, 0.1
    %v558 = vmul.f32 %v516, 0.1
    %v559 = vmul.f32 %v517, 0.1
    %v560 = vmul.f32 %v518, 0.1
    %v561 = vmul.f32 %v519, 0.1
    %v562 = vmul.f32 %v520, 0.1
    %v563 = vmul.f32 %v521, 0.1
    %v564 = vmul.f32 %v522, 0.1
    %v565 = vmul.f32 %v523, 0.1
    %v566 = vmul.f32 %v524, 0.1
    %v567 = vmul.f32 %v525, 0.1
    %v568 = vmul.f32 %v526, 0.1
    %v569 = vmul.f32 %v527, 0.1
    %v570 = vmul.f32 %v528, 0.1
    %v571 = vmul.f32 %v529, 0.1
    %v572 = vmul.f32 %v530, 0.1
    %v573 = vmul.f32 %v531, 0.1
    %v574 = vmul.f32 %v532, 0.1
    %v575 = vmul.f32 %v533, 0.1
    %v576 = vsel %vm534, %v513, %v555
    %v577 = vsel %vm535, %v514, %v556
    %v578 = vsel %vm536, %v515, %v557
    %v579 = vsel %vm537, %v516, %v558
    %v580 = vsel %vm538, %v517, %v559
    %v581 = vsel %vm539, %v518, %v560
    %v582 = vsel %vm540, %v519, %v561
    %v583 = vsel %vm541, %v520, %v562
    %v584 = vsel %vm542, %v521, %v563
    %v585 = vsel %vm543, %v522, %v564
    %v586 = vsel %vm544, %v523, %v565
    %v587 = vsel %vm545, %v524, %v566
    %v588 = vsel %vm546, %v525, %v567
    %v589 = vsel %vm547, %v526, %v568
    %v590 = vsel %vm548, %v527, %v569
    %v591 = vsel %vm549, %v528, %v570
    %v592 = vsel %vm550, %v529, %v571
    %v593 = vsel %vm551, %v530, %v572
    %v594 = vsel %vm552, %v531, %v573
    %v595 = vsel %vm553, %v532, %v574
    %v596 = vsel %vm554, %v533, %v575
    %v597 = vld [vmem:[%s14] sm:$0xf]
    %v598 = vld [vmem:[%s15] sm:$0xff]
    %v599 = vld [vmem:[%s15 + $0x8] sm:$0xff]
    %v600 = vld [vmem:[%s15 + $0x10] sm:$0xff]
    %v601 = vld [vmem:[%s15 + $0x18] sm:$0xff]
    %v602 = vld [vmem:[%s15 + $0x20] sm:$0xff]
    %v603 = vld [vmem:[%s15 + $0x28] sm:$0xff]
    %v604 = vld [vmem:[%s15 + $0x30] sm:$0xff]
    %v605 = vld [vmem:[%s15 + $0x38] sm:$0xff]
    %v606 = vld [vmem:[%s15 + $0x40] sm:$0xff]
    %v607 = vld [vmem:[%s15 + $0x48] sm:$0xff]
    %v608 = vld [vmem:[%s15 + $0x50] sm:$0xff]
    %v609 = vld [vmem:[%s15 + $0x58] sm:$0xff]
    %v610 = vld [vmem:[%s15 + $0x60] sm:$0xff]
    %v611 = vld [vmem:[%s15 + $0x68] sm:$0xff]
    %v612 = vld [vmem:[%s15 + $0x70] sm:$0xff]
    %v613 = vld [vmem:[%s15 + $0x78] sm:$0xff]
    %v614 = vld [vmem:[%s15 + $0x80] sm:$0xff]
    %v615 = vld [vmem:[%s15 + $0x88] sm:$0xff]
    %v616 = vld [vmem:[%s15 + $0x90] sm:$0xff]
    %v617 = vld [vmem:[%s15 + $0x98] sm:$0xff]
    %v618 = vld [vmem:[%s15 + $0xa0] sm:$0x3]
    %v621 = vunpack.c.l.s4 1983009808
    %v622 = vunpack.c.0.s8 %v621
    %v623 = vlaneseq
    %v624 = vshrl.u32 %v623, 7
    %v625 = vsub.s32 %v622, %v624
    %v626 = vrot.slane %v597, %v625
    %v627 = vcombine.high %v626, %v626
    %vm629 = vcmask 277504
    %v630 = vsel %vm629, %v627, 0
    %vm632 = vcmask 1041408
    %v634 = vsel %vm632, %v596, 0
    %636 = vmatprep.subr.mxu0 0.0
    %637 = vmatpush1.msra.mxu0 %v591
    %638 = vmatprep.subr.mxu0 0.0
    %639 = vmatpush1.msra.mxu0 %v590
    %640 = vmatprep.subr.mxu0 0.0
    %641 = vmatpush1.msra.mxu0 %v589
    %642 = vmatprep.subr.mxu0 0.0
    %643 = vmatpush1.msra.mxu0 %v588
    %644 = vmatprep.subr.mxu0 0.0
    %645 = vmatpush1.msra.mxu0 %v587
    %646 = vmatprep.subr.mxu0 0.0
    %647 = vmatpush1.msra.mxu0 %v586
    %648 = vmatprep.subr.mxu0 0.0
    %649 = vmatpush1.msra.mxu0 %v585
    %650 = vmatprep.subr.mxu0 0.0
    %651 = vmatpush1.msra.mxu0 %v584
    %652 = vmatprep.subr.mxu0 0.0
    %653 = vmatpush1.msra.mxu0 %v583
    %654 = vmatprep.subr.mxu0 0.0
    %655 = vmatpush1.msra.mxu0 %v582
    %656 = vmatprep.subr.mxu0 0.0
    %657 = vmatpush1.msra.mxu0 %v581
    %658 = vmatprep.subr.mxu0 0.0
    %659 = vmatpush1.msra.mxu0 %v580
    %660 = vmatprep.subr.mxu0 0.0
    %661 = vmatpush1.msra.mxu0 %v579
    %662 = vmatprep.subr.mxu0 0.0
    %663 = vmatpush1.msra.mxu0 %v578
    %664 = vmatprep.subr.mxu0 0.0
    %665 = vmatpush1.msra.mxu0 %v577
    %666 = vmatprep.subr.mxu0 0.0
    %667 = vmatpush1.msra.mxu0 %v576
    %668 = vmatprep.subr.mxu0 0.0
    %669 = vmatpush2.msra.mxu0 0.0
    %670 = vmatprep.subr.mxu0 0.0
    %671 = vmatpush2.msra.mxu0 0.0
    %672 = vmatprep.subr.mxu0 0.0
    %673 = vmatpush2.msra.mxu0 0.0
    %674 = vmatprep.subr.mxu0 0.0
    %675 = vmatpush2.msra.mxu0 0.0
    %676 = vmatprep.subr.mxu0 0.0
    %677 = vmatpush2.msra.mxu0 0.0
    %678 = vmatprep.subr.mxu0 0.0
    %679 = vmatpush2.msra.mxu0 0.0
    %680 = vmatprep.subr.mxu0 0.0
    %681 = vmatpush2.msra.mxu0 0.0
    %682 = vmatprep.subr.mxu0 0.0
    %683 = vmatpush2.msra.mxu0 0.0
    %684 = vmatprep.subr.mxu0 0.0
    %685 = vmatpush2.msra.mxu0 0.0
    %686 = vmatprep.subr.mxu0 0.0
    %687 = vmatpush2.msra.mxu0 0.0
    %688 = vmatprep.subr.mxu0 0.0
    %689 = vmatpush2.msra.mxu0 0.0
    %690 = vmatprep.subr.mxu0 0.0
    %691 = vmatpush2.msra.mxu0 %v634
    %692 = vmatprep.subr.mxu0 0.0
    %693 = vmatpush2.msra.mxu0 %v595
    %694 = vmatprep.subr.mxu0 0.0
    %695 = vmatpush2.msra.mxu0 %v594
    %696 = vmatprep.subr.mxu0 0.0
    %697 = vmatpush2.msra.mxu0 %v593
    %698 = vmatprep.subr.mxu0 0.0
    %699 = vmatpush2.msra.mxu0 %v592
    %700 = vmatprep.mubr.f32.mxu0 %v630
    %701 = vmatmul.mubr.f32.gmra.mxu0 %v626
    %v702 = vpop.f32.mrf.mxu0
    %v703 = vadd.f32 0.0, %v702
    %v704 = vpop.f32.mrf.mxu0
    %705 = vdwg.mxu0
    %v706 = vld [vmem:[%s5] sm:$0x1]
    %v707 = vld [vmem:[%s6] sm:$0x1]
    %v709 = vlaneseq
    %v710 = vshrl.u32 %v709, 7
    %v711 = vsub.s32 0, %v710
    %v712 = vrot.slane %v706, %v711
    %v714 = vmul.f32 %v703, %v712
    %vm715 = vcmask 140288
    %v716 = vsel %vm715, %v714, 0.0
    %717 = vadd.xlane.f32.xlu0 %v716
    %v718 = vpop.xlane.xlu0 %717
    %v719 = vmax.f32 %v718, 0.0
    %v721 = vlaneseq
    %v722 = vshrl.u32 %v721, 7
    %v723 = vsub.s32 0, %v722
    %v724 = vrot.slane %v707, %v723
    %v726 = vmul.f32 %v719, %v724
    %v727 = vadd.f32 %v726, 0.0
    %v728 = vsub.f32 0.0, %v727
    %v729 = vmul.f32 %v728, 1.442695
    %v730 = vpow.pop %v729
    %v731 = vadd.f32 %v730, 1.0
    %v732 = vrcp.pop %v731
    %vm733 = vcmask 15360
    %v735 = vsel %vm733, %v598, 0
    %v738 = vsel %vm733, %v599, 0
    %v741 = vsel %vm733, %v600, 0
    %v744 = vsel %vm733, %v601, 0
    %v747 = vsel %vm733, %v602, 0
    %v750 = vsel %vm733, %v603, 0
    %v753 = vsel %vm733, %v604, 0
    %v756 = vsel %vm733, %v605, 0
    %v759 = vsel %vm733, %v606, 0
    %v762 = vsel %vm733, %v607, 0
    %v765 = vsel %vm733, %v608, 0
    %v768 = vsel %vm733, %v609, 0
    %v771 = vsel %vm733, %v610, 0
    %v774 = vsel %vm733, %v611, 0
    %v777 = vsel %vm733, %v612, 0
    %v780 = vsel %vm733, %v613, 0
    %v783 = vsel %vm733, %v614, 0
    %v786 = vsel %vm733, %v615, 0
    %v789 = vsel %vm733, %v616, 0
    %v792 = vsel %vm733, %v617, 0
    %v795 = vsel %vm733, %v618, 0
    %v798 = vsel %vm632, %v732, 0
    %800 = vmatprep.subr.mxu0 0.0
    %801 = vmatpush1.msra.mxu0 0.0
    %802 = vmatprep.subr.mxu0 0.0
    %803 = vmatpush1.msra.mxu0 0.0
    %804 = vmatprep.subr.mxu0 0.0
    %805 = vmatpush1.msra.mxu0 0.0
    %806 = vmatprep.subr.mxu0 0.0
    %807 = vmatpush1.msra.mxu0 0.0
    %808 = vmatprep.subr.mxu0 0.0
    %809 = vmatpush1.msra.mxu0 0.0
    %810 = vmatprep.subr.mxu0 0.0
    %811 = vmatpush1.msra.mxu0 0.0
    %812 = vmatprep.subr.mxu0 0.0
    %813 = vmatpush1.msra.mxu0 0.0
    %814 = vmatprep.subr.mxu0 0.0
    %815 = vmatpush1.msra.mxu0 0.0
    %816 = vmatprep.subr.mxu0 0.0
    %817 = vmatpush1.msra.mxu0 0.0
    %818 = vmatprep.subr.mxu0 0.0
    %819 = vmatpush1.msra.mxu0 0.0
    %820 = vmatprep.subr.mxu0 0.0
    %821 = vmatpush1.msra.mxu0 0.0
    %822 = vmatprep.subr.mxu0 0.0
    %823 = vmatpush1.msra.mxu0 0.0
    %824 = vmatprep.subr.mxu0 0.0
    %825 = vmatpush1.msra.mxu0 0.0
    %826 = vmatprep.subr.mxu0 0.0
    %827 = vmatpush1.msra.mxu0 0.0
    %828 = vmatprep.subr.mxu0 0.0
    %829 = vmatpush1.msra.mxu0 0.0
    %830 = vmatprep.subr.mxu0 0.0
    %831 = vmatpush1.msra.mxu0 %v798
    %832 = vmatprep.subr.mxu0 0.0
    %833 = vmatpush2.msra.mxu0 0.0
    %834 = vmatprep.subr.mxu0 0.0
    %835 = vmatpush2.msra.mxu0 0.0
    %836 = vmatprep.subr.mxu0 0.0
    %837 = vmatpush2.msra.mxu0 0.0
    %838 = vmatprep.subr.mxu0 0.0
    %839 = vmatpush2.msra.mxu0 0.0
    %840 = vmatprep.subr.mxu0 0.0
    %841 = vmatpush2.msra.mxu0 0.0
    %842 = vmatprep.subr.mxu0 0.0
    %843 = vmatpush2.msra.mxu0 0.0
    %844 = vmatprep.subr.mxu0 0.0
    %845 = vmatpush2.msra.mxu0 0.0
    %846 = vmatprep.subr.mxu0 0.0
    %847 = vmatpush2.msra.mxu0 0.0
    %848 = vmatprep.subr.mxu0 0.0
    %849 = vmatpush2.msra.mxu0 0.0
    %850 = vmatprep.subr.mxu0 0.0
    %851 = vmatpush2.msra.mxu0 0.0
    %852 = vmatprep.subr.mxu0 0.0
    %853 = vmatpush2.msra.mxu0 0.0
    %854 = vmatprep.subr.mxu0 0.0
    %855 = vmatpush2.msra.mxu0 0.0
    %856 = vmatprep.subr.mxu0 0.0
    %857 = vmatpush2.msra.mxu0 0.0
    %858 = vmatprep.subr.mxu0 0.0
    %859 = vmatpush2.msra.mxu0 0.0
    %860 = vmatprep.subr.mxu0 0.0
    %861 = vmatpush2.msra.mxu0 0.0
    %862 = vmatprep.subr.mxu0 0.0
    %863 = vmatpush2.msra.mxu0 0.0
    %864 = vmatprep.mubr.f32.mxu0 0.0
    %865 = vmatmul.mubr.f32.gmra.mxu0 %v735
    %v866 = vpop.f32.mrf.mxu0
    %v867 = vadd.f32 0.0, %v866
    %v868 = vpop.f32.mrf.mxu0
    %869 = vmatprep.mubr.f32.mxu0 0.0
    %870 = vmatmul.mubr.f32.gmra.mxu0 %v738
    %v871 = vpop.f32.mrf.mxu0
    %v872 = vadd.f32 0.0, %v871
    %v873 = vpop.f32.mrf.mxu0
    %874 = vmatprep.mubr.f32.mxu0 0.0
    %875 = vmatmul.mubr.f32.gmra.mxu0 %v741
    %v876 = vpop.f32.mrf.mxu0
    %v877 = vadd.f32 0.0, %v876
    %v878 = vpop.f32.mrf.mxu0
    %879 = vmatprep.mubr.f32.mxu0 0.0
    %880 = vmatmul.mubr.f32.gmra.mxu0 %v744
    %v881 = vpop.f32.mrf.mxu0
    %v882 = vadd.f32 0.0, %v881
    %v883 = vpop.f32.mrf.mxu0
    %884 = vmatprep.mubr.f32.mxu0 0.0
    %885 = vmatmul.mubr.f32.gmra.mxu0 %v747
    %v886 = vpop.f32.mrf.mxu0
    %v887 = vadd.f32 0.0, %v886
    %v888 = vpop.f32.mrf.mxu0
    %889 = vmatprep.mubr.f32.mxu0 0.0
    %890 = vmatmul.mubr.f32.gmra.mxu0 %v750
    %v891 = vpop.f32.mrf.mxu0
    %v892 = vadd.f32 0.0, %v891
    %v893 = vpop.f32.mrf.mxu0
    %894 = vmatprep.mubr.f32.mxu0 0.0
    %895 = vmatmul.mubr.f32.gmra.mxu0 %v753
    %v896 = vpop.f32.mrf.mxu0
    %v897 = vadd.f32 0.0, %v896
    %v898 = vpop.f32.mrf.mxu0
    %899 = vmatprep.mubr.f32.mxu0 0.0
    %900 = vmatmul.mubr.f32.gmra.mxu0 %v756
    %v901 = vpop.f32.mrf.mxu0
    %v902 = vadd.f32 0.0, %v901
    %v903 = vpop.f32.mrf.mxu0
    %904 = vmatprep.mubr.f32.mxu0 0.0
    %905 = vmatmul.mubr.f32.gmra.mxu0 %v759
    %v906 = vpop.f32.mrf.mxu0
    %v907 = vadd.f32 0.0, %v906
    %v908 = vpop.f32.mrf.mxu0
    %909 = vmatprep.mubr.f32.mxu0 0.0
    %910 = vmatmul.mubr.f32.gmra.mxu0 %v762
    %v911 = vpop.f32.mrf.mxu0
    %v912 = vadd.f32 0.0, %v911
    %v913 = vpop.f32.mrf.mxu0
    %914 = vmatprep.mubr.f32.mxu0 0.0
    %915 = vmatmul.mubr.f32.gmra.mxu0 %v765
    %v916 = vpop.f32.mrf.mxu0
    %v917 = vadd.f32 0.0, %v916
    %v918 = vpop.f32.mrf.mxu0
    %919 = vmatprep.mubr.f32.mxu0 0.0
    %920 = vmatmul.mubr.f32.gmra.mxu0 %v768
    %v921 = vpop.f32.mrf.mxu0
    %v922 = vadd.f32 0.0, %v921
    %v923 = vpop.f32.mrf.mxu0
    %924 = vmatprep.mubr.f32.mxu0 0.0
    %925 = vmatmul.mubr.f32.gmra.mxu0 %v771
    %v926 = vpop.f32.mrf.mxu0
    %v927 = vadd.f32 0.0, %v926
    %v928 = vpop.f32.mrf.mxu0
    %929 = vmatprep.mubr.f32.mxu0 0.0
    %930 = vmatmul.mubr.f32.gmra.mxu0 %v774
    %v931 = vpop.f32.mrf.mxu0
    %v932 = vadd.f32 0.0, %v931
    %v933 = vpop.f32.mrf.mxu0
    %934 = vmatprep.mubr.f32.mxu0 0.0
    %935 = vmatmul.mubr.f32.gmra.mxu0 %v777
    %v936 = vpop.f32.mrf.mxu0
    %v937 = vadd.f32 0.0, %v936
    %v938 = vpop.f32.mrf.mxu0
    %939 = vmatprep.mubr.f32.mxu0 0.0
    %940 = vmatmul.mubr.f32.gmra.mxu0 %v780
    %v941 = vpop.f32.mrf.mxu0
    %v942 = vadd.f32 0.0, %v941
    %v943 = vpop.f32.mrf.mxu0
    %944 = vmatprep.mubr.f32.mxu0 0.0
    %945 = vmatmul.mubr.f32.gmra.mxu0 %v783
    %v946 = vpop.f32.mrf.mxu0
    %v947 = vadd.f32 0.0, %v946
    %v948 = vpop.f32.mrf.mxu0
    %949 = vmatprep.mubr.f32.mxu0 0.0
    %950 = vmatmul.mubr.f32.gmra.mxu0 %v786
    %v951 = vpop.f32.mrf.mxu0
    %v952 = vadd.f32 0.0, %v951
    %v953 = vpop.f32.mrf.mxu0
    %954 = vmatprep.mubr.f32.mxu0 0.0
    %955 = vmatmul.mubr.f32.gmra.mxu0 %v789
    %v956 = vpop.f32.mrf.mxu0
    %v957 = vadd.f32 0.0, %v956
    %v958 = vpop.f32.mrf.mxu0
    %959 = vmatprep.mubr.f32.mxu0 0.0
    %960 = vmatmul.mubr.f32.gmra.mxu0 %v792
    %v961 = vpop.f32.mrf.mxu0
    %v962 = vadd.f32 0.0, %v961
    %v963 = vpop.f32.mrf.mxu0
    %964 = vmatprep.mubr.f32.mxu0 0.0
    %965 = vmatmul.mubr.f32.gmra.mxu0 %v795
    %v966 = vpop.f32.mrf.mxu0
    %v967 = vadd.f32 0.0, %v966
    %v968 = vpop.f32.mrf.mxu0
    %969 = vdwg.mxu0
    %v970 = vmul.f32 %v576, %v867
    %v971 = vmul.f32 %v577, %v872
    %v972 = vmul.f32 %v578, %v877
    %v973 = vmul.f32 %v579, %v882
    %v974 = vmul.f32 %v580, %v887
    %v975 = vmul.f32 %v581, %v892
    %v976 = vmul.f32 %v582, %v897
    %v977 = vmul.f32 %v583, %v902
    %v978 = vmul.f32 %v584, %v907
    %v979 = vmul.f32 %v585, %v912
    %v980 = vmul.f32 %v586, %v917
    %v981 = vmul.f32 %v587, %v922
    %v982 = vmul.f32 %v588, %v927
    %v983 = vmul.f32 %v589, %v932
    %v984 = vmul.f32 %v590, %v937
    %v985 = vmul.f32 %v591, %v942
    %v986 = vmul.f32 %v592, %v947
    %v987 = vmul.f32 %v593, %v952
    %v988 = vmul.f32 %v594, %v957
    %v989 = vmul.f32 %v595, %v962
    %v990 = vmul.f32 %v596, %v967
    %991 = vst.msk [vmem:[#allocation2] sm:$0xff] %vm379, 0.0
    %992 = vst.msk [vmem:[#allocation2 + $0x8] sm:$0xff] %vm379, 0.0
    %993 = vst.msk [vmem:[#allocation2 + $0x10] sm:$0xff] %vm379, %v970
    %994 = vst.msk [vmem:[#allocation2 + $0x18] sm:$0xff] %vm379, %v971
    %995 = vst.msk [vmem:[#allocation2 + $0x20] sm:$0xff] %vm379, %v972
    %996 = vst.msk [vmem:[#allocation2 + $0x28] sm:$0xff] %vm379, %v973
    %997 = vst.msk [vmem:[#allocation2 + $0x30] sm:$0xff] %vm379, %v974
    %998 = vst.msk [vmem:[#allocation2 + $0x38] sm:$0xff] %vm379, %v975
    %999 = vst.msk [vmem:[#allocation2 + $0x40] sm:$0xff] %vm379, %v976
    %1000 = vst.msk [vmem:[#allocation2 + $0x48] sm:$0xff] %vm379, %v977
    %1001 = vst.msk [vmem:[#allocation2 + $0x50] sm:$0xff] %vm379, %v978
    %1002 = vst.msk [vmem:[#allocation2 + $0x58] sm:$0xff] %vm379, %v979
    %1003 = vst.msk [vmem:[#allocation2 + $0x60] sm:$0xff] %vm379, %v980
    %1004 = vst.msk [vmem:[#allocation2 + $0x68] sm:$0xff] %vm379, %v981
    %1005 = vst.msk [vmem:[#allocation2 + $0x70] sm:$0xff] %vm379, %v982
    %1006 = vst.msk [vmem:[#allocation2 + $0x78] sm:$0xff] %vm379, %v983
    %1007 = vst.msk [vmem:[#allocation2 + $0x80] sm:$0xff] %vm379, %v984
    %1008 = vst.msk [vmem:[#allocation2 + $0x88] sm:$0xff] %vm379, %v985
    %1009 = vst.msk [vmem:[#allocation2 + $0x90] sm:$0xff] %vm379, %v986
    %1010 = vst.msk [vmem:[#allocation2 + $0x98] sm:$0xff] %vm379, %v987
    %1011 = vst.msk [vmem:[#allocation2 + $0xa0] sm:$0xff] %vm379, %v988
    %1012 = vst.msk [vmem:[#allocation2 + $0xa8] sm:$0xff] %vm379, %v989
    %1013 = vst.msk [vmem:[#allocation2 + $0xb0] sm:$0x3] %vm715, %v990
    %1014 = vst.msk [vmem:[#allocation2 + $0xb2] sm:$0xff] %vm379, 0.0
    %1015 = vst.msk [vmem:[#allocation2 + $0xba] sm:$0xff] %vm379, 0.0
    %v1016 = vld [vmem:[#allocation2 + $0x6] sm:$0xff]
    %v1017 = vld [vmem:[#allocation2 + $0xe] sm:$0xff]
    %v1018 = vld [vmem:[#allocation2 + $0x16] sm:$0xff]
    %v1019 = vld [vmem:[#allocation2 + $0x1e] sm:$0xff]
    %v1020 = vld [vmem:[#allocation2 + $0x26] sm:$0xff]
    %v1021 = vld [vmem:[#allocation2 + $0x2e] sm:$0xff]
    %v1022 = vld [vmem:[#allocation2 + $0x36] sm:$0xff]
    %v1023 = vld [vmem:[#allocation2 + $0x3e] sm:$0xff]
    %v1024 = vld [vmem:[#allocation2 + $0x46] sm:$0xff]
    %v1025 = vld [vmem:[#allocation2 + $0x4e] sm:$0xff]
    %v1026 = vld [vmem:[#allocation2 + $0x56] sm:$0xff]
    %v1027 = vld [vmem:[#allocation2 + $0x5e] sm:$0xff]
    %v1028 = vld [vmem:[#allocation2 + $0x66] sm:$0xff]
    %v1029 = vld [vmem:[#allocation2 + $0x6e] sm:$0xff]
    %v1030 = vld [vmem:[#allocation2 + $0x76] sm:$0xff]
    %v1031 = vld [vmem:[#allocation2 + $0x7e] sm:$0xff]
    %v1032 = vld [vmem:[#allocation2 + $0x86] sm:$0xff]
    %v1033 = vld [vmem:[#allocation2 + $0x8e] sm:$0xff]
    %v1034 = vld [vmem:[#allocation2 + $0x96] sm:$0xff]
    %v1035 = vld [vmem:[#allocation2 + $0x9e] sm:$0xff]
    %v1036 = vld [vmem:[#allocation2 + $0xa6] sm:$0x3]
    %v1037 = vld [vmem:[%s13] sm:$0xff]
    %v1038 = vld [vmem:[%s13 + $0x8] sm:$0xff]
    %v1039 = vld [vmem:[%s13 + $0x10] sm:$0xff]
    %v1040 = vld [vmem:[%s13 + $0x18] sm:$0xff]
    %v1041 = vld [vmem:[%s13 + $0x20] sm:$0xff]
    %v1042 = vld [vmem:[%s13 + $0x28] sm:$0xff]
    %v1043 = vld [vmem:[%s13 + $0x30] sm:$0xff]
    %v1044 = vld [vmem:[%s13 + $0x38] sm:$0xff]
    %v1045 = vld [vmem:[%s13 + $0x40] sm:$0xff]
    %v1046 = vld [vmem:[%s13 + $0x48] sm:$0xff]
    %v1047 = vld [vmem:[%s13 + $0x50] sm:$0xff]
    %v1048 = vld [vmem:[%s13 + $0x58] sm:$0xff]
    %v1049 = vld [vmem:[%s13 + $0x60] sm:$0xff]
    %v1050 = vld [vmem:[%s13 + $0x68] sm:$0xff]
    %v1051 = vld [vmem:[%s13 + $0x70] sm:$0xff]
    %v1052 = vld [vmem:[%s13 + $0x78] sm:$0xff]
    %v1053 = vld [vmem:[%s13 + $0x80] sm:$0xff]
    %v1054 = vld [vmem:[%s13 + $0x88] sm:$0xff]
    %v1055 = vld [vmem:[%s13 + $0x90] sm:$0xff]
    %v1056 = vld [vmem:[%s13 + $0x98] sm:$0xff]
    %v1057 = vld [vmem:[%s13 + $0xa0] sm:$0x3]
    %1059 = vset.pattern.permute.xlu0 0
    %1060 = vperm.xlu0 %1059, %v1037
    %v1061 = vpop.permute.xlu0 %1060
    %1064 = vset.pattern.permute.xlu0 0
    %1065 = vperm.xlu0 %1064, %v1038
    %v1066 = vpop.permute.xlu0 %1065
    %1069 = vset.pattern.permute.xlu0 0
    %1070 = vperm.xlu0 %1069, %v1039
    %v1071 = vpop.permute.xlu0 %1070
    %1074 = vset.pattern.permute.xlu0 0
    %1075 = vperm.xlu0 %1074, %v1040
    %v1076 = vpop.permute.xlu0 %1075
    %1079 = vset.pattern.permute.xlu0 0
    %1080 = vperm.xlu0 %1079, %v1041
    %v1081 = vpop.permute.xlu0 %1080
    %1084 = vset.pattern.permute.xlu0 0
    %1085 = vperm.xlu0 %1084, %v1042
    %v1086 = vpop.permute.xlu0 %1085
    %1089 = vset.pattern.permute.xlu0 0
    %1090 = vperm.xlu0 %1089, %v1043
    %v1091 = vpop.permute.xlu0 %1090
    %1094 = vset.pattern.permute.xlu0 0
    %1095 = vperm.xlu0 %1094, %v1044
    %v1096 = vpop.permute.xlu0 %1095
    %1099 = vset.pattern.permute.xlu0 0
    %1100 = vperm.xlu0 %1099, %v1045
    %v1101 = vpop.permute.xlu0 %1100
    %1104 = vset.pattern.permute.xlu0 0
    %1105 = vperm.xlu0 %1104, %v1046
    %v1106 = vpop.permute.xlu0 %1105
    %1109 = vset.pattern.permute.xlu0 0
    %1110 = vperm.xlu0 %1109, %v1047
    %v1111 = vpop.permute.xlu0 %1110
    %1114 = vset.pattern.permute.xlu0 0
    %1115 = vperm.xlu0 %1114, %v1048
    %v1116 = vpop.permute.xlu0 %1115
    %1119 = vset.pattern.permute.xlu0 0
    %1120 = vperm.xlu0 %1119, %v1049
    %v1121 = vpop.permute.xlu0 %1120
    %1124 = vset.pattern.permute.xlu0 0
    %1125 = vperm.xlu0 %1124, %v1050
    %v1126 = vpop.permute.xlu0 %1125
    %1129 = vset.pattern.permute.xlu0 0
    %1130 = vperm.xlu0 %1129, %v1051
    %v1131 = vpop.permute.xlu0 %1130
    %1134 = vset.pattern.permute.xlu0 0
    %1135 = vperm.xlu0 %1134, %v1052
    %v1136 = vpop.permute.xlu0 %1135
    %1139 = vset.pattern.permute.xlu0 0
    %1140 = vperm.xlu0 %1139, %v1053
    %v1141 = vpop.permute.xlu0 %1140
    %1144 = vset.pattern.permute.xlu0 0
    %1145 = vperm.xlu0 %1144, %v1054
    %v1146 = vpop.permute.xlu0 %1145
    %1149 = vset.pattern.permute.xlu0 0
    %1150 = vperm.xlu0 %1149, %v1055
    %v1151 = vpop.permute.xlu0 %1150
    %1154 = vset.pattern.permute.xlu0 0
    %1155 = vperm.xlu0 %1154, %v1056
    %v1156 = vpop.permute.xlu0 %1155
    %1159 = vset.pattern.permute.xlu0 0
    %1160 = vperm.xlu0 %1159, %v1057
    %v1161 = vpop.permute.xlu0 %1160
    %v1163 = vmul.f32 %v1016, %v1061
    %v1164 = vmul.f32 %v1017, %v1066
    %v1165 = vmul.f32 %v1018, %v1071
    %v1166 = vmul.f32 %v1019, %v1076
    %v1167 = vmul.f32 %v1020, %v1081
    %v1168 = vmul.f32 %v1021, %v1086
    %v1169 = vmul.f32 %v1022, %v1091
    %v1170 = vmul.f32 %v1023, %v1096
    %v1171 = vmul.f32 %v1024, %v1101
    %v1172 = vmul.f32 %v1025, %v1106
    %v1173 = vmul.f32 %v1026, %v1111
    %v1174 = vmul.f32 %v1027, %v1116
    %v1175 = vmul.f32 %v1028, %v1121
    %v1176 = vmul.f32 %v1029, %v1126
    %v1177 = vmul.f32 %v1030, %v1131
    %v1178 = vmul.f32 %v1031, %v1136
    %v1179 = vmul.f32 %v1032, %v1141
    %v1180 = vmul.f32 %v1033, %v1146
    %v1181 = vmul.f32 %v1034, %v1151
    %v1182 = vmul.f32 %v1035, %v1156
    %v1183 = vmul.f32 %v1036, %v1161
    %v1184 = vld [vmem:[#allocation2 + $0x7] sm:$0xff]
    %v1185 = vld [vmem:[#allocation2 + $0xf] sm:$0xff]
    %v1186 = vld [vmem:[#allocation2 + $0x17] sm:$0xff]
    %v1187 = vld [vmem:[#allocation2 + $0x1f] sm:$0xff]
    %v1188 = vld [vmem:[#allocation2 + $0x27] sm:$0xff]
    %v1189 = vld [vmem:[#allocation2 + $0x2f] sm:$0xff]
    %v1190 = vld [vmem:[#allocation2 + $0x37] sm:$0xff]
    %v1191 = vld [vmem:[#allocation2 + $0x3f] sm:$0xff]
    %v1192 = vld [vmem:[#allocation2 + $0x47] sm:$0xff]
    %v1193 = vld [vmem:[#allocation2 + $0x4f] sm:$0xff]
    %v1194 = vld [vmem:[#allocation2 + $0x57] sm:$0xff]
    %v1195 = vld [vmem:[#allocation2 + $0x5f] sm:$0xff]
    %v1196 = vld [vmem:[#allocation2 + $0x67] sm:$0xff]
    %v1197 = vld [vmem:[#allocation2 + $0x6f] sm:$0xff]
    %v1198 = vld [vmem:[#allocation2 + $0x77] sm:$0xff]
    %v1199 = vld [vmem:[#allocation2 + $0x7f] sm:$0xff]
    %v1200 = vld [vmem:[#allocation2 + $0x87] sm:$0xff]
    %v1201 = vld [vmem:[#allocation2 + $0x8f] sm:$0xff]
    %v1202 = vld [vmem:[#allocation2 + $0x97] sm:$0xff]
    %v1203 = vld [vmem:[#allocation2 + $0x9f] sm:$0xff]
    %v1204 = vld [vmem:[#allocation2 + $0xa7] sm:$0x3]
    %1205 = vset.pattern.permute.xlu0 1
    %1206 = vperm.xlu0 %1205, %v1037
    %v1207 = vpop.permute.xlu0 %1206
    %1209 = vset.pattern.permute.xlu0 1
    %1210 = vperm.xlu0 %1209, %v1038
    %v1211 = vpop.permute.xlu0 %1210
    %1213 = vset.pattern.permute.xlu0 1
    %1214 = vperm.xlu0 %1213, %v1039
    %v1215 = vpop.permute.xlu0 %1214
    %1217 = vset.pattern.permute.xlu0 1
    %1218 = vperm.xlu0 %1217, %v1040
    %v1219 = vpop.permute.xlu0 %1218
    %1221 = vset.pattern.permute.xlu0 1
    %1222 = vperm.xlu0 %1221, %v1041
    %v1223 = vpop.permute.xlu0 %1222
    %1225 = vset.pattern.permute.xlu0 1
    %1226 = vperm.xlu0 %1225, %v1042
    %v1227 = vpop.permute.xlu0 %1226
    %1229 = vset.pattern.permute.xlu0 1
    %1230 = vperm.xlu0 %1229, %v1043
    %v1231 = vpop.permute.xlu0 %1230
    %1233 = vset.pattern.permute.xlu0 1
    %1234 = vperm.xlu0 %1233, %v1044
    %v1235 = vpop.permute.xlu0 %1234
    %1237 = vset.pattern.permute.xlu0 1
    %1238 = vperm.xlu0 %1237, %v1045
    %v1239 = vpop.permute.xlu0 %1238
    %1241 = vset.pattern.permute.xlu0 1
    %1242 = vperm.xlu0 %1241, %v1046
    %v1243 = vpop.permute.xlu0 %1242
    %1245 = vset.pattern.permute.xlu0 1
    %1246 = vperm.xlu0 %1245, %v1047
    %v1247 = vpop.permute.xlu0 %1246
    %1249 = vset.pattern.permute.xlu0 1
    %1250 = vperm.xlu0 %1249, %v1048
    %v1251 = vpop.permute.xlu0 %1250
    %1253 = vset.pattern.permute.xlu0 1
    %1254 = vperm.xlu0 %1253, %v1049
    %v1255 = vpop.permute.xlu0 %1254
    %1257 = vset.pattern.permute.xlu0 1
    %1258 = vperm.xlu0 %1257, %v1050
    %v1259 = vpop.permute.xlu0 %1258
    %1261 = vset.pattern.permute.xlu0 1
    %1262 = vperm.xlu0 %1261, %v1051
    %v1263 = vpop.permute.xlu0 %1262
    %1265 = vset.pattern.permute.xlu0 1
    %1266 = vperm.xlu0 %1265, %v1052
    %v1267 = vpop.permute.xlu0 %1266
    %1269 = vset.pattern.permute.xlu0 1
    %1270 = vperm.xlu0 %1269, %v1053
    %v1271 = vpop.permute.xlu0 %1270
    %1273 = vset.pattern.permute.xlu0 1
    %1274 = vperm.xlu0 %1273, %v1054
    %v1275 = vpop.permute.xlu0 %1274
    %1277 = vset.pattern.permute.xlu0 1
    %1278 = vperm.xlu0 %1277, %v1055
    %v1279 = vpop.permute.xlu0 %1278
    %1281 = vset.pattern.permute.xlu0 1
    %1282 = vperm.xlu0 %1281, %v1056
    %v1283 = vpop.permute.xlu0 %1282
    %1285 = vset.pattern.permute.xlu0 1
    %1286 = vperm.xlu0 %1285, %v1057
    %v1287 = vpop.permute.xlu0 %1286
    %v1289 = vmul.f32 %v1184, %v1207
    %v1290 = vmul.f32 %v1185, %v1211
    %v1291 = vmul.f32 %v1186, %v1215
    %v1292 = vmul.f32 %v1187, %v1219
    %v1293 = vmul.f32 %v1188, %v1223
    %v1294 = vmul.f32 %v1189, %v1227
    %v1295 = vmul.f32 %v1190, %v1231
    %v1296 = vmul.f32 %v1191, %v1235
    %v1297 = vmul.f32 %v1192, %v1239
    %v1298 = vmul.f32 %v1193, %v1243
    %v1299 = vmul.f32 %v1194, %v1247
    %v1300 = vmul.f32 %v1195, %v1251
    %v1301 = vmul.f32 %v1196, %v1255
    %v1302 = vmul.f32 %v1197, %v1259
    %v1303 = vmul.f32 %v1198, %v1263
    %v1304 = vmul.f32 %v1199, %v1267
    %v1305 = vmul.f32 %v1200, %v1271
    %v1306 = vmul.f32 %v1201, %v1275
    %v1307 = vmul.f32 %v1202, %v1279
    %v1308 = vmul.f32 %v1203, %v1283
    %v1309 = vmul.f32 %v1204, %v1287
    %v1310 = vld [vmem:[#allocation2 + $0x8] sm:$0xff]
    %v1311 = vld [vmem:[#allocation2 + $0x10] sm:$0xff]
    %v1312 = vld [vmem:[#allocation2 + $0x18] sm:$0xff]
    %v1313 = vld [vmem:[#allocation2 + $0x20] sm:$0xff]
    %v1314 = vld [vmem:[#allocation2 + $0x28] sm:$0xff]
    %v1315 = vld [vmem:[#allocation2 + $0x30] sm:$0xff]
    %v1316 = vld [vmem:[#allocation2 + $0x38] sm:$0xff]
    %v1317 = vld [vmem:[#allocation2 + $0x40] sm:$0xff]
    %v1318 = vld [vmem:[#allocation2 + $0x48] sm:$0xff]
    %v1319 = vld [vmem:[#allocation2 + $0x50] sm:$0xff]
    %v1320 = vld [vmem:[#allocation2 + $0x58] sm:$0xff]
    %v1321 = vld [vmem:[#allocation2 + $0x60] sm:$0xff]
    %v1322 = vld [vmem:[#allocation2 + $0x68] sm:$0xff]
    %v1323 = vld [vmem:[#allocation2 + $0x70] sm:$0xff]
    %v1324 = vld [vmem:[#allocation2 + $0x78] sm:$0xff]
    %v1325 = vld [vmem:[#allocation2 + $0x80] sm:$0xff]
    %v1326 = vld [vmem:[#allocation2 + $0x88] sm:$0xff]
    %v1327 = vld [vmem:[#allocation2 + $0x90] sm:$0xff]
    %v1328 = vld [vmem:[#allocation2 + $0x98] sm:$0xff]
    %v1329 = vld [vmem:[#allocation2 + $0xa0] sm:$0xff]
    %v1330 = vld [vmem:[#allocation2 + $0xa8] sm:$0x3]
    %1331 = vset.pattern.permute.xlu0 2
    %1332 = vperm.xlu0 %1331, %v1037
    %v1333 = vpop.permute.xlu0 %1332
    %1335 = vset.pattern.permute.xlu0 2
    %1336 = vperm.xlu0 %1335, %v1038
    %v1337 = vpop.permute.xlu0 %1336
    %1339 = vset.pattern.permute.xlu0 2
    %1340 = vperm.xlu0 %1339, %v1039
    %v1341 = vpop.permute.xlu0 %1340
    %1343 = vset.pattern.permute.xlu0 2
    %1344 = vperm.xlu0 %1343, %v1040
    %v1345 = vpop.permute.xlu0 %1344
    %1347 = vset.pattern.permute.xlu0 2
    %1348 = vperm.xlu0 %1347, %v1041
    %v1349 = vpop.permute.xlu0 %1348
    %1351 = vset.pattern.permute.xlu0 2
    %1352 = vperm.xlu0 %1351, %v1042
    %v1353 = vpop.permute.xlu0 %1352
    %1355 = vset.pattern.permute.xlu0 2
    %1356 = vperm.xlu0 %1355, %v1043
    %v1357 = vpop.permute.xlu0 %1356
    %1359 = vset.pattern.permute.xlu0 2
    %1360 = vperm.xlu0 %1359, %v1044
    %v1361 = vpop.permute.xlu0 %1360
    %1363 = vset.pattern.permute.xlu0 2
    %1364 = vperm.xlu0 %1363, %v1045
    %v1365 = vpop.permute.xlu0 %1364
    %1367 = vset.pattern.permute.xlu0 2
    %1368 = vperm.xlu0 %1367, %v1046
    %v1369 = vpop.permute.xlu0 %1368
    %1371 = vset.pattern.permute.xlu0 2
    %1372 = vperm.xlu0 %1371, %v1047
    %v1373 = vpop.permute.xlu0 %1372
    %1375 = vset.pattern.permute.xlu0 2
    %1376 = vperm.xlu0 %1375, %v1048
    %v1377 = vpop.permute.xlu0 %1376
    %1379 = vset.pattern.permute.xlu0 2
    %1380 = vperm.xlu0 %1379, %v1049
    %v1381 = vpop.permute.xlu0 %1380
    %1383 = vset.pattern.permute.xlu0 2
    %1384 = vperm.xlu0 %1383, %v1050
    %v1385 = vpop.permute.xlu0 %1384
    %1387 = vset.pattern.permute.xlu0 2
    %1388 = vperm.xlu0 %1387, %v1051
    %v1389 = vpop.permute.xlu0 %1388
    %1391 = vset.pattern.permute.xlu0 2
    %1392 = vperm.xlu0 %1391, %v1052
    %v1393 = vpop.permute.xlu0 %1392
    %1395 = vset.pattern.permute.xlu0 2
    %1396 = vperm.xlu0 %1395, %v1053
    %v1397 = vpop.permute.xlu0 %1396
    %1399 = vset.pattern.permute.xlu0 2
    %1400 = vperm.xlu0 %1399, %v1054
    %v1401 = vpop.permute.xlu0 %1400
    %1403 = vset.pattern.permute.xlu0 2
    %1404 = vperm.xlu0 %1403, %v1055
    %v1405 = vpop.permute.xlu0 %1404
    %1407 = vset.pattern.permute.xlu0 2
    %1408 = vperm.xlu0 %1407, %v1056
    %v1409 = vpop.permute.xlu0 %1408
    %1411 = vset.pattern.permute.xlu0 2
    %1412 = vperm.xlu0 %1411, %v1057
    %v1413 = vpop.permute.xlu0 %1412
    %v1415 = vmul.f32 %v1310, %v1333
    %v1416 = vmul.f32 %v1311, %v1337
    %v1417 = vmul.f32 %v1312, %v1341
    %v1418 = vmul.f32 %v1313, %v1345
    %v1419 = vmul.f32 %v1314, %v1349
    %v1420 = vmul.f32 %v1315, %v1353
    %v1421 = vmul.f32 %v1316, %v1357
    %v1422 = vmul.f32 %v1317, %v1361
    %v1423 = vmul.f32 %v1318, %v1365
    %v1424 = vmul.f32 %v1319, %v1369
    %v1425 = vmul.f32 %v1320, %v1373
    %v1426 = vmul.f32 %v1321, %v1377
    %v1427 = vmul.f32 %v1322, %v1381
    %v1428 = vmul.f32 %v1323, %v1385
    %v1429 = vmul.f32 %v1324, %v1389
    %v1430 = vmul.f32 %v1325, %v1393
    %v1431 = vmul.f32 %v1326, %v1397
    %v1432 = vmul.f32 %v1327, %v1401
    %v1433 = vmul.f32 %v1328, %v1405
    %v1434 = vmul.f32 %v1329, %v1409
    %v1435 = vmul.f32 %v1330, %v1413
    %v1436 = vld [vmem:[#allocation2 + $0xf] sm:$0xff]
    %v1437 = vld [vmem:[#allocation2 + $0x17] sm:$0xff]
    %v1438 = vld [vmem:[#allocation2 + $0x1f] sm:$0xff]
    %v1439 = vld [vmem:[#allocation2 + $0x27] sm:$0xff]
    %v1440 = vld [vmem:[#allocation2 + $0x2f] sm:$0xff]
    %v1441 = vld [vmem:[#allocation2 + $0x37] sm:$0xff]
    %v1442 = vld [vmem:[#allocation2 + $0x3f] sm:$0xff]
    %v1443 = vld [vmem:[#allocation2 + $0x47] sm:$0xff]
    %v1444 = vld [vmem:[#allocation2 + $0x4f] sm:$0xff]
    %v1445 = vld [vmem:[#allocation2 + $0x57] sm:$0xff]
    %v1446 = vld [vmem:[#allocation2 + $0x5f] sm:$0xff]
    %v1447 = vld [vmem:[#allocation2 + $0x67] sm:$0xff]
    %v1448 = vld [vmem:[#allocation2 + $0x6f] sm:$0xff]
    %v1449 = vld [vmem:[#allocation2 + $0x77] sm:$0xff]
    %v1450 = vld [vmem:[#allocation2 + $0x7f] sm:$0xff]
    %v1451 = vld [vmem:[#allocation2 + $0x87] sm:$0xff]
    %v1452 = vld [vmem:[#allocation2 + $0x8f] sm:$0xff]
    %v1453 = vld [vmem:[#allocation2 + $0x97] sm:$0xff]
    %v1454 = vld [vmem:[#allocation2 + $0x9f] sm:$0xff]
    %v1455 = vld [vmem:[#allocation2 + $0xa7] sm:$0xff]
    %v1456 = vld [vmem:[#allocation2 + $0xaf] sm:$0x3]
    %1457 = vset.pattern.permute.xlu0 3
    %1458 = vperm.xlu0 %1457, %v1037
    %v1459 = vpop.permute.xlu0 %1458
    %1461 = vset.pattern.permute.xlu0 3
    %1462 = vperm.xlu0 %1461, %v1038
    %v1463 = vpop.permute.xlu0 %1462
    %1465 = vset.pattern.permute.xlu0 3
    %1466 = vperm.xlu0 %1465, %v1039
    %v1467 = vpop.permute.xlu0 %1466
    %1469 = vset.pattern.permute.xlu0 3
    %1470 = vperm.xlu0 %1469, %v1040
    %v1471 = vpop.permute.xlu0 %1470
    %1473 = vset.pattern.permute.xlu0 3
    %1474 = vperm.xlu0 %1473, %v1041
    %v1475 = vpop.permute.xlu0 %1474
    %1477 = vset.pattern.permute.xlu0 3
    %1478 = vperm.xlu0 %1477, %v1042
    %v1479 = vpop.permute.xlu0 %1478
    %1481 = vset.pattern.permute.xlu0 3
    %1482 = vperm.xlu0 %1481, %v1043
    %v1483 = vpop.permute.xlu0 %1482
    %1485 = vset.pattern.permute.xlu0 3
    %1486 = vperm.xlu0 %1485, %v1044
    %v1487 = vpop.permute.xlu0 %1486
    %1489 = vset.pattern.permute.xlu0 3
    %1490 = vperm.xlu0 %1489, %v1045
    %v1491 = vpop.permute.xlu0 %1490
    %1493 = vset.pattern.permute.xlu0 3
    %1494 = vperm.xlu0 %1493, %v1046
    %v1495 = vpop.permute.xlu0 %1494
    %1497 = vset.pattern.permute.xlu0 3
    %1498 = vperm.xlu0 %1497, %v1047
    %v1499 = vpop.permute.xlu0 %1498
    %1501 = vset.pattern.permute.xlu0 3
    %1502 = vperm.xlu0 %1501, %v1048
    %v1503 = vpop.permute.xlu0 %1502
    %1505 = vset.pattern.permute.xlu0 3
    %1506 = vperm.xlu0 %1505, %v1049
    %v1507 = vpop.permute.xlu0 %1506
    %1509 = vset.pattern.permute.xlu0 3
    %1510 = vperm.xlu0 %1509, %v1050
    %v1511 = vpop.permute.xlu0 %1510
    %1513 = vset.pattern.permute.xlu0 3
    %1514 = vperm.xlu0 %1513, %v1051
    %v1515 = vpop.permute.xlu0 %1514
    %1517 = vset.pattern.permute.xlu0 3
    %1518 = vperm.xlu0 %1517, %v1052
    %v1519 = vpop.permute.xlu0 %1518
    %1521 = vset.pattern.permute.xlu0 3
    %1522 = vperm.xlu0 %1521, %v1053
    %v1523 = vpop.permute.xlu0 %1522
    %1525 = vset.pattern.permute.xlu0 3
    %1526 = vperm.xlu0 %1525, %v1054
    %v1527 = vpop.permute.xlu0 %1526
    %1529 = vset.pattern.permute.xlu0 3
    %1530 = vperm.xlu0 %1529, %v1055
    %v1531 = vpop.permute.xlu0 %1530
    %1533 = vset.pattern.permute.xlu0 3
    %1534 = vperm.xlu0 %1533, %v1056
    %v1535 = vpop.permute.xlu0 %1534
    %1537 = vset.pattern.permute.xlu0 3
    %1538 = vperm.xlu0 %1537, %v1057
    %v1539 = vpop.permute.xlu0 %1538
    %v1541 = vmul.f32 %v1436, %v1459
    %v1542 = vmul.f32 %v1437, %v1463
    %v1543 = vmul.f32 %v1438, %v1467
    %v1544 = vmul.f32 %v1439, %v1471
    %v1545 = vmul.f32 %v1440, %v1475
    %v1546 = vmul.f32 %v1441, %v1479
    %v1547 = vmul.f32 %v1442, %v1483
    %v1548 = vmul.f32 %v1443, %v1487
    %v1549 = vmul.f32 %v1444, %v1491
    %v1550 = vmul.f32 %v1445, %v1495
    %v1551 = vmul.f32 %v1446, %v1499
    %v1552 = vmul.f32 %v1447, %v1503
    %v1553 = vmul.f32 %v1448, %v1507
    %v1554 = vmul.f32 %v1449, %v1511
    %v1555 = vmul.f32 %v1450, %v1515
    %v1556 = vmul.f32 %v1451, %v1519
    %v1557 = vmul.f32 %v1452, %v1523
    %v1558 = vmul.f32 %v1453, %v1527
    %v1559 = vmul.f32 %v1454, %v1531
    %v1560 = vmul.f32 %v1455, %v1535
    %v1561 = vmul.f32 %v1456, %v1539
    %v1562 = vld [vmem:[#allocation2 + $0x10] sm:$0xff]
    %v1563 = vld [vmem:[#allocation2 + $0x18] sm:$0xff]
    %v1564 = vld [vmem:[#allocation2 + $0x20] sm:$0xff]
    %v1565 = vld [vmem:[#allocation2 + $0x28] sm:$0xff]
    %v1566 = vld [vmem:[#allocation2 + $0x30] sm:$0xff]
    %v1567 = vld [vmem:[#allocation2 + $0x38] sm:$0xff]
    %v1568 = vld [vmem:[#allocation2 + $0x40] sm:$0xff]
    %v1569 = vld [vmem:[#allocation2 + $0x48] sm:$0xff]
    %v1570 = vld [vmem:[#allocation2 + $0x50] sm:$0xff]
    %v1571 = vld [vmem:[#allocation2 + $0x58] sm:$0xff]
    %v1572 = vld [vmem:[#allocation2 + $0x60] sm:$0xff]
    %v1573 = vld [vmem:[#allocation2 + $0x68] sm:$0xff]
    %v1574 = vld [vmem:[#allocation2 + $0x70] sm:$0xff]
    %v1575 = vld [vmem:[#allocation2 + $0x78] sm:$0xff]
    %v1576 = vld [vmem:[#allocation2 + $0x80] sm:$0xff]
    %v1577 = vld [vmem:[#allocation2 + $0x88] sm:$0xff]
    %v1578 = vld [vmem:[#allocation2 + $0x90] sm:$0xff]
    %v1579 = vld [vmem:[#allocation2 + $0x98] sm:$0xff]
    %v1580 = vld [vmem:[#allocation2 + $0xa0] sm:$0xff]
    %v1581 = vld [vmem:[#allocation2 + $0xa8] sm:$0xff]
    %v1582 = vld [vmem:[#allocation2 + $0xb0] sm:$0x3]
    %1583 = vset.pattern.permute.xlu0 4
    %1584 = vperm.xlu0 %1583, %v1037
    %v1585 = vpop.permute.xlu0 %1584
    %1587 = vset.pattern.permute.xlu0 4
    %1588 = vperm.xlu0 %1587, %v1038
    %v1589 = vpop.permute.xlu0 %1588
    %1591 = vset.pattern.permute.xlu0 4
    %1592 = vperm.xlu0 %1591, %v1039
    %v1593 = vpop.permute.xlu0 %1592
    %1595 = vset.pattern.permute.xlu0 4
    %1596 = vperm.xlu0 %1595, %v1040
    %v1597 = vpop.permute.xlu0 %1596
    %1599 = vset.pattern.permute.xlu0 4
    %1600 = vperm.xlu0 %1599, %v1041
    %v1601 = vpop.permute.xlu0 %1600
    %1603 = vset.pattern.permute.xlu0 4
    %1604 = vperm.xlu0 %1603, %v1042
    %v1605 = vpop.permute.xlu0 %1604
    %1607 = vset.pattern.permute.xlu0 4
    %1608 = vperm.xlu0 %1607, %v1043
    %v1609 = vpop.permute.xlu0 %1608
    %1611 = vset.pattern.permute.xlu0 4
    %1612 = vperm.xlu0 %1611, %v1044
    %v1613 = vpop.permute.xlu0 %1612
    %1615 = vset.pattern.permute.xlu0 4
    %1616 = vperm.xlu0 %1615, %v1045
    %v1617 = vpop.permute.xlu0 %1616
    %1619 = vset.pattern.permute.xlu0 4
    %1620 = vperm.xlu0 %1619, %v1046
    %v1621 = vpop.permute.xlu0 %1620
    %1623 = vset.pattern.permute.xlu0 4
    %1624 = vperm.xlu0 %1623, %v1047
    %v1625 = vpop.permute.xlu0 %1624
    %1627 = vset.pattern.permute.xlu0 4
    %1628 = vperm.xlu0 %1627, %v1048
    %v1629 = vpop.permute.xlu0 %1628
    %1631 = vset.pattern.permute.xlu0 4
    %1632 = vperm.xlu0 %1631, %v1049
    %v1633 = vpop.permute.xlu0 %1632
    %1635 = vset.pattern.permute.xlu0 4
    %1636 = vperm.xlu0 %1635, %v1050
    %v1637 = vpop.permute.xlu0 %1636
    %1639 = vset.pattern.permute.xlu0 4
    %1640 = vperm.xlu0 %1639, %v1051
    %v1641 = vpop.permute.xlu0 %1640
    %1643 = vset.pattern.permute.xlu0 4
    %1644 = vperm.xlu0 %1643, %v1052
    %v1645 = vpop.permute.xlu0 %1644
    %1647 = vset.pattern.permute.xlu0 4
    %1648 = vperm.xlu0 %1647, %v1053
    %v1649 = vpop.permute.xlu0 %1648
    %1651 = vset.pattern.permute.xlu0 4
    %1652 = vperm.xlu0 %1651, %v1054
    %v1653 = vpop.permute.xlu0 %1652
    %1655 = vset.pattern.permute.xlu0 4
    %1656 = vperm.xlu0 %1655, %v1055
    %v1657 = vpop.permute.xlu0 %1656
    %1659 = vset.pattern.permute.xlu0 4
    %1660 = vperm.xlu0 %1659, %v1056
    %v1661 = vpop.permute.xlu0 %1660
    %1663 = vset.pattern.permute.xlu0 4
    %1664 = vperm.xlu0 %1663, %v1057
    %v1665 = vpop.permute.xlu0 %1664
    %v1667 = vmul.f32 %v1562, %v1585
    %v1668 = vmul.f32 %v1563, %v1589
    %v1669 = vmul.f32 %v1564, %v1593
    %v1670 = vmul.f32 %v1565, %v1597
    %v1671 = vmul.f32 %v1566, %v1601
    %v1672 = vmul.f32 %v1567, %v1605
    %v1673 = vmul.f32 %v1568, %v1609
    %v1674 = vmul.f32 %v1569, %v1613
    %v1675 = vmul.f32 %v1570, %v1617
    %v1676 = vmul.f32 %v1571, %v1621
    %v1677 = vmul.f32 %v1572, %v1625
    %v1678 = vmul.f32 %v1573, %v1629
    %v1679 = vmul.f32 %v1574, %v1633
    %v1680 = vmul.f32 %v1575, %v1637
    %v1681 = vmul.f32 %v1576, %v1641
    %v1682 = vmul.f32 %v1577, %v1645
    %v1683 = vmul.f32 %v1578, %v1649
    %v1684 = vmul.f32 %v1579, %v1653
    %v1685 = vmul.f32 %v1580, %v1657
    %v1686 = vmul.f32 %v1581, %v1661
    %v1687 = vmul.f32 %v1582, %v1665
    %v1688 = vld [vmem:[#allocation2 + $0x11] sm:$0xff]
    %v1689 = vld [vmem:[#allocation2 + $0x19] sm:$0xff]
    %v1690 = vld [vmem:[#allocation2 + $0x21] sm:$0xff]
    %v1691 = vld [vmem:[#allocation2 + $0x29] sm:$0xff]
    %v1692 = vld [vmem:[#allocation2 + $0x31] sm:$0xff]
    %v1693 = vld [vmem:[#allocation2 + $0x39] sm:$0xff]
    %v1694 = vld [vmem:[#allocation2 + $0x41] sm:$0xff]
    %v1695 = vld [vmem:[#allocation2 + $0x49] sm:$0xff]
    %v1696 = vld [vmem:[#allocation2 + $0x51] sm:$0xff]
    %v1697 = vld [vmem:[#allocation2 + $0x59] sm:$0xff]
    %v1698 = vld [vmem:[#allocation2 + $0x61] sm:$0xff]
    %v1699 = vld [vmem:[#allocation2 + $0x69] sm:$0xff]
    %v1700 = vld [vmem:[#allocation2 + $0x71] sm:$0xff]
    %v1701 = vld [vmem:[#allocation2 + $0x79] sm:$0xff]
    %v1702 = vld [vmem:[#allocation2 + $0x81] sm:$0xff]
    %v1703 = vld [vmem:[#allocation2 + $0x89] sm:$0xff]
    %v1704 = vld [vmem:[#allocation2 + $0x91] sm:$0xff]
    %v1705 = vld [vmem:[#allocation2 + $0x99] sm:$0xff]
    %v1706 = vld [vmem:[#allocation2 + $0xa1] sm:$0xff]
    %v1707 = vld [vmem:[#allocation2 + $0xa9] sm:$0xff]
    %v1708 = vld [vmem:[#allocation2 + $0xb1] sm:$0x3]
    %1709 = vset.pattern.permute.xlu0 5
    %1710 = vperm.xlu0 %1709, %v1037
    %v1711 = vpop.permute.xlu0 %1710
    %1713 = vset.pattern.permute.xlu0 5
    %1714 = vperm.xlu0 %1713, %v1038
    %v1715 = vpop.permute.xlu0 %1714
    %1717 = vset.pattern.permute.xlu0 5
    %1718 = vperm.xlu0 %1717, %v1039
    %v1719 = vpop.permute.xlu0 %1718
    %1721 = vset.pattern.permute.xlu0 5
    %1722 = vperm.xlu0 %1721, %v1040
    %v1723 = vpop.permute.xlu0 %1722
    %1725 = vset.pattern.permute.xlu0 5
    %1726 = vperm.xlu0 %1725, %v1041
    %v1727 = vpop.permute.xlu0 %1726
    %1729 = vset.pattern.permute.xlu0 5
    %1730 = vperm.xlu0 %1729, %v1042
    %v1731 = vpop.permute.xlu0 %1730
    %1733 = vset.pattern.permute.xlu0 5
    %1734 = vperm.xlu0 %1733, %v1043
    %v1735 = vpop.permute.xlu0 %1734
    %1737 = vset.pattern.permute.xlu0 5
    %1738 = vperm.xlu0 %1737, %v1044
    %v1739 = vpop.permute.xlu0 %1738
    %1741 = vset.pattern.permute.xlu0 5
    %1742 = vperm.xlu0 %1741, %v1045
    %v1743 = vpop.permute.xlu0 %1742
    %1745 = vset.pattern.permute.xlu0 5
    %1746 = vperm.xlu0 %1745, %v1046
    %v1747 = vpop.permute.xlu0 %1746
    %1749 = vset.pattern.permute.xlu0 5
    %1750 = vperm.xlu0 %1749, %v1047
    %v1751 = vpop.permute.xlu0 %1750
    %1753 = vset.pattern.permute.xlu0 5
    %1754 = vperm.xlu0 %1753, %v1048
    %v1755 = vpop.permute.xlu0 %1754
    %1757 = vset.pattern.permute.xlu0 5
    %1758 = vperm.xlu0 %1757, %v1049
    %v1759 = vpop.permute.xlu0 %1758
    %1761 = vset.pattern.permute.xlu0 5
    %1762 = vperm.xlu0 %1761, %v1050
    %v1763 = vpop.permute.xlu0 %1762
    %1765 = vset.pattern.permute.xlu0 5
    %1766 = vperm.xlu0 %1765, %v1051
    %v1767 = vpop.permute.xlu0 %1766
    %1769 = vset.pattern.permute.xlu0 5
    %1770 = vperm.xlu0 %1769, %v1052
    %v1771 = vpop.permute.xlu0 %1770
    %1773 = vset.pattern.permute.xlu0 5
    %1774 = vperm.xlu0 %1773, %v1053
    %v1775 = vpop.permute.xlu0 %1774
    %1777 = vset.pattern.permute.xlu0 5
    %1778 = vperm.xlu0 %1777, %v1054
    %v1779 = vpop.permute.xlu0 %1778
    %1781 = vset.pattern.permute.xlu0 5
    %1782 = vperm.xlu0 %1781, %v1055
    %v1783 = vpop.permute.xlu0 %1782
    %1785 = vset.pattern.permute.xlu0 5
    %1786 = vperm.xlu0 %1785, %v1056
    %v1787 = vpop.permute.xlu0 %1786
    %1789 = vset.pattern.permute.xlu0 5
    %1790 = vperm.xlu0 %1789, %v1057
    %v1791 = vpop.permute.xlu0 %1790
    %v1793 = vmul.f32 %v1688, %v1711
    %v1794 = vmul.f32 %v1689, %v1715
    %v1795 = vmul.f32 %v1690, %v1719
    %v1796 = vmul.f32 %v1691, %v1723
    %v1797 = vmul.f32 %v1692, %v1727
    %v1798 = vmul.f32 %v1693, %v1731
    %v1799 = vmul.f32 %v1694, %v1735
    %v1800 = vmul.f32 %v1695, %v1739
    %v1801 = vmul.f32 %v1696, %v1743
    %v1802 = vmul.f32 %v1697, %v1747
    %v1803 = vmul.f32 %v1698, %v1751
    %v1804 = vmul.f32 %v1699, %v1755
    %v1805 = vmul.f32 %v1700, %v1759
    %v1806 = vmul.f32 %v1701, %v1763
    %v1807 = vmul.f32 %v1702, %v1767
    %v1808 = vmul.f32 %v1703, %v1771
    %v1809 = vmul.f32 %v1704, %v1775
    %v1810 = vmul.f32 %v1705, %v1779
    %v1811 = vmul.f32 %v1706, %v1783
    %v1812 = vmul.f32 %v1707, %v1787
    %v1813 = vmul.f32 %v1708, %v1791
    %v1814 = vld [vmem:[#allocation2 + $0x18] sm:$0xff]
    %v1815 = vld [vmem:[#allocation2 + $0x20] sm:$0xff]
    %v1816 = vld [vmem:[#allocation2 + $0x28] sm:$0xff]
    %v1817 = vld [vmem:[#allocation2 + $0x30] sm:$0xff]
    %v1818 = vld [vmem:[#allocation2 + $0x38] sm:$0xff]
    %v1819 = vld [vmem:[#allocation2 + $0x40] sm:$0xff]
    %v1820 = vld [vmem:[#allocation2 + $0x48] sm:$0xff]
    %v1821 = vld [vmem:[#allocation2 + $0x50] sm:$0xff]
    %v1822 = vld [vmem:[#allocation2 + $0x58] sm:$0xff]
    %v1823 = vld [vmem:[#allocation2 + $0x60] sm:$0xff]
    %v1824 = vld [vmem:[#allocation2 + $0x68] sm:$0xff]
    %v1825 = vld [vmem:[#allocation2 + $0x70] sm:$0xff]
    %v1826 = vld [vmem:[#allocation2 + $0x78] sm:$0xff]
    %v1827 = vld [vmem:[#allocation2 + $0x80] sm:$0xff]
    %v1828 = vld [vmem:[#allocation2 + $0x88] sm:$0xff]
    %v1829 = vld [vmem:[#allocation2 + $0x90] sm:$0xff]
    %v1830 = vld [vmem:[#allocation2 + $0x98] sm:$0xff]
    %v1831 = vld [vmem:[#allocation2 + $0xa0] sm:$0xff]
    %v1832 = vld [vmem:[#allocation2 + $0xa8] sm:$0xff]
    %v1833 = vld [vmem:[#allocation2 + $0xb0] sm:$0xff]
    %v1834 = vld [vmem:[#allocation2 + $0xb8] sm:$0x3]
    %1835 = vset.pattern.permute.xlu0 6
    %1836 = vperm.xlu0 %1835, %v1037
    %v1837 = vpop.permute.xlu0 %1836
    %1839 = vset.pattern.permute.xlu0 6
    %1840 = vperm.xlu0 %1839, %v1038
    %v1841 = vpop.permute.xlu0 %1840
    %1843 = vset.pattern.permute.xlu0 6
    %1844 = vperm.xlu0 %1843, %v1039
    %v1845 = vpop.permute.xlu0 %1844
    %1847 = vset.pattern.permute.xlu0 6
    %1848 = vperm.xlu0 %1847, %v1040
    %v1849 = vpop.permute.xlu0 %1848
    %1851 = vset.pattern.permute.xlu0 6
    %1852 = vperm.xlu0 %1851, %v1041
    %v1853 = vpop.permute.xlu0 %1852
    %1855 = vset.pattern.permute.xlu0 6
    %1856 = vperm.xlu0 %1855, %v1042
    %v1857 = vpop.permute.xlu0 %1856
    %1859 = vset.pattern.permute.xlu0 6
    %1860 = vperm.xlu0 %1859, %v1043
    %v1861 = vpop.permute.xlu0 %1860
    %1863 = vset.pattern.permute.xlu0 6
    %1864 = vperm.xlu0 %1863, %v1044
    %v1865 = vpop.permute.xlu0 %1864
    %1867 = vset.pattern.permute.xlu0 6
    %1868 = vperm.xlu0 %1867, %v1045
    %v1869 = vpop.permute.xlu0 %1868
    %1871 = vset.pattern.permute.xlu0 6
    %1872 = vperm.xlu0 %1871, %v1046
    %v1873 = vpop.permute.xlu0 %1872
    %1875 = vset.pattern.permute.xlu0 6
    %1876 = vperm.xlu0 %1875, %v1047
    %v1877 = vpop.permute.xlu0 %1876
    %1879 = vset.pattern.permute.xlu0 6
    %1880 = vperm.xlu0 %1879, %v1048
    %v1881 = vpop.permute.xlu0 %1880
    %1883 = vset.pattern.permute.xlu0 6
    %1884 = vperm.xlu0 %1883, %v1049
    %v1885 = vpop.permute.xlu0 %1884
    %1887 = vset.pattern.permute.xlu0 6
    %1888 = vperm.xlu0 %1887, %v1050
    %v1889 = vpop.permute.xlu0 %1888
    %1891 = vset.pattern.permute.xlu0 6
    %1892 = vperm.xlu0 %1891, %v1051
    %v1893 = vpop.permute.xlu0 %1892
    %1895 = vset.pattern.permute.xlu0 6
    %1896 = vperm.xlu0 %1895, %v1052
    %v1897 = vpop.permute.xlu0 %1896
    %1899 = vset.pattern.permute.xlu0 6
    %1900 = vperm.xlu0 %1899, %v1053
    %v1901 = vpop.permute.xlu0 %1900
    %1903 = vset.pattern.permute.xlu0 6
    %1904 = vperm.xlu0 %1903, %v1054
    %v1905 = vpop.permute.xlu0 %1904
    %1907 = vset.pattern.permute.xlu0 6
    %1908 = vperm.xlu0 %1907, %v1055
    %v1909 = vpop.permute.xlu0 %1908
    %1911 = vset.pattern.permute.xlu0 6
    %1912 = vperm.xlu0 %1911, %v1056
    %v1913 = vpop.permute.xlu0 %1912
    %1915 = vset.pattern.permute.xlu0 6
    %1916 = vperm.xlu0 %1915, %v1057
    %v1917 = vpop.permute.xlu0 %1916
    %v1919 = vmul.f32 %v1814, %v1837
    %v1920 = vmul.f32 %v1815, %v1841
    %v1921 = vmul.f32 %v1816, %v1845
    %v1922 = vmul.f32 %v1817, %v1849
    %v1923 = vmul.f32 %v1818, %v1853
    %v1924 = vmul.f32 %v1819, %v1857
    %v1925 = vmul.f32 %v1820, %v1861
    %v1926 = vmul.f32 %v1821, %v1865
    %v1927 = vmul.f32 %v1822, %v1869
    %v1928 = vmul.f32 %v1823, %v1873
    %v1929 = vmul.f32 %v1824, %v1877
    %v1930 = vmul.f32 %v1825, %v1881
    %v1931 = vmul.f32 %v1826, %v1885
    %v1932 = vmul.f32 %v1827, %v1889
    %v1933 = vmul.f32 %v1828, %v1893
    %v1934 = vmul.f32 %v1829, %v1897
    %v1935 = vmul.f32 %v1830, %v1901
    %v1936 = vmul.f32 %v1831, %v1905
    %v1937 = vmul.f32 %v1832, %v1909
    %v1938 = vmul.f32 %v1833, %v1913
    %v1939 = vmul.f32 %v1834, %v1917
    %v1940 = vld [vmem:[#allocation2 + $0x19] sm:$0xff]
    %v1941 = vld [vmem:[#allocation2 + $0x21] sm:$0xff]
    %v1942 = vld [vmem:[#allocation2 + $0x29] sm:$0xff]
    %v1943 = vld [vmem:[#allocation2 + $0x31] sm:$0xff]
    %v1944 = vld [vmem:[#allocation2 + $0x39] sm:$0xff]
    %v1945 = vld [vmem:[#allocation2 + $0x41] sm:$0xff]
    %v1946 = vld [vmem:[#allocation2 + $0x49] sm:$0xff]
    %v1947 = vld [vmem:[#allocation2 + $0x51] sm:$0xff]
    %v1948 = vld [vmem:[#allocation2 + $0x59] sm:$0xff]
    %v1949 = vld [vmem:[#allocation2 + $0x61] sm:$0xff]
    %v1950 = vld [vmem:[#allocation2 + $0x69] sm:$0xff]
    %v1951 = vld [vmem:[#allocation2 + $0x71] sm:$0xff]
    %v1952 = vld [vmem:[#allocation2 + $0x79] sm:$0xff]
    %v1953 = vld [vmem:[#allocation2 + $0x81] sm:$0xff]
    %v1954 = vld [vmem:[#allocation2 + $0x89] sm:$0xff]
    %v1955 = vld [vmem:[#allocation2 + $0x91] sm:$0xff]
    %v1956 = vld [vmem:[#allocation2 + $0x99] sm:$0xff]
    %v1957 = vld [vmem:[#allocation2 + $0xa1] sm:$0xff]
    %v1958 = vld [vmem:[#allocation2 + $0xa9] sm:$0xff]
    %v1959 = vld [vmem:[#allocation2 + $0xb1] sm:$0xff]
    %v1960 = vld [vmem:[#allocation2 + $0xb9] sm:$0x3]
    %1961 = vset.pattern.permute.xlu0 7
    %1962 = vperm.xlu0 %1961, %v1037
    %v1963 = vpop.permute.xlu0 %1962
    %1965 = vset.pattern.permute.xlu0 7
    %1966 = vperm.xlu0 %1965, %v1038
    %v1967 = vpop.permute.xlu0 %1966
    %1969 = vset.pattern.permute.xlu0 7
    %1970 = vperm.xlu0 %1969, %v1039
    %v1971 = vpop.permute.xlu0 %1970
    %1973 = vset.pattern.permute.xlu0 7
    %1974 = vperm.xlu0 %1973, %v1040
    %v1975 = vpop.permute.xlu0 %1974
    %1977 = vset.pattern.permute.xlu0 7
    %1978 = vperm.xlu0 %1977, %v1041
    %v1979 = vpop.permute.xlu0 %1978
    %1981 = vset.pattern.permute.xlu0 7
    %1982 = vperm.xlu0 %1981, %v1042
    %v1983 = vpop.permute.xlu0 %1982
    %1985 = vset.pattern.permute.xlu0 7
    %1986 = vperm.xlu0 %1985, %v1043
    %v1987 = vpop.permute.xlu0 %1986
    %1989 = vset.pattern.permute.xlu0 7
    %1990 = vperm.xlu0 %1989, %v1044
    %v1991 = vpop.permute.xlu0 %1990
    %1993 = vset.pattern.permute.xlu0 7
    %1994 = vperm.xlu0 %1993, %v1045
    %v1995 = vpop.permute.xlu0 %1994
    %1997 = vset.pattern.permute.xlu0 7
    %1998 = vperm.xlu0 %1997, %v1046
    %v1999 = vpop.permute.xlu0 %1998
    %2001 = vset.pattern.permute.xlu0 7
    %2002 = vperm.xlu0 %2001, %v1047
    %v2003 = vpop.permute.xlu0 %2002
    %2005 = vset.pattern.permute.xlu0 7
    %2006 = vperm.xlu0 %2005, %v1048
    %v2007 = vpop.permute.xlu0 %2006
    %2009 = vset.pattern.permute.xlu0 7
    %2010 = vperm.xlu0 %2009, %v1049
    %v2011 = vpop.permute.xlu0 %2010
    %2013 = vset.pattern.permute.xlu0 7
    %2014 = vperm.xlu0 %2013, %v1050
    %v2015 = vpop.permute.xlu0 %2014
    %2017 = vset.pattern.permute.xlu0 7
    %2018 = vperm.xlu0 %2017, %v1051
    %v2019 = vpop.permute.xlu0 %2018
    %2021 = vset.pattern.permute.xlu0 7
    %2022 = vperm.xlu0 %2021, %v1052
    %v2023 = vpop.permute.xlu0 %2022
    %2025 = vset.pattern.permute.xlu0 7
    %2026 = vperm.xlu0 %2025, %v1053
    %v2027 = vpop.permute.xlu0 %2026
    %2029 = vset.pattern.permute.xlu0 7
    %2030 = vperm.xlu0 %2029, %v1054
    %v2031 = vpop.permute.xlu0 %2030
    %2033 = vset.pattern.permute.xlu0 7
    %2034 = vperm.xlu0 %2033, %v1055
    %v2035 = vpop.permute.xlu0 %2034
    %2037 = vset.pattern.permute.xlu0 7
    %2038 = vperm.xlu0 %2037, %v1056
    %v2039 = vpop.permute.xlu0 %2038
    %2041 = vset.pattern.permute.xlu0 7
    %2042 = vperm.xlu0 %2041, %v1057
    %v2043 = vpop.permute.xlu0 %2042
    %v2045 = vmul.f32 %v1940, %v1963
    %v2046 = vmul.f32 %v1941, %v1967
    %v2047 = vmul.f32 %v1942, %v1971
    %v2048 = vmul.f32 %v1943, %v1975
    %v2049 = vmul.f32 %v1944, %v1979
    %v2050 = vmul.f32 %v1945, %v1983
    %v2051 = vmul.f32 %v1946, %v1987
    %v2052 = vmul.f32 %v1947, %v1991
    %v2053 = vmul.f32 %v1948, %v1995
    %v2054 = vmul.f32 %v1949, %v1999
    %v2055 = vmul.f32 %v1950, %v2003
    %v2056 = vmul.f32 %v1951, %v2007
    %v2057 = vmul.f32 %v1952, %v2011
    %v2058 = vmul.f32 %v1953, %v2015
    %v2059 = vmul.f32 %v1954, %v2019
    %v2060 = vmul.f32 %v1955, %v2023
    %v2061 = vmul.f32 %v1956, %v2027
    %v2062 = vmul.f32 %v1957, %v2031
    %v2063 = vmul.f32 %v1958, %v2035
    %v2064 = vmul.f32 %v1959, %v2039
    %v2065 = vmul.f32 %v1960, %v2043
    %v2066 = vld [vmem:[#allocation2 + $0x1a] sm:$0xff]
    %v2067 = vld [vmem:[#allocation2 + $0x22] sm:$0xff]
    %v2068 = vld [vmem:[#allocation2 + $0x2a] sm:$0xff]
    %v2069 = vld [vmem:[#allocation2 + $0x32] sm:$0xff]
    %v2070 = vld [vmem:[#allocation2 + $0x3a] sm:$0xff]
    %v2071 = vld [vmem:[#allocation2 + $0x42] sm:$0xff]
    %v2072 = vld [vmem:[#allocation2 + $0x4a] sm:$0xff]
    %v2073 = vld [vmem:[#allocation2 + $0x52] sm:$0xff]
    %v2074 = vld [vmem:[#allocation2 + $0x5a] sm:$0xff]
    %v2075 = vld [vmem:[#allocation2 + $0x62] sm:$0xff]
    %v2076 = vld [vmem:[#allocation2 + $0x6a] sm:$0xff]
    %v2077 = vld [vmem:[#allocation2 + $0x72] sm:$0xff]
    %v2078 = vld [vmem:[#allocation2 + $0x7a] sm:$0xff]
    %v2079 = vld [vmem:[#allocation2 + $0x82] sm:$0xff]
    %v2080 = vld [vmem:[#allocation2 + $0x8a] sm:$0xff]
    %v2081 = vld [vmem:[#allocation2 + $0x92] sm:$0xff]
    %v2082 = vld [vmem:[#allocation2 + $0x9a] sm:$0xff]
    %v2083 = vld [vmem:[#allocation2 + $0xa2] sm:$0xff]
    %v2084 = vld [vmem:[#allocation2 + $0xaa] sm:$0xff]
    %v2085 = vld [vmem:[#allocation2 + $0xb2] sm:$0xff]
    %v2086 = vld [vmem:[#allocation2 + $0xba] sm:$0x3]
    %2087 = vset.pattern.permute.xlu0 8
    %2088 = vperm.xlu0 %2087, %v1037
    %v2089 = vpop.permute.xlu0 %2088
    %2091 = vset.pattern.permute.xlu0 8
    %2092 = vperm.xlu0 %2091, %v1038
    %v2093 = vpop.permute.xlu0 %2092
    %2095 = vset.pattern.permute.xlu0 8
    %2096 = vperm.xlu0 %2095, %v1039
    %v2097 = vpop.permute.xlu0 %2096
    %2099 = vset.pattern.permute.xlu0 8
    %2100 = vperm.xlu0 %2099, %v1040
    %v2101 = vpop.permute.xlu0 %2100
    %2103 = vset.pattern.permute.xlu0 8
    %2104 = vperm.xlu0 %2103, %v1041
    %v2105 = vpop.permute.xlu0 %2104
    %2107 = vset.pattern.permute.xlu0 8
    %2108 = vperm.xlu0 %2107, %v1042
    %v2109 = vpop.permute.xlu0 %2108
    %2111 = vset.pattern.permute.xlu0 8
    %2112 = vperm.xlu0 %2111, %v1043
    %v2113 = vpop.permute.xlu0 %2112
    %2115 = vset.pattern.permute.xlu0 8
    %2116 = vperm.xlu0 %2115, %v1044
    %v2117 = vpop.permute.xlu0 %2116
    %2119 = vset.pattern.permute.xlu0 8
    %2120 = vperm.xlu0 %2119, %v1045
    %v2121 = vpop.permute.xlu0 %2120
    %2123 = vset.pattern.permute.xlu0 8
    %2124 = vperm.xlu0 %2123, %v1046
    %v2125 = vpop.permute.xlu0 %2124
    %2127 = vset.pattern.permute.xlu0 8
    %2128 = vperm.xlu0 %2127, %v1047
    %v2129 = vpop.permute.xlu0 %2128
    %2131 = vset.pattern.permute.xlu0 8
    %2132 = vperm.xlu0 %2131, %v1048
    %v2133 = vpop.permute.xlu0 %2132
    %2135 = vset.pattern.permute.xlu0 8
    %2136 = vperm.xlu0 %2135, %v1049
    %v2137 = vpop.permute.xlu0 %2136
    %2139 = vset.pattern.permute.xlu0 8
    %2140 = vperm.xlu0 %2139, %v1050
    %v2141 = vpop.permute.xlu0 %2140
    %2143 = vset.pattern.permute.xlu0 8
    %2144 = vperm.xlu0 %2143, %v1051
    %v2145 = vpop.permute.xlu0 %2144
    %2147 = vset.pattern.permute.xlu0 8
    %2148 = vperm.xlu0 %2147, %v1052
    %v2149 = vpop.permute.xlu0 %2148
    %2151 = vset.pattern.permute.xlu0 8
    %2152 = vperm.xlu0 %2151, %v1053
    %v2153 = vpop.permute.xlu0 %2152
    %2155 = vset.pattern.permute.xlu0 8
    %2156 = vperm.xlu0 %2155, %v1054
    %v2157 = vpop.permute.xlu0 %2156
    %2159 = vset.pattern.permute.xlu0 8
    %2160 = vperm.xlu0 %2159, %v1055
    %v2161 = vpop.permute.xlu0 %2160
    %2163 = vset.pattern.permute.xlu0 8
    %2164 = vperm.xlu0 %2163, %v1056
    %v2165 = vpop.permute.xlu0 %2164
    %2167 = vset.pattern.permute.xlu0 8
    %2168 = vperm.xlu0 %2167, %v1057
    %v2169 = vpop.permute.xlu0 %2168
    %v2171 = vmul.f32 %v2066, %v2089
    %v2172 = vmul.f32 %v2067, %v2093
    %v2173 = vmul.f32 %v2068, %v2097
    %v2174 = vmul.f32 %v2069, %v2101
    %v2175 = vmul.f32 %v2070, %v2105
    %v2176 = vmul.f32 %v2071, %v2109
    %v2177 = vmul.f32 %v2072, %v2113
    %v2178 = vmul.f32 %v2073, %v2117
    %v2179 = vmul.f32 %v2074, %v2121
    %v2180 = vmul.f32 %v2075, %v2125
    %v2181 = vmul.f32 %v2076, %v2129
    %v2182 = vmul.f32 %v2077, %v2133
    %v2183 = vmul.f32 %v2078, %v2137
    %v2184 = vmul.f32 %v2079, %v2141
    %v2185 = vmul.f32 %v2080, %v2145
    %v2186 = vmul.f32 %v2081, %v2149
    %v2187 = vmul.f32 %v2082, %v2153
    %v2188 = vmul.f32 %v2083, %v2157
    %v2189 = vmul.f32 %v2084, %v2161
    %v2190 = vmul.f32 %v2085, %v2165
    %v2191 = vmul.f32 %v2086, %v2169
    %2213 = vrot.lane.b32.xlu0 %v1289, 18
    %v2214 = vpop.permute.xlu0 %2213
    %2215 = vrot.lane.b32.xlu0 %v1290, 18
    %v2216 = vpop.permute.xlu0 %2215
    %2217 = vrot.lane.b32.xlu0 %v1291, 18
    %v2218 = vpop.permute.xlu0 %2217
    %2219 = vrot.lane.b32.xlu0 %v1292, 18
    %v2220 = vpop.permute.xlu0 %2219
    %2221 = vrot.lane.b32.xlu0 %v1293, 18
    %v2222 = vpop.permute.xlu0 %2221
    %2223 = vrot.lane.b32.xlu0 %v1294, 18
    %v2224 = vpop.permute.xlu0 %2223
    %2225 = vrot.lane.b32.xlu0 %v1295, 18
    %v2226 = vpop.permute.xlu0 %2225
    %2227 = vrot.lane.b32.xlu0 %v1296, 18
    %v2228 = vpop.permute.xlu0 %2227
    %2229 = vrot.lane.b32.xlu0 %v1297, 18
    %v2230 = vpop.permute.xlu0 %2229
    %2231 = vrot.lane.b32.xlu0 %v1298, 18
    %v2232 = vpop.permute.xlu0 %2231
    %2233 = vrot.lane.b32.xlu0 %v1299, 18
    %v2234 = vpop.permute.xlu0 %2233
    %2235 = vrot.lane.b32.xlu0 %v1300, 18
    %v2236 = vpop.permute.xlu0 %2235
    %2237 = vrot.lane.b32.xlu0 %v1301, 18
    %v2238 = vpop.permute.xlu0 %2237
    %2239 = vrot.lane.b32.xlu0 %v1302, 18
    %v2240 = vpop.permute.xlu0 %2239
    %2241 = vrot.lane.b32.xlu0 %v1303, 18
    %v2242 = vpop.permute.xlu0 %2241
    %2243 = vrot.lane.b32.xlu0 %v1304, 18
    %v2244 = vpop.permute.xlu0 %2243
    %2245 = vrot.lane.b32.xlu0 %v1305, 18
    %v2246 = vpop.permute.xlu0 %2245
    %2247 = vrot.lane.b32.xlu0 %v1306, 18
    %v2248 = vpop.permute.xlu0 %2247
    %2249 = vrot.lane.b32.xlu0 %v1307, 18
    %v2250 = vpop.permute.xlu0 %2249
    %2251 = vrot.lane.b32.xlu0 %v1308, 18
    %v2252 = vpop.permute.xlu0 %2251
    %2253 = vrot.lane.b32.xlu0 %v1309, 18
    %v2254 = vpop.permute.xlu0 %2253
    %2297 = vrot.lane.b32.xlu0 %v1415, 36
    %v2298 = vpop.permute.xlu0 %2297
    %2299 = vrot.lane.b32.xlu0 %v1416, 36
    %v2300 = vpop.permute.xlu0 %2299
    %2301 = vrot.lane.b32.xlu0 %v1417, 36
    %v2302 = vpop.permute.xlu0 %2301
    %2303 = vrot.lane.b32.xlu0 %v1418, 36
    %v2304 = vpop.permute.xlu0 %2303
    %2305 = vrot.lane.b32.xlu0 %v1419, 36
    %v2306 = vpop.permute.xlu0 %2305
    %2307 = vrot.lane.b32.xlu0 %v1420, 36
    %v2308 = vpop.permute.xlu0 %2307
    %2309 = vrot.lane.b32.xlu0 %v1421, 36
    %v2310 = vpop.permute.xlu0 %2309
    %2311 = vrot.lane.b32.xlu0 %v1422, 36
    %v2312 = vpop.permute.xlu0 %2311
    %2313 = vrot.lane.b32.xlu0 %v1423, 36
    %v2314 = vpop.permute.xlu0 %2313
    %2315 = vrot.lane.b32.xlu0 %v1424, 36
    %v2316 = vpop.permute.xlu0 %2315
    %2317 = vrot.lane.b32.xlu0 %v1425, 36
    %v2318 = vpop.permute.xlu0 %2317
    %2319 = vrot.lane.b32.xlu0 %v1426, 36
    %v2320 = vpop.permute.xlu0 %2319
    %2321 = vrot.lane.b32.xlu0 %v1427, 36
    %v2322 = vpop.permute.xlu0 %2321
    %2323 = vrot.lane.b32.xlu0 %v1428, 36
    %v2324 = vpop.permute.xlu0 %2323
    %2325 = vrot.lane.b32.xlu0 %v1429, 36
    %v2326 = vpop.permute.xlu0 %2325
    %2327 = vrot.lane.b32.xlu0 %v1430, 36
    %v2328 = vpop.permute.xlu0 %2327
    %2329 = vrot.lane.b32.xlu0 %v1431, 36
    %v2330 = vpop.permute.xlu0 %2329
    %2331 = vrot.lane.b32.xlu0 %v1432, 36
    %v2332 = vpop.permute.xlu0 %2331
    %2333 = vrot.lane.b32.xlu0 %v1433, 36
    %v2334 = vpop.permute.xlu0 %2333
    %2335 = vrot.lane.b32.xlu0 %v1434, 36
    %v2336 = vpop.permute.xlu0 %2335
    %2337 = vrot.lane.b32.xlu0 %v1435, 36
    %v2338 = vpop.permute.xlu0 %2337
    %2381 = vrot.lane.b32.xlu0 %v1541, 54
    %v2382 = vpop.permute.xlu0 %2381
    %2383 = vrot.lane.b32.xlu0 %v1542, 54
    %v2384 = vpop.permute.xlu0 %2383
    %2385 = vrot.lane.b32.xlu0 %v1543, 54
    %v2386 = vpop.permute.xlu0 %2385
    %2387 = vrot.lane.b32.xlu0 %v1544, 54
    %v2388 = vpop.permute.xlu0 %2387
    %2389 = vrot.lane.b32.xlu0 %v1545, 54
    %v2390 = vpop.permute.xlu0 %2389
    %2391 = vrot.lane.b32.xlu0 %v1546, 54
    %v2392 = vpop.permute.xlu0 %2391
    %2393 = vrot.lane.b32.xlu0 %v1547, 54
    %v2394 = vpop.permute.xlu0 %2393
    %2395 = vrot.lane.b32.xlu0 %v1548, 54
    %v2396 = vpop.permute.xlu0 %2395
    %2397 = vrot.lane.b32.xlu0 %v1549, 54
    %v2398 = vpop.permute.xlu0 %2397
    %2399 = vrot.lane.b32.xlu0 %v1550, 54
    %v2400 = vpop.permute.xlu0 %2399
    %2401 = vrot.lane.b32.xlu0 %v1551, 54
    %v2402 = vpop.permute.xlu0 %2401
    %2403 = vrot.lane.b32.xlu0 %v1552, 54
    %v2404 = vpop.permute.xlu0 %2403
    %2405 = vrot.lane.b32.xlu0 %v1553, 54
    %v2406 = vpop.permute.xlu0 %2405
    %2407 = vrot.lane.b32.xlu0 %v1554, 54
    %v2408 = vpop.permute.xlu0 %2407
    %2409 = vrot.lane.b32.xlu0 %v1555, 54
    %v2410 = vpop.permute.xlu0 %2409
    %2411 = vrot.lane.b32.xlu0 %v1556, 54
    %v2412 = vpop.permute.xlu0 %2411
    %2413 = vrot.lane.b32.xlu0 %v1557, 54
    %v2414 = vpop.permute.xlu0 %2413
    %2415 = vrot.lane.b32.xlu0 %v1558, 54
    %v2416 = vpop.permute.xlu0 %2415
    %2417 = vrot.lane.b32.xlu0 %v1559, 54
    %v2418 = vpop.permute.xlu0 %2417
    %2419 = vrot.lane.b32.xlu0 %v1560, 54
    %v2420 = vpop.permute.xlu0 %2419
    %2421 = vrot.lane.b32.xlu0 %v1561, 54
    %v2422 = vpop.permute.xlu0 %2421
    %2465 = vrot.lane.b32.xlu0 %v1667, 72
    %v2466 = vpop.permute.xlu0 %2465
    %2467 = vrot.lane.b32.xlu0 %v1668, 72
    %v2468 = vpop.permute.xlu0 %2467
    %2469 = vrot.lane.b32.xlu0 %v1669, 72
    %v2470 = vpop.permute.xlu0 %2469
    %2471 = vrot.lane.b32.xlu0 %v1670, 72
    %v2472 = vpop.permute.xlu0 %2471
    %2473 = vrot.lane.b32.xlu0 %v1671, 72
    %v2474 = vpop.permute.xlu0 %2473
    %2475 = vrot.lane.b32.xlu0 %v1672, 72
    %v2476 = vpop.permute.xlu0 %2475
    %2477 = vrot.lane.b32.xlu0 %v1673, 72
    %v2478 = vpop.permute.xlu0 %2477
    %2479 = vrot.lane.b32.xlu0 %v1674, 72
    %v2480 = vpop.permute.xlu0 %2479
    %2481 = vrot.lane.b32.xlu0 %v1675, 72
    %v2482 = vpop.permute.xlu0 %2481
    %2483 = vrot.lane.b32.xlu0 %v1676, 72
    %v2484 = vpop.permute.xlu0 %2483
    %2485 = vrot.lane.b32.xlu0 %v1677, 72
    %v2486 = vpop.permute.xlu0 %2485
    %2487 = vrot.lane.b32.xlu0 %v1678, 72
    %v2488 = vpop.permute.xlu0 %2487
    %2489 = vrot.lane.b32.xlu0 %v1679, 72
    %v2490 = vpop.permute.xlu0 %2489
    %2491 = vrot.lane.b32.xlu0 %v1680, 72
    %v2492 = vpop.permute.xlu0 %2491
    %2493 = vrot.lane.b32.xlu0 %v1681, 72
    %v2494 = vpop.permute.xlu0 %2493
    %2495 = vrot.lane.b32.xlu0 %v1682, 72
    %v2496 = vpop.permute.xlu0 %2495
    %2497 = vrot.lane.b32.xlu0 %v1683, 72
    %v2498 = vpop.permute.xlu0 %2497
    %2499 = vrot.lane.b32.xlu0 %v1684, 72
    %v2500 = vpop.permute.xlu0 %2499
    %2501 = vrot.lane.b32.xlu0 %v1685, 72
    %v2502 = vpop.permute.xlu0 %2501
    %2503 = vrot.lane.b32.xlu0 %v1686, 72
    %v2504 = vpop.permute.xlu0 %2503
    %2505 = vrot.lane.b32.xlu0 %v1687, 72
    %v2506 = vpop.permute.xlu0 %2505
    %2549 = vrot.lane.b32.xlu0 %v1793, 90
    %v2550 = vpop.permute.xlu0 %2549
    %2551 = vrot.lane.b32.xlu0 %v1794, 90
    %v2552 = vpop.permute.xlu0 %2551
    %2553 = vrot.lane.b32.xlu0 %v1795, 90
    %v2554 = vpop.permute.xlu0 %2553
    %2555 = vrot.lane.b32.xlu0 %v1796, 90
    %v2556 = vpop.permute.xlu0 %2555
    %2557 = vrot.lane.b32.xlu0 %v1797, 90
    %v2558 = vpop.permute.xlu0 %2557
    %2559 = vrot.lane.b32.xlu0 %v1798, 90
    %v2560 = vpop.permute.xlu0 %2559
    %2561 = vrot.lane.b32.xlu0 %v1799, 90
    %v2562 = vpop.permute.xlu0 %2561
    %2563 = vrot.lane.b32.xlu0 %v1800, 90
    %v2564 = vpop.permute.xlu0 %2563
    %2565 = vrot.lane.b32.xlu0 %v1801, 90
    %v2566 = vpop.permute.xlu0 %2565
    %2567 = vrot.lane.b32.xlu0 %v1802, 90
    %v2568 = vpop.permute.xlu0 %2567
    %2569 = vrot.lane.b32.xlu0 %v1803, 90
    %v2570 = vpop.permute.xlu0 %2569
    %2571 = vrot.lane.b32.xlu0 %v1804, 90
    %v2572 = vpop.permute.xlu0 %2571
    %2573 = vrot.lane.b32.xlu0 %v1805, 90
    %v2574 = vpop.permute.xlu0 %2573
    %2575 = vrot.lane.b32.xlu0 %v1806, 90
    %v2576 = vpop.permute.xlu0 %2575
    %2577 = vrot.lane.b32.xlu0 %v1807, 90
    %v2578 = vpop.permute.xlu0 %2577
    %2579 = vrot.lane.b32.xlu0 %v1808, 90
    %v2580 = vpop.permute.xlu0 %2579
    %2581 = vrot.lane.b32.xlu0 %v1809, 90
    %v2582 = vpop.permute.xlu0 %2581
    %2583 = vrot.lane.b32.xlu0 %v1810, 90
    %v2584 = vpop.permute.xlu0 %2583
    %2585 = vrot.lane.b32.xlu0 %v1811, 90
    %v2586 = vpop.permute.xlu0 %2585
    %2587 = vrot.lane.b32.xlu0 %v1812, 90
    %v2588 = vpop.permute.xlu0 %2587
    %2589 = vrot.lane.b32.xlu0 %v1813, 90
    %v2590 = vpop.permute.xlu0 %2589
    %2633 = vrot.lane.b32.xlu0 %v1919, 108
    %v2634 = vpop.permute.xlu0 %2633
    %2635 = vrot.lane.b32.xlu0 %v1920, 108
    %v2636 = vpop.permute.xlu0 %2635
    %2637 = vrot.lane.b32.xlu0 %v1921, 108
    %v2638 = vpop.permute.xlu0 %2637
    %2639 = vrot.lane.b32.xlu0 %v1922, 108
    %v2640 = vpop.permute.xlu0 %2639
    %2641 = vrot.lane.b32.xlu0 %v1923, 108
    %v2642 = vpop.permute.xlu0 %2641
    %2643 = vrot.lane.b32.xlu0 %v1924, 108
    %v2644 = vpop.permute.xlu0 %2643
    %2645 = vrot.lane.b32.xlu0 %v1925, 108
    %v2646 = vpop.permute.xlu0 %2645
    %2647 = vrot.lane.b32.xlu0 %v1926, 108
    %v2648 = vpop.permute.xlu0 %2647
    %2649 = vrot.lane.b32.xlu0 %v1927, 108
    %v2650 = vpop.permute.xlu0 %2649
    %2651 = vrot.lane.b32.xlu0 %v1928, 108
    %v2652 = vpop.permute.xlu0 %2651
    %2653 = vrot.lane.b32.xlu0 %v1929, 108
    %v2654 = vpop.permute.xlu0 %2653
    %2655 = vrot.lane.b32.xlu0 %v1930, 108
    %v2656 = vpop.permute.xlu0 %2655
    %2657 = vrot.lane.b32.xlu0 %v1931, 108
    %v2658 = vpop.permute.xlu0 %2657
    %2659 = vrot.lane.b32.xlu0 %v1932, 108
    %v2660 = vpop.permute.xlu0 %2659
    %2661 = vrot.lane.b32.xlu0 %v1933, 108
    %v2662 = vpop.permute.xlu0 %2661
    %2663 = vrot.lane.b32.xlu0 %v1934, 108
    %v2664 = vpop.permute.xlu0 %2663
    %2665 = vrot.lane.b32.xlu0 %v1935, 108
    %v2666 = vpop.permute.xlu0 %2665
    %2667 = vrot.lane.b32.xlu0 %v1936, 108
    %v2668 = vpop.permute.xlu0 %2667
    %2669 = vrot.lane.b32.xlu0 %v1937, 108
    %v2670 = vpop.permute.xlu0 %2669
    %2671 = vrot.lane.b32.xlu0 %v1938, 108
    %v2672 = vpop.permute.xlu0 %2671
    %2673 = vrot.lane.b32.xlu0 %v1939, 108
    %v2674 = vpop.permute.xlu0 %2673
    %2717 = vrot.lane.b32.xlu0 %v2045, 126
    %v2718 = vpop.permute.xlu0 %2717
    %2719 = vrot.lane.b32.xlu0 %v2046, 126
    %v2720 = vpop.permute.xlu0 %2719
    %2721 = vrot.lane.b32.xlu0 %v2047, 126
    %v2722 = vpop.permute.xlu0 %2721
    %2723 = vrot.lane.b32.xlu0 %v2048, 126
    %v2724 = vpop.permute.xlu0 %2723
    %2725 = vrot.lane.b32.xlu0 %v2049, 126
    %v2726 = vpop.permute.xlu0 %2725
    %2727 = vrot.lane.b32.xlu0 %v2050, 126
    %v2728 = vpop.permute.xlu0 %2727
    %2729 = vrot.lane.b32.xlu0 %v2051, 126
    %v2730 = vpop.permute.xlu0 %2729
    %2731 = vrot.lane.b32.xlu0 %v2052, 126
    %v2732 = vpop.permute.xlu0 %2731
    %2733 = vrot.lane.b32.xlu0 %v2053, 126
    %v2734 = vpop.permute.xlu0 %2733
    %2735 = vrot.lane.b32.xlu0 %v2054, 126
    %v2736 = vpop.permute.xlu0 %2735
    %2737 = vrot.lane.b32.xlu0 %v2055, 126
    %v2738 = vpop.permute.xlu0 %2737
    %2739 = vrot.lane.b32.xlu0 %v2056, 126
    %v2740 = vpop.permute.xlu0 %2739
    %2741 = vrot.lane.b32.xlu0 %v2057, 126
    %v2742 = vpop.permute.xlu0 %2741
    %2743 = vrot.lane.b32.xlu0 %v2058, 126
    %v2744 = vpop.permute.xlu0 %2743
    %2745 = vrot.lane.b32.xlu0 %v2059, 126
    %v2746 = vpop.permute.xlu0 %2745
    %2747 = vrot.lane.b32.xlu0 %v2060, 126
    %v2748 = vpop.permute.xlu0 %2747
    %2749 = vrot.lane.b32.xlu0 %v2061, 126
    %v2750 = vpop.permute.xlu0 %2749
    %2751 = vrot.lane.b32.xlu0 %v2062, 126
    %v2752 = vpop.permute.xlu0 %2751
    %2753 = vrot.lane.b32.xlu0 %v2063, 126
    %v2754 = vpop.permute.xlu0 %2753
    %2755 = vrot.lane.b32.xlu0 %v2064, 126
    %v2756 = vpop.permute.xlu0 %2755
    %2757 = vrot.lane.b32.xlu0 %v2065, 126
    %v2758 = vpop.permute.xlu0 %2757
    %2801 = vrot.lane.b32.xlu0 %v2171, 16
    %v2802 = vpop.permute.xlu0 %2801
    %2803 = vrot.lane.b32.xlu0 %v2172, 16
    %v2804 = vpop.permute.xlu0 %2803
    %2805 = vrot.lane.b32.xlu0 %v2173, 16
    %v2806 = vpop.permute.xlu0 %2805
    %2807 = vrot.lane.b32.xlu0 %v2174, 16
    %v2808 = vpop.permute.xlu0 %2807
    %2809 = vrot.lane.b32.xlu0 %v2175, 16
    %v2810 = vpop.permute.xlu0 %2809
    %2811 = vrot.lane.b32.xlu0 %v2176, 16
    %v2812 = vpop.permute.xlu0 %2811
    %2813 = vrot.lane.b32.xlu0 %v2177, 16
    %v2814 = vpop.permute.xlu0 %2813
    %2815 = vrot.lane.b32.xlu0 %v2178, 16
    %v2816 = vpop.permute.xlu0 %2815
    %2817 = vrot.lane.b32.xlu0 %v2179, 16
    %v2818 = vpop.permute.xlu0 %2817
    %2819 = vrot.lane.b32.xlu0 %v2180, 16
    %v2820 = vpop.permute.xlu0 %2819
    %2821 = vrot.lane.b32.xlu0 %v2181, 16
    %v2822 = vpop.permute.xlu0 %2821
    %2823 = vrot.lane.b32.xlu0 %v2182, 16
    %v2824 = vpop.permute.xlu0 %2823
    %2825 = vrot.lane.b32.xlu0 %v2183, 16
    %v2826 = vpop.permute.xlu0 %2825
    %2827 = vrot.lane.b32.xlu0 %v2184, 16
    %v2828 = vpop.permute.xlu0 %2827
    %2829 = vrot.lane.b32.xlu0 %v2185, 16
    %v2830 = vpop.permute.xlu0 %2829
    %2831 = vrot.lane.b32.xlu0 %v2186, 16
    %v2832 = vpop.permute.xlu0 %2831
    %2833 = vrot.lane.b32.xlu0 %v2187, 16
    %v2834 = vpop.permute.xlu0 %2833
    %2835 = vrot.lane.b32.xlu0 %v2188, 16
    %v2836 = vpop.permute.xlu0 %2835
    %2837 = vrot.lane.b32.xlu0 %v2189, 16
    %v2838 = vpop.permute.xlu0 %2837
    %2839 = vrot.lane.b32.xlu0 %v2190, 16
    %v2840 = vpop.permute.xlu0 %2839
    %2841 = vrot.lane.b32.xlu0 %v2191, 16
    %v2842 = vpop.permute.xlu0 %2841
    %v2864 = vsel %vm379, %v1163, %v2214
    %v2865 = vsel %vm379, %v1164, %v2216
    %v2866 = vsel %vm379, %v1165, %v2218
    %v2867 = vsel %vm379, %v1166, %v2220
    %v2868 = vsel %vm379, %v1167, %v2222
    %v2869 = vsel %vm379, %v1168, %v2224
    %v2870 = vsel %vm379, %v1169, %v2226
    %v2871 = vsel %vm379, %v1170, %v2228
    %v2872 = vsel %vm379, %v1171, %v2230
    %v2873 = vsel %vm379, %v1172, %v2232
    %v2874 = vsel %vm379, %v1173, %v2234
    %v2875 = vsel %vm379, %v1174, %v2236
    %v2876 = vsel %vm379, %v1175, %v2238
    %v2877 = vsel %vm379, %v1176, %v2240
    %v2878 = vsel %vm379, %v1177, %v2242
    %v2879 = vsel %vm379, %v1178, %v2244
    %v2880 = vsel %vm379, %v1179, %v2246
    %v2881 = vsel %vm379, %v1180, %v2248
    %v2882 = vsel %vm379, %v1181, %v2250
    %v2883 = vsel %vm379, %v1182, %v2252
    %v2884 = vsel %vm379, %v1183, %v2254
    %v2885 = vsel %vm401, %v2864, %v2298
    %v2886 = vsel %vm401, %v2865, %v2300
    %v2887 = vsel %vm401, %v2866, %v2302
    %v2888 = vsel %vm401, %v2867, %v2304
    %v2889 = vsel %vm401, %v2868, %v2306
    %v2890 = vsel %vm401, %v2869, %v2308
    %v2891 = vsel %vm401, %v2870, %v2310
    %v2892 = vsel %vm401, %v2871, %v2312
    %v2893 = vsel %vm401, %v2872, %v2314
    %v2894 = vsel %vm401, %v2873, %v2316
    %v2895 = vsel %vm401, %v2874, %v2318
    %v2896 = vsel %vm401, %v2875, %v2320
    %v2897 = vsel %vm401, %v2876, %v2322
    %v2898 = vsel %vm401, %v2877, %v2324
    %v2899 = vsel %vm401, %v2878, %v2326
    %v2900 = vsel %vm401, %v2879, %v2328
    %v2901 = vsel %vm401, %v2880, %v2330
    %v2902 = vsel %vm401, %v2881, %v2332
    %v2903 = vsel %vm401, %v2882, %v2334
    %v2904 = vsel %vm401, %v2883, %v2336
    %v2905 = vsel %vm401, %v2884, %v2338
    %vm2906 = vcmask 441344
    %v2907 = vsel %vm2906, %v2885, %v2382
    %v2908 = vsel %vm2906, %v2886, %v2384
    %v2909 = vsel %vm2906, %v2887, %v2386
    %v2910 = vsel %vm2906, %v2888, %v2388
    %v2911 = vsel %vm2906, %v2889, %v2390
    %v2912 = vsel %vm2906, %v2890, %v2392
    %v2913 = vsel %vm2906, %v2891, %v2394
    %v2914 = vsel %vm2906, %v2892, %v2396
    %v2915 = vsel %vm2906, %v2893, %v2398
    %v2916 = vsel %vm2906, %v2894, %v2400
    %v2917 = vsel %vm2906, %v2895, %v2402
    %v2918 = vsel %vm2906, %v2896, %v2404
    %v2919 = vsel %vm2906, %v2897, %v2406
    %v2920 = vsel %vm2906, %v2898, %v2408
    %v2921 = vsel %vm2906, %v2899, %v2410
    %v2922 = vsel %vm2906, %v2900, %v2412
    %v2923 = vsel %vm2906, %v2901, %v2414
    %v2924 = vsel %vm2906, %v2902, %v2416
    %v2925 = vsel %vm2906, %v2903, %v2418
    %v2926 = vsel %vm2906, %v2904, %v2420
    %v2927 = vsel %vm2906, %v2905, %v2422
    %vm2928 = vcmask 588800
    %v2929 = vsel %vm2928, %v2907, %v2466
    %v2930 = vsel %vm2928, %v2908, %v2468
    %v2931 = vsel %vm2928, %v2909, %v2470
    %v2932 = vsel %vm2928, %v2910, %v2472
    %v2933 = vsel %vm2928, %v2911, %v2474
    %v2934 = vsel %vm2928, %v2912, %v2476
    %v2935 = vsel %vm2928, %v2913, %v2478
    %v2936 = vsel %vm2928, %v2914, %v2480
    %v2937 = vsel %vm2928, %v2915, %v2482
    %v2938 = vsel %vm2928, %v2916, %v2484
    %v2939 = vsel %vm2928, %v2917, %v2486
    %v2940 = vsel %vm2928, %v2918, %v2488
    %v2941 = vsel %vm2928, %v2919, %v2490
    %v2942 = vsel %vm2928, %v2920, %v2492
    %v2943 = vsel %vm2928, %v2921, %v2494
    %v2944 = vsel %vm2928, %v2922, %v2496
    %v2945 = vsel %vm2928, %v2923, %v2498
    %v2946 = vsel %vm2928, %v2924, %v2500
    %v2947 = vsel %vm2928, %v2925, %v2502
    %v2948 = vsel %vm2928, %v2926, %v2504
    %v2949 = vsel %vm2928, %v2927, %v2506
    %vm2950 = vcmask 736256
    %v2951 = vsel %vm2950, %v2929, %v2550
    %v2952 = vsel %vm2950, %v2930, %v2552
    %v2953 = vsel %vm2950, %v2931, %v2554
    %v2954 = vsel %vm2950, %v2932, %v2556
    %v2955 = vsel %vm2950, %v2933, %v2558
    %v2956 = vsel %vm2950, %v2934, %v2560
    %v2957 = vsel %vm2950, %v2935, %v2562
    %v2958 = vsel %vm2950, %v2936, %v2564
    %v2959 = vsel %vm2950, %v2937, %v2566
    %v2960 = vsel %vm2950, %v2938, %v2568
    %v2961 = vsel %vm2950, %v2939, %v2570
    %v2962 = vsel %vm2950, %v2940, %v2572
    %v2963 = vsel %vm2950, %v2941, %v2574
    %v2964 = vsel %vm2950, %v2942, %v2576
    %v2965 = vsel %vm2950, %v2943, %v2578
    %v2966 = vsel %vm2950, %v2944, %v2580
    %v2967 = vsel %vm2950, %v2945, %v2582
    %v2968 = vsel %vm2950, %v2946, %v2584
    %v2969 = vsel %vm2950, %v2947, %v2586
    %v2970 = vsel %vm2950, %v2948, %v2588
    %v2971 = vsel %vm2950, %v2949, %v2590
    %vm2972 = vcmask 883712
    %v2973 = vsel %vm2972, %v2951, %v2634
    %v2974 = vsel %vm2972, %v2952, %v2636
    %v2975 = vsel %vm2972, %v2953, %v2638
    %v2976 = vsel %vm2972, %v2954, %v2640
    %v2977 = vsel %vm2972, %v2955, %v2642
    %v2978 = vsel %vm2972, %v2956, %v2644
    %v2979 = vsel %vm2972, %v2957, %v2646
    %v2980 = vsel %vm2972, %v2958, %v2648
    %v2981 = vsel %vm2972, %v2959, %v2650
    %v2982 = vsel %vm2972, %v2960, %v2652
    %v2983 = vsel %vm2972, %v2961, %v2654
    %v2984 = vsel %vm2972, %v2962, %v2656
    %v2985 = vsel %vm2972, %v2963, %v2658
    %v2986 = vsel %vm2972, %v2964, %v2660
    %v2987 = vsel %vm2972, %v2965, %v2662
    %v2988 = vsel %vm2972, %v2966, %v2664
    %v2989 = vsel %vm2972, %v2967, %v2666
    %v2990 = vsel %vm2972, %v2968, %v2668
    %v2991 = vsel %vm2972, %v2969, %v2670
    %v2992 = vsel %vm2972, %v2970, %v2672
    %v2993 = vsel %vm2972, %v2971, %v2674
    %vm2994 = vcmask 1031168
    %v2995 = vsel %vm2994, %v2973, %v2718
    %v2996 = vsel %vm2994, %v2974, %v2720
    %v2997 = vsel %vm2994, %v2975, %v2722
    %v2998 = vsel %vm2994, %v2976, %v2724
    %v2999 = vsel %vm2994, %v2977, %v2726
    %v3000 = vsel %vm2994, %v2978, %v2728
    %v3001 = vsel %vm2994, %v2979, %v2730
    %v3002 = vsel %vm2994, %v2980, %v2732
    %v3003 = vsel %vm2994, %v2981, %v2734
    %v3004 = vsel %vm2994, %v2982, %v2736
    %v3005 = vsel %vm2994, %v2983, %v2738
    %v3006 = vsel %vm2994, %v2984, %v2740
    %v3007 = vsel %vm2994, %v2985, %v2742
    %v3008 = vsel %vm2994, %v2986, %v2744
    %v3009 = vsel %vm2994, %v2987, %v2746
    %v3010 = vsel %vm2994, %v2988, %v2748
    %v3011 = vsel %vm2994, %v2989, %v2750
    %v3012 = vsel %vm2994, %v2990, %v2752
    %v3013 = vsel %vm2994, %v2991, %v2754
    %v3014 = vsel %vm2994, %v2992, %v2756
    %v3015 = vsel %vm2994, %v2993, %v2758
    %vm3016 = vcmask 130048
    %v3017 = vsel %vm3016, %v2718, %v2802
    %v3018 = vsel %vm3016, %v2720, %v2804
    %v3019 = vsel %vm3016, %v2722, %v2806
    %v3020 = vsel %vm3016, %v2724, %v2808
    %v3021 = vsel %vm3016, %v2726, %v2810
    %v3022 = vsel %vm3016, %v2728, %v2812
    %v3023 = vsel %vm3016, %v2730, %v2814
    %v3024 = vsel %vm3016, %v2732, %v2816
    %v3025 = vsel %vm3016, %v2734, %v2818
    %v3026 = vsel %vm3016, %v2736, %v2820
    %v3027 = vsel %vm3016, %v2738, %v2822
    %v3028 = vsel %vm3016, %v2740, %v2824
    %v3029 = vsel %vm3016, %v2742, %v2826
    %v3030 = vsel %vm3016, %v2744, %v2828
    %v3031 = vsel %vm3016, %v2746, %v2830
    %v3032 = vsel %vm3016, %v2748, %v2832
    %v3033 = vsel %vm3016, %v2750, %v2834
    %v3034 = vsel %vm3016, %v2752, %v2836
    %v3035 = vsel %vm3016, %v2754, %v2838
    %v3036 = vsel %vm3016, %v2756, %v2840
    %v3037 = vsel %vm3016, %v2758, %v2842
    %v3038 = vld [vmem:[%s7] sm:$0xff]
    %v3039 = vld [vmem:[%s7 + $0x8] sm:$0xff]
    %v3040 = vld [vmem:[%s7 + $0x10] sm:$0xff]
    %v3041 = vld [vmem:[%s7 + $0x18] sm:$0xff]
    %v3042 = vld [vmem:[%s7 + $0x20] sm:$0xff]
    %v3043 = vld [vmem:[%s7 + $0x28] sm:$0xff]
    %v3044 = vld [vmem:[%s7 + $0x30] sm:$0xff]
    %v3045 = vld [vmem:[%s7 + $0x38] sm:$0xff]
    %v3046 = vld [vmem:[%s7 + $0x40] sm:$0xff]
    %v3047 = vld [vmem:[%s7 + $0x48] sm:$0xff]
    %v3048 = vld [vmem:[%s7 + $0x50] sm:$0xff]
    %v3049 = vld [vmem:[%s7 + $0x58] sm:$0xff]
    %v3050 = vld [vmem:[%s7 + $0x60] sm:$0xff]
    %v3051 = vld [vmem:[%s7 + $0x68] sm:$0xff]
    %v3052 = vld [vmem:[%s7 + $0x70] sm:$0xff]
    %v3053 = vld [vmem:[%s7 + $0x78] sm:$0xff]
    %v3054 = vld [vmem:[%s7 + $0x80] sm:$0xff]
    %v3055 = vld [vmem:[%s7 + $0x88] sm:$0xff]
    %v3056 = vld [vmem:[%s7 + $0x90] sm:$0xff]
    %v3057 = vld [vmem:[%s7 + $0x98] sm:$0xff]
    %v3058 = vld [vmem:[%s7 + $0xa0] sm:$0x3]
    %v3059 = vpack.c.bf16 %v2996, %v2995
    %v3060 = vpack.c.bf16 %v3018, %v3017
    %v3061 = vpack.c.bf16 %v2998, %v2997
    %v3062 = vpack.c.bf16 %v3020, %v3019
    %v3063 = vpack.c.bf16 %v3000, %v2999
    %v3064 = vpack.c.bf16 %v3022, %v3021
    %v3065 = vpack.c.bf16 %v3002, %v3001
    %v3066 = vpack.c.bf16 %v3024, %v3023
    %v3067 = vpack.c.bf16 %v3004, %v3003
    %v3068 = vpack.c.bf16 %v3026, %v3025
    %v3069 = vpack.c.bf16 %v3006, %v3005
    %v3070 = vpack.c.bf16 %v3028, %v3027
    %v3071 = vpack.c.bf16 %v3008, %v3007
    %v3072 = vpack.c.bf16 %v3030, %v3029
    %v3073 = vpack.c.bf16 %v3010, %v3009
    %v3074 = vpack.c.bf16 %v3032, %v3031
    %v3075 = vpack.c.bf16 %v3012, %v3011
    %v3076 = vpack.c.bf16 %v3034, %v3033
    %v3077 = vpack.c.bf16 %v3014, %v3013
    %v3078 = vpack.c.bf16 %v3036, %v3035
    %v3079 = vpack.c.bf16 %v3015, %v3015
    %v3080 = vpack.c.bf16 %v3037, %v3037
    %v3081 = vpack.c.bf16 %v3039, %v3038
    %v3082 = vpack.c.bf16 %v3041, %v3040
    %v3083 = vpack.c.bf16 %v3043, %v3042
    %v3084 = vpack.c.bf16 %v3045, %v3044
    %v3085 = vpack.c.bf16 %v3047, %v3046
    %v3086 = vpack.c.bf16 %v3049, %v3048
    %v3087 = vpack.c.bf16 %v3051, %v3050
    %v3088 = vpack.c.bf16 %v3053, %v3052
    %v3089 = vpack.c.bf16 %v3055, %v3054
    %v3090 = vpack.c.bf16 %v3057, %v3056
    %v3091 = vpack.c.bf16 %v3058, %v3058
    %v3092 = vld [vmem:[%s8] sm:$0x1]
    %v3094 = vlaneseq
    %v3095 = vshrl.u32 %v3094, 7
    %v3096 = vsub.s32 0, %v3095
    %v3097 = vrot.slane %v3092, %v3096
    %v3100 = vsel %vm629, %v3060, 0
    %v3103 = vsel %vm629, %v3062, 0
    %v3106 = vsel %vm629, %v3064, 0
    %v3109 = vsel %vm629, %v3066, 0
    %v3112 = vsel %vm629, %v3068, 0
    %v3115 = vsel %vm629, %v3070, 0
    %v3118 = vsel %vm629, %v3072, 0
    %v3121 = vsel %vm629, %v3074, 0
    %v3124 = vsel %vm629, %v3076, 0
    %v3127 = vsel %vm629, %v3078, 0
    %v3130 = vsel %vm629, %v3080, 0
    %vm3132 = vcmask 1040384
    %v3134 = vsel %vm3132, %v3091, 0
    %3136 = vmatprep.subr.bf16.mxu0 0
    %3137 = vmatpush1.bf16.msra.mxu0 %v3088
    %3138 = vmatprep.subr.bf16.mxu0 0
    %3139 = vmatpush1.bf16.msra.mxu0 %v3087
    %3140 = vmatprep.subr.bf16.mxu0 0
    %3141 = vmatpush1.bf16.msra.mxu0 %v3086
    %3142 = vmatprep.subr.bf16.mxu0 0
    %3143 = vmatpush1.bf16.msra.mxu0 %v3085
    %3144 = vmatprep.subr.bf16.mxu0 0
    %3145 = vmatpush1.bf16.msra.mxu0 %v3084
    %3146 = vmatprep.subr.bf16.mxu0 0
    %3147 = vmatpush1.bf16.msra.mxu0 %v3083
    %3148 = vmatprep.subr.bf16.mxu0 0
    %3149 = vmatpush1.bf16.msra.mxu0 %v3082
    %3150 = vmatprep.subr.bf16.mxu0 0
    %3151 = vmatpush1.bf16.msra.mxu0 %v3081
    %3152 = vmatprep.subr.bf16.mxu0 0
    %3153 = vmatpush2.bf16.msra.mxu0 0
    %3154 = vmatprep.subr.bf16.mxu0 0
    %3155 = vmatpush2.bf16.msra.mxu0 0
    %3156 = vmatprep.subr.bf16.mxu0 0
    %3157 = vmatpush2.bf16.msra.mxu0 0
    %3158 = vmatprep.subr.bf16.mxu0 0
    %3159 = vmatpush2.bf16.msra.mxu0 0
    %3160 = vmatprep.subr.bf16.mxu0 0
    %3161 = vmatpush2.bf16.msra.mxu0 0
    %3162 = vmatprep.subr.bf16.mxu0 0
    %3163 = vmatpush2.bf16.msra.mxu0 %v3134
    %3164 = vmatprep.subr.bf16.mxu0 0
    %3165 = vmatpush2.bf16.msra.mxu0 %v3090
    %3166 = vmatprep.subr.bf16.mxu0 0
    %3167 = vmatpush2.bf16.msra.mxu0 %v3089
    %3168 = vmatprep.mubr.bf16.mxu0 %v3100
    %3169 = vmatmul.mubr.bf16.gmra.mxu0 %v3059
    %v3170 = vpop.f32.mrf.mxu0
    %v3171 = vadd.f32 %v3097, %v3170
    %v3172 = vpop.f32.mrf.mxu0
    %v3173 = vpop.f32.mrf.mxu0
    %v3174 = vadd.f32 %v3097, %v3173
    %v3175 = vpop.f32.mrf.mxu0
    %3176 = vmatprep.mubr.bf16.mxu0 %v3103
    %3177 = vmatmul.mubr.bf16.gmra.mxu0 %v3061
    %v3178 = vpop.f32.mrf.mxu0
    %v3179 = vadd.f32 %v3097, %v3178
    %v3180 = vpop.f32.mrf.mxu0
    %v3181 = vpop.f32.mrf.mxu0
    %v3182 = vadd.f32 %v3097, %v3181
    %v3183 = vpop.f32.mrf.mxu0
    %3184 = vmatprep.mubr.bf16.mxu0 %v3106
    %3185 = vmatmul.mubr.bf16.gmra.mxu0 %v3063
    %v3186 = vpop.f32.mrf.mxu0
    %v3187 = vadd.f32 %v3097, %v3186
    %v3188 = vpop.f32.mrf.mxu0
    %v3189 = vpop.f32.mrf.mxu0
    %v3190 = vadd.f32 %v3097, %v3189
    %v3191 = vpop.f32.mrf.mxu0
    %3192 = vmatprep.mubr.bf16.mxu0 %v3109
    %3193 = vmatmul.mubr.bf16.gmra.mxu0 %v3065
    %v3194 = vpop.f32.mrf.mxu0
    %v3195 = vadd.f32 %v3097, %v3194
    %v3196 = vpop.f32.mrf.mxu0
    %v3197 = vpop.f32.mrf.mxu0
    %v3198 = vadd.f32 %v3097, %v3197
    %v3199 = vpop.f32.mrf.mxu0
    %3200 = vmatprep.mubr.bf16.mxu0 %v3112
    %3201 = vmatmul.mubr.bf16.gmra.mxu0 %v3067
    %v3202 = vpop.f32.mrf.mxu0
    %v3203 = vadd.f32 %v3097, %v3202
    %v3204 = vpop.f32.mrf.mxu0
    %v3205 = vpop.f32.mrf.mxu0
    %v3206 = vadd.f32 %v3097, %v3205
    %v3207 = vpop.f32.mrf.mxu0
    %3208 = vmatprep.mubr.bf16.mxu0 %v3115
    %3209 = vmatmul.mubr.bf16.gmra.mxu0 %v3069
    %v3210 = vpop.f32.mrf.mxu0
    %v3211 = vadd.f32 %v3097, %v3210
    %v3212 = vpop.f32.mrf.mxu0
    %v3213 = vpop.f32.mrf.mxu0
    %v3214 = vadd.f32 %v3097, %v3213
    %v3215 = vpop.f32.mrf.mxu0
    %3216 = vmatprep.mubr.bf16.mxu0 %v3118
    %3217 = vmatmul.mubr.bf16.gmra.mxu0 %v3071
    %v3218 = vpop.f32.mrf.mxu0
    %v3219 = vadd.f32 %v3097, %v3218
    %v3220 = vpop.f32.mrf.mxu0
    %v3221 = vpop.f32.mrf.mxu0
    %v3222 = vadd.f32 %v3097, %v3221
    %v3223 = vpop.f32.mrf.mxu0
    %3224 = vmatprep.mubr.bf16.mxu0 %v3121
    %3225 = vmatmul.mubr.bf16.gmra.mxu0 %v3073
    %v3226 = vpop.f32.mrf.mxu0
    %v3227 = vadd.f32 %v3097, %v3226
    %v3228 = vpop.f32.mrf.mxu0
    %v3229 = vpop.f32.mrf.mxu0
    %v3230 = vadd.f32 %v3097, %v3229
    %v3231 = vpop.f32.mrf.mxu0
    %3232 = vmatprep.mubr.bf16.mxu0 %v3124
    %3233 = vmatmul.mubr.bf16.gmra.mxu0 %v3075
    %v3234 = vpop.f32.mrf.mxu0
    %v3235 = vadd.f32 %v3097, %v3234
    %v3236 = vpop.f32.mrf.mxu0
    %v3237 = vpop.f32.mrf.mxu0
    %v3238 = vadd.f32 %v3097, %v3237
    %v3239 = vpop.f32.mrf.mxu0
    %3240 = vmatprep.mubr.bf16.mxu0 %v3127
    %3241 = vmatmul.mubr.bf16.gmra.mxu0 %v3077
    %v3242 = vpop.f32.mrf.mxu0
    %v3243 = vadd.f32 %v3097, %v3242
    %v3244 = vpop.f32.mrf.mxu0
    %v3245 = vpop.f32.mrf.mxu0
    %v3246 = vadd.f32 %v3097, %v3245
    %v3247 = vpop.f32.mrf.mxu0
    %3248 = vmatprep.mubr.bf16.mxu0 %v3130
    %3249 = vmatmul.mubr.bf16.gmra.mxu0 %v3079
    %v3250 = vpop.f32.mrf.mxu0
    %v3251 = vadd.f32 %v3097, %v3250
    %v3252 = vpop.f32.mrf.mxu0
    %v3253 = vpop.f32.mrf.mxu0
    %v3254 = vpop.f32.mrf.mxu0
    %3255 = vdwg.mxu0
    %v3256 = vld [vmem:[%s9] sm:$0x1]
    %v3257 = vld [vmem:[%s10] sm:$0x1]
    %v3258 = vmul.f32 %v3171, %v3171
    %v3259 = vmul.f32 %v3174, %v3174
    %v3260 = vmul.f32 %v3179, %v3179
    %v3261 = vmul.f32 %v3182, %v3182
    %v3262 = vmul.f32 %v3187, %v3187
    %v3263 = vmul.f32 %v3190, %v3190
    %v3264 = vmul.f32 %v3195, %v3195
    %v3265 = vmul.f32 %v3198, %v3198
    %v3266 = vmul.f32 %v3203, %v3203
    %v3267 = vmul.f32 %v3206, %v3206
    %v3268 = vmul.f32 %v3211, %v3211
    %v3269 = vmul.f32 %v3214, %v3214
    %v3270 = vmul.f32 %v3219, %v3219
    %v3271 = vmul.f32 %v3222, %v3222
    %v3272 = vmul.f32 %v3227, %v3227
    %v3273 = vmul.f32 %v3230, %v3230
    %v3274 = vmul.f32 %v3235, %v3235
    %v3275 = vmul.f32 %v3238, %v3238
    %v3276 = vmul.f32 %v3243, %v3243
    %v3277 = vmul.f32 %v3246, %v3246
    %v3278 = vmul.f32 %v3251, %v3251
    %3300 = vrot.lane.b32.xlu0 %v3258, 36
    %v3301 = vpop.permute.xlu0 %3300
    %3302 = vrot.lane.b32.xlu0 %v3259, 36
    %v3303 = vpop.permute.xlu0 %3302
    %3304 = vrot.lane.b32.xlu0 %v3260, 36
    %v3305 = vpop.permute.xlu0 %3304
    %3306 = vrot.lane.b32.xlu0 %v3261, 36
    %v3307 = vpop.permute.xlu0 %3306
    %3308 = vrot.lane.b32.xlu0 %v3262, 36
    %v3309 = vpop.permute.xlu0 %3308
    %3310 = vrot.lane.b32.xlu0 %v3263, 36
    %v3311 = vpop.permute.xlu0 %3310
    %3312 = vrot.lane.b32.xlu0 %v3264, 36
    %v3313 = vpop.permute.xlu0 %3312
    %3314 = vrot.lane.b32.xlu0 %v3265, 36
    %v3315 = vpop.permute.xlu0 %3314
    %3316 = vrot.lane.b32.xlu0 %v3266, 36
    %v3317 = vpop.permute.xlu0 %3316
    %3318 = vrot.lane.b32.xlu0 %v3267, 36
    %v3319 = vpop.permute.xlu0 %3318
    %3320 = vrot.lane.b32.xlu0 %v3268, 36
    %v3321 = vpop.permute.xlu0 %3320
    %3322 = vrot.lane.b32.xlu0 %v3269, 36
    %v3323 = vpop.permute.xlu0 %3322
    %3324 = vrot.lane.b32.xlu0 %v3270, 36
    %v3325 = vpop.permute.xlu0 %3324
    %3326 = vrot.lane.b32.xlu0 %v3271, 36
    %v3327 = vpop.permute.xlu0 %3326
    %3328 = vrot.lane.b32.xlu0 %v3272, 36
    %v3329 = vpop.permute.xlu0 %3328
    %3330 = vrot.lane.b32.xlu0 %v3273, 36
    %v3331 = vpop.permute.xlu0 %3330
    %3332 = vrot.lane.b32.xlu0 %v3274, 36
    %v3333 = vpop.permute.xlu0 %3332
    %3334 = vrot.lane.b32.xlu0 %v3275, 36
    %v3335 = vpop.permute.xlu0 %3334
    %3336 = vrot.lane.b32.xlu0 %v3276, 36
    %v3337 = vpop.permute.xlu0 %3336
    %3338 = vrot.lane.b32.xlu0 %v3277, 36
    %v3339 = vpop.permute.xlu0 %3338
    %3340 = vrot.lane.b32.xlu0 %v3278, 36
    %v3341 = vpop.permute.xlu0 %3340
    %v3363 = vsel %vm401, %v3171, %v3301
    %v3364 = vsel %vm401, %v3174, %v3303
    %v3365 = vsel %vm401, %v3179, %v3305
    %v3366 = vsel %vm401, %v3182, %v3307
    %v3367 = vsel %vm401, %v3187, %v3309
    %v3368 = vsel %vm401, %v3190, %v3311
    %v3369 = vsel %vm401, %v3195, %v3313
    %v3370 = vsel %vm401, %v3198, %v3315
    %v3371 = vsel %vm401, %v3203, %v3317
    %v3372 = vsel %vm401, %v3206, %v3319
    %v3373 = vsel %vm401, %v3211, %v3321
    %v3374 = vsel %vm401, %v3214, %v3323
    %v3375 = vsel %vm401, %v3219, %v3325
    %v3376 = vsel %vm401, %v3222, %v3327
    %v3377 = vsel %vm401, %v3227, %v3329
    %v3378 = vsel %vm401, %v3230, %v3331
    %v3379 = vsel %vm401, %v3235, %v3333
    %v3380 = vsel %vm401, %v3238, %v3335
    %v3381 = vsel %vm401, %v3243, %v3337
    %v3382 = vsel %vm401, %v3246, %v3339
    %v3383 = vsel %vm401, %v3251, %v3341
    %v3384 = vsel %vm2928, %v3363, 0.0
    %v3385 = vsel %vm2928, %v3364, 0.0
    %v3386 = vadd.f32 %v3384, %v3385
    %v3387 = vsel %vm2928, %v3365, 0.0
    %v3388 = vadd.f32 %v3386, %v3387
    %v3389 = vsel %vm2928, %v3366, 0.0
    %v3390 = vadd.f32 %v3388, %v3389
    %v3391 = vsel %vm2928, %v3367, 0.0
    %v3392 = vadd.f32 %v3390, %v3391
    %v3393 = vsel %vm2928, %v3368, 0.0
    %v3394 = vadd.f32 %v3392, %v3393
    %v3395 = vsel %vm2928, %v3369, 0.0
    %v3396 = vadd.f32 %v3394, %v3395
    %v3397 = vsel %vm2928, %v3370, 0.0
    %v3398 = vadd.f32 %v3396, %v3397
    %v3399 = vsel %vm2928, %v3371, 0.0
    %v3400 = vadd.f32 %v3398, %v3399
    %v3401 = vsel %vm2928, %v3372, 0.0
    %v3402 = vadd.f32 %v3400, %v3401
    %v3403 = vsel %vm2928, %v3373, 0.0
    %v3404 = vadd.f32 %v3402, %v3403
    %v3405 = vsel %vm2928, %v3374, 0.0
    %v3406 = vadd.f32 %v3404, %v3405
    %v3407 = vsel %vm2928, %v3375, 0.0
    %v3408 = vadd.f32 %v3406, %v3407
    %v3409 = vsel %vm2928, %v3376, 0.0
    %v3410 = vadd.f32 %v3408, %v3409
    %v3411 = vsel %vm2928, %v3377, 0.0
    %v3412 = vadd.f32 %v3410, %v3411
    %v3413 = vsel %vm2928, %v3378, 0.0
    %v3414 = vadd.f32 %v3412, %v3413
    %v3415 = vsel %vm2928, %v3379, 0.0
    %v3416 = vadd.f32 %v3414, %v3415
    %v3417 = vsel %vm2928, %v3380, 0.0
    %v3418 = vadd.f32 %v3416, %v3417
    %v3419 = vsel %vm2928, %v3381, 0.0
    %v3420 = vadd.f32 %v3418, %v3419
    %v3421 = vsel %vm2928, %v3382, 0.0
    %v3422 = vadd.f32 %v3420, %v3421
    %vm3423 = vcmask 582656
    %v3424 = vsel %vm3423, %v3383, 0.0
    %v3425 = vadd.f32 %v3422, %v3424
    %v3426 = vrot.slane %v3425, 4
    %v3427 = vadd.f32 %v3425, %v3426
    %v3428 = vrot.slane %v3427, 2
    %v3429 = vadd.f32 %v3427, %v3428
    %v3430 = vrot.slane %v3429, 1
    %v3431 = vadd.f32 %v3429, %v3430
    %v3432 = vmul.f32 %v3431, 0.0061728396
    %v3433 = vmul.f32 %v3432, %v3432
    %3435 = vrot.lane.b32.xlu0 %v3433, 36
    %v3436 = vpop.permute.xlu0 %3435
    %v3438 = vsub.f32 %v3432, %v3436
    %v3439 = vadd.f32 %v3438, 1e-05
    %v3440 = vrsqrt.pop %v3439
    %v3443 = vunpack.c.l.s4 1966171168
    %v3444 = vunpack.c.0.s8 %v3443
    %v3445 = vlaneseq
    %v3446 = vshrl.u32 %v3445, 7
    %v3447 = vsub.s32 %v3444, %v3446
    %v3448 = vrot.slane %v3440, %v3447
    %v3450 = vunpack.c.l.s4 1966171168
    %v3451 = vunpack.c.0.s8 %v3450
    %v3452 = vlaneseq
    %v3453 = vshrl.u32 %v3452, 7
    %v3454 = vsub.s32 %v3451, %v3453
    %v3455 = vrot.slane %v3448, %v3454
    %3456 = vrot.lane.b32.xlu0 %v3455, 92
    %v3457 = vpop.permute.xlu0 %3456
    %v3459 = vmul.f32 %v3256, %v3457
    %v3460 = vmul.f32 %v3432, %v3459
    %v3461 = vsub.f32 %v3257, %v3460
    %v3463 = vlaneseq
    %v3464 = vshrl.u32 %v3463, 7
    %v3465 = vsub.s32 0, %v3464
    %v3466 = vrot.slane %v3459, %v3465
    %v3468 = vmul.f32 %v3171, %v3466
    %v3469 = vmul.f32 %v3174, %v3466
    %v3470 = vmul.f32 %v3179, %v3466
    %v3471 = vmul.f32 %v3182, %v3466
    %v3472 = vmul.f32 %v3187, %v3466
    %v3473 = vmul.f32 %v3190, %v3466
    %v3474 = vmul.f32 %v3195, %v3466
    %v3475 = vmul.f32 %v3198, %v3466
    %v3476 = vmul.f32 %v3203, %v3466
    %v3477 = vmul.f32 %v3206, %v3466
    %v3478 = vmul.f32 %v3211, %v3466
    %v3479 = vmul.f32 %v3214, %v3466
    %v3480 = vmul.f32 %v3219, %v3466
    %v3481 = vmul.f32 %v3222, %v3466
    %v3482 = vmul.f32 %v3227, %v3466
    %v3483 = vmul.f32 %v3230, %v3466
    %v3484 = vmul.f32 %v3235, %v3466
    %v3485 = vmul.f32 %v3238, %v3466
    %v3486 = vmul.f32 %v3243, %v3466
    %v3487 = vmul.f32 %v3246, %v3466
    %v3488 = vmul.f32 %v3251, %v3466
    %v3490 = vlaneseq
    %v3491 = vshrl.u32 %v3490, 7
    %v3492 = vsub.s32 0, %v3491
    %v3493 = vrot.slane %v3461, %v3492
    %v3495 = vadd.f32 %v3468, %v3493
    %v3496 = vadd.f32 %v3469, %v3493
    %v3497 = vadd.f32 %v3470, %v3493
    %v3498 = vadd.f32 %v3471, %v3493
    %v3499 = vadd.f32 %v3472, %v3493
    %v3500 = vadd.f32 %v3473, %v3493
    %v3501 = vadd.f32 %v3474, %v3493
    %v3502 = vadd.f32 %v3475, %v3493
    %v3503 = vadd.f32 %v3476, %v3493
    %v3504 = vadd.f32 %v3477, %v3493
    %v3505 = vadd.f32 %v3478, %v3493
    %v3506 = vadd.f32 %v3479, %v3493
    %v3507 = vadd.f32 %v3480, %v3493
    %v3508 = vadd.f32 %v3481, %v3493
    %v3509 = vadd.f32 %v3482, %v3493
    %v3510 = vadd.f32 %v3483, %v3493
    %v3511 = vadd.f32 %v3484, %v3493
    %v3512 = vadd.f32 %v3485, %v3493
    %v3513 = vadd.f32 %v3486, %v3493
    %v3514 = vadd.f32 %v3487, %v3493
    %v3515 = vadd.f32 %v3488, %v3493
    %vm3516 = vcmp.ge.f32.partialorder %v3495, 0.0
    %vm3517 = vcmp.ge.f32.partialorder %v3496, 0.0
    %vm3518 = vcmp.ge.f32.partialorder %v3497, 0.0
    %vm3519 = vcmp.ge.f32.partialorder %v3498, 0.0
    %vm3520 = vcmp.ge.f32.partialorder %v3499, 0.0
    %vm3521 = vcmp.ge.f32.partialorder %v3500, 0.0
    %vm3522 = vcmp.ge.f32.partialorder %v3501, 0.0
    %vm3523 = vcmp.ge.f32.partialorder %v3502, 0.0
    %vm3524 = vcmp.ge.f32.partialorder %v3503, 0.0
    %vm3525 = vcmp.ge.f32.partialorder %v3504, 0.0
    %vm3526 = vcmp.ge.f32.partialorder %v3505, 0.0
    %vm3527 = vcmp.ge.f32.partialorder %v3506, 0.0
    %vm3528 = vcmp.ge.f32.partialorder %v3507, 0.0
    %vm3529 = vcmp.ge.f32.partialorder %v3508, 0.0
    %vm3530 = vcmp.ge.f32.partialorder %v3509, 0.0
    %vm3531 = vcmp.ge.f32.partialorder %v3510, 0.0
    %vm3532 = vcmp.ge.f32.partialorder %v3511, 0.0
    %vm3533 = vcmp.ge.f32.partialorder %v3512, 0.0
    %vm3534 = vcmp.ge.f32.partialorder %v3513, 0.0
    %vm3535 = vcmp.ge.f32.partialorder %v3514, 0.0
    %vm3536 = vcmp.ge.f32.partialorder %v3515, 0.0
    %v3537 = vmul.f32 %v3495, 0.1
    %v3538 = vmul.f32 %v3496, 0.1
    %v3539 = vmul.f32 %v3497, 0.1
    %v3540 = vmul.f32 %v3498, 0.1
    %v3541 = vmul.f32 %v3499, 0.1
    %v3542 = vmul.f32 %v3500, 0.1
    %v3543 = vmul.f32 %v3501, 0.1
    %v3544 = vmul.f32 %v3502, 0.1
    %v3545 = vmul.f32 %v3503, 0.1
    %v3546 = vmul.f32 %v3504, 0.1
    %v3547 = vmul.f32 %v3505, 0.1
    %v3548 = vmul.f32 %v3506, 0.1
    %v3549 = vmul.f32 %v3507, 0.1
    %v3550 = vmul.f32 %v3508, 0.1
    %v3551 = vmul.f32 %v3509, 0.1
    %v3552 = vmul.f32 %v3510, 0.1
    %v3553 = vmul.f32 %v3511, 0.1
    %v3554 = vmul.f32 %v3512, 0.1
    %v3555 = vmul.f32 %v3513, 0.1
    %v3556 = vmul.f32 %v3514, 0.1
    %v3557 = vmul.f32 %v3515, 0.1
    %v3558 = vsel %vm3516, %v3495, %v3537
    %v3559 = vsel %vm3517, %v3496, %v3538
    %v3560 = vsel %vm3518, %v3497, %v3539
    %v3561 = vsel %vm3519, %v3498, %v3540
    %v3562 = vsel %vm3520, %v3499, %v3541
    %v3563 = vsel %vm3521, %v3500, %v3542
    %v3564 = vsel %vm3522, %v3501, %v3543
    %v3565 = vsel %vm3523, %v3502, %v3544
    %v3566 = vsel %vm3524, %v3503, %v3545
    %v3567 = vsel %vm3525, %v3504, %v3546
    %v3568 = vsel %vm3526, %v3505, %v3547
    %v3569 = vsel %vm3527, %v3506, %v3548
    %v3570 = vsel %vm3528, %v3507, %v3549
    %v3571 = vsel %vm3529, %v3508, %v3550
    %v3572 = vsel %vm3530, %v3509, %v3551
    %v3573 = vsel %vm3531, %v3510, %v3552
    %v3574 = vsel %vm3532, %v3511, %v3553
    %v3575 = vsel %vm3533, %v3512, %v3554
    %v3576 = vsel %vm3534, %v3513, %v3555
    %v3577 = vsel %vm3535, %v3514, %v3556
    %v3578 = vsel %vm3536, %v3515, %v3557
    %v3579 = vld [vmem:[%s16] sm:$0xff]
    %v3580 = vld [vmem:[%s16 + $0x8] sm:$0xff]
    %v3581 = vld [vmem:[%s16 + $0x10] sm:$0x3]
    %v3582 = vpack.c.bf16 %v577, %v576
    %v3583 = vpack.c.bf16 %v579, %v578
    %v3584 = vpack.c.bf16 %v581, %v580
    %v3585 = vpack.c.bf16 %v583, %v582
    %v3586 = vpack.c.bf16 %v585, %v584
    %v3587 = vpack.c.bf16 %v587, %v586
    %v3588 = vpack.c.bf16 %v589, %v588
    %v3589 = vpack.c.bf16 %v591, %v590
    %v3590 = vpack.c.bf16 %v593, %v592
    %v3591 = vpack.c.bf16 %v595, %v594
    %v3592 = vpack.c.bf16 %v596, %v596
    %v3593 = vpack.c.bf16 %v3580, %v3579
    %v3594 = vpack.c.bf16 %v3581, %v3581
    %v3595 = vld [vmem:[%s17] sm:$0x1]
    %v3597 = vlaneseq
    %v3598 = vshrl.u32 %v3597, 7
    %v3599 = vsub.s32 0, %v3598
    %v3600 = vrot.slane %v3595, %v3599
    %v3603 = vsel %vm379, %v3582, 0
    %v3606 = vsel %vm379, %v3583, 0
    %v3609 = vsel %vm379, %v3584, 0
    %v3612 = vsel %vm379, %v3585, 0
    %v3615 = vsel %vm379, %v3586, 0
    %v3618 = vsel %vm379, %v3587, 0
    %v3621 = vsel %vm379, %v3588, 0
    %v3624 = vsel %vm379, %v3589, 0
    %v3627 = vsel %vm379, %v3590, 0
    %v3630 = vsel %vm379, %v3591, 0
    %v3633 = vsel %vm379, %v3592, 0
    %v3636 = vsel %vm3132, %v3594, 0
    %3638 = vmatprep.subr.bf16.mxu0 0
    %3639 = vmatpush1.bf16.msra.mxu0 0
    %3640 = vmatprep.subr.bf16.mxu0 0
    %3641 = vmatpush1.bf16.msra.mxu0 0
    %3642 = vmatprep.subr.bf16.mxu0 0
    %3643 = vmatpush1.bf16.msra.mxu0 0
    %3644 = vmatprep.subr.bf16.mxu0 0
    %3645 = vmatpush1.bf16.msra.mxu0 0
    %3646 = vmatprep.subr.bf16.mxu0 0
    %3647 = vmatpush1.bf16.msra.mxu0 0
    %3648 = vmatprep.subr.bf16.mxu0 0
    %3649 = vmatpush1.bf16.msra.mxu0 0
    %3650 = vmatprep.subr.bf16.mxu0 0
    %3651 = vmatpush1.bf16.msra.mxu0 %v3636
    %3652 = vmatprep.subr.bf16.mxu0 0
    %3653 = vmatpush1.bf16.msra.mxu0 %v3593
    %3654 = vmatprep.subr.bf16.mxu0 0
    %3655 = vmatpush2.bf16.msra.mxu0 0
    %3656 = vmatprep.subr.bf16.mxu0 0
    %3657 = vmatpush2.bf16.msra.mxu0 0
    %3658 = vmatprep.subr.bf16.mxu0 0
    %3659 = vmatpush2.bf16.msra.mxu0 0
    %3660 = vmatprep.subr.bf16.mxu0 0
    %3661 = vmatpush2.bf16.msra.mxu0 0
    %3662 = vmatprep.subr.bf16.mxu0 0
    %3663 = vmatpush2.bf16.msra.mxu0 0
    %3664 = vmatprep.subr.bf16.mxu0 0
    %3665 = vmatpush2.bf16.msra.mxu0 0
    %3666 = vmatprep.subr.bf16.mxu0 0
    %3667 = vmatpush2.bf16.msra.mxu0 0
    %3668 = vmatprep.subr.bf16.mxu0 0
    %3669 = vmatpush2.bf16.msra.mxu0 0
    %3670 = vmatprep.mubr.bf16.mxu0 0
    %3671 = vmatmul.mubr.bf16.gmra.mxu0 %v3603
    %v3672 = vpop.f32.mrf.mxu0
    %v3673 = vadd.f32 %v3600, %v3672
    %v3674 = vpop.f32.mrf.mxu0
    %v3675 = vpop.f32.mrf.mxu0
    %v3676 = vadd.f32 %v3600, %v3675
    %v3677 = vpop.f32.mrf.mxu0
    %3678 = vmatprep.mubr.bf16.mxu0 0
    %3679 = vmatmul.mubr.bf16.gmra.mxu0 %v3606
    %v3680 = vpop.f32.mrf.mxu0
    %v3681 = vadd.f32 %v3600, %v3680
    %v3682 = vpop.f32.mrf.mxu0
    %v3683 = vpop.f32.mrf.mxu0
    %v3684 = vadd.f32 %v3600, %v3683
    %v3685 = vpop.f32.mrf.mxu0
    %3686 = vmatprep.mubr.bf16.mxu0 0
    %3687 = vmatmul.mubr.bf16.gmra.mxu0 %v3609
    %v3688 = vpop.f32.mrf.mxu0
    %v3689 = vadd.f32 %v3600, %v3688
    %v3690 = vpop.f32.mrf.mxu0
    %v3691 = vpop.f32.mrf.mxu0
    %v3692 = vadd.f32 %v3600, %v3691
    %v3693 = vpop.f32.mrf.mxu0
    %3694 = vmatprep.mubr.bf16.mxu0 0
    %3695 = vmatmul.mubr.bf16.gmra.mxu0 %v3612
    %v3696 = vpop.f32.mrf.mxu0
    %v3697 = vadd.f32 %v3600, %v3696
    %v3698 = vpop.f32.mrf.mxu0
    %v3699 = vpop.f32.mrf.mxu0
    %v3700 = vadd.f32 %v3600, %v3699
    %v3701 = vpop.f32.mrf.mxu0
    %3702 = vmatprep.mubr.bf16.mxu0 0
    %3703 = vmatmul.mubr.bf16.gmra.mxu0 %v3615
    %v3704 = vpop.f32.mrf.mxu0
    %v3705 = vadd.f32 %v3600, %v3704
    %v3706 = vpop.f32.mrf.mxu0
    %v3707 = vpop.f32.mrf.mxu0
    %v3708 = vadd.f32 %v3600, %v3707
    %v3709 = vpop.f32.mrf.mxu0
    %3710 = vmatprep.mubr.bf16.mxu0 0
    %3711 = vmatmul.mubr.bf16.gmra.mxu0 %v3618
    %v3712 = vpop.f32.mrf.mxu0
    %v3713 = vadd.f32 %v3600, %v3712
    %v3714 = vpop.f32.mrf.mxu0
    %v3715 = vpop.f32.mrf.mxu0
    %v3716 = vadd.f32 %v3600, %v3715
    %v3717 = vpop.f32.mrf.mxu0
    %3718 = vmatprep.mubr.bf16.mxu0 0
    %3719 = vmatmul.mubr.bf16.gmra.mxu0 %v3621
    %v3720 = vpop.f32.mrf.mxu0
    %v3721 = vadd.f32 %v3600, %v3720
    %v3722 = vpop.f32.mrf.mxu0
    %v3723 = vpop.f32.mrf.mxu0
    %v3724 = vadd.f32 %v3600, %v3723
    %v3725 = vpop.f32.mrf.mxu0
    %3726 = vmatprep.mubr.bf16.mxu0 0
    %3727 = vmatmul.mubr.bf16.gmra.mxu0 %v3624
    %v3728 = vpop.f32.mrf.mxu0
    %v3729 = vadd.f32 %v3600, %v3728
    %v3730 = vpop.f32.mrf.mxu0
    %v3731 = vpop.f32.mrf.mxu0
    %v3732 = vadd.f32 %v3600, %v3731
    %v3733 = vpop.f32.mrf.mxu0
    %3734 = vmatprep.mubr.bf16.mxu0 0
    %3735 = vmatmul.mubr.bf16.gmra.mxu0 %v3627
    %v3736 = vpop.f32.mrf.mxu0
    %v3737 = vadd.f32 %v3600, %v3736
    %v3738 = vpop.f32.mrf.mxu0
    %v3739 = vpop.f32.mrf.mxu0
    %v3740 = vadd.f32 %v3600, %v3739
    %v3741 = vpop.f32.mrf.mxu0
    %3742 = vmatprep.mubr.bf16.mxu0 0
    %3743 = vmatmul.mubr.bf16.gmra.mxu0 %v3630
    %v3744 = vpop.f32.mrf.mxu0
    %v3745 = vadd.f32 %v3600, %v3744
    %v3746 = vpop.f32.mrf.mxu0
    %v3747 = vpop.f32.mrf.mxu0
    %v3748 = vadd.f32 %v3600, %v3747
    %v3749 = vpop.f32.mrf.mxu0
    %3750 = vmatprep.mubr.bf16.mxu0 0
    %3751 = vmatmul.mubr.bf16.gmra.mxu0 %v3633
    %v3752 = vpop.f32.mrf.mxu0
    %v3753 = vadd.f32 %v3600, %v3752
    %v3754 = vpop.f32.mrf.mxu0
    %v3755 = vpop.f32.mrf.mxu0
    %v3756 = vpop.f32.mrf.mxu0
    %3757 = vdwg.mxu0
    %v3758 = vmax.f32 %v3673, 0.0
    %v3759 = vmax.f32 %v3676, 0.0
    %v3760 = vmax.f32 %v3681, 0.0
    %v3761 = vmax.f32 %v3684, 0.0
    %v3762 = vmax.f32 %v3689, 0.0
    %v3763 = vmax.f32 %v3692, 0.0
    %v3764 = vmax.f32 %v3697, 0.0
    %v3765 = vmax.f32 %v3700, 0.0
    %v3766 = vmax.f32 %v3705, 0.0
    %v3767 = vmax.f32 %v3708, 0.0
    %v3768 = vmax.f32 %v3713, 0.0
    %v3769 = vmax.f32 %v3716, 0.0
    %v3770 = vmax.f32 %v3721, 0.0
    %v3771 = vmax.f32 %v3724, 0.0
    %v3772 = vmax.f32 %v3729, 0.0
    %v3773 = vmax.f32 %v3732, 0.0
    %v3774 = vmax.f32 %v3737, 0.0
    %v3775 = vmax.f32 %v3740, 0.0
    %v3776 = vmax.f32 %v3745, 0.0
    %v3777 = vmax.f32 %v3748, 0.0
    %v3778 = vmax.f32 %v3753, 0.0
    %v3780 = vsel %vm632, %v3578, 0
    %3782 = vmatprep.subr.mxu0 0.0
    %3783 = vmatpush1.msra.mxu0 %v3573
    %3784 = vmatprep.subr.mxu0 0.0
    %3785 = vmatpush1.msra.mxu0 %v3572
    %3786 = vmatprep.subr.mxu0 0.0
    %3787 = vmatpush1.msra.mxu0 %v3571
    %3788 = vmatprep.subr.mxu0 0.0
    %3789 = vmatpush1.msra.mxu0 %v3570
    %3790 = vmatprep.subr.mxu0 0.0
    %3791 = vmatpush1.msra.mxu0 %v3569
    %3792 = vmatprep.subr.mxu0 0.0
    %3793 = vmatpush1.msra.mxu0 %v3568
    %3794 = vmatprep.subr.mxu0 0.0
    %3795 = vmatpush1.msra.mxu0 %v3567
    %3796 = vmatprep.subr.mxu0 0.0
    %3797 = vmatpush1.msra.mxu0 %v3566
    %3798 = vmatprep.subr.mxu0 0.0
    %3799 = vmatpush1.msra.mxu0 %v3565
    %3800 = vmatprep.subr.mxu0 0.0
    %3801 = vmatpush1.msra.mxu0 %v3564
    %3802 = vmatprep.subr.mxu0 0.0
    %3803 = vmatpush1.msra.mxu0 %v3563
    %3804 = vmatprep.subr.mxu0 0.0
    %3805 = vmatpush1.msra.mxu0 %v3562
    %3806 = vmatprep.subr.mxu0 0.0
    %3807 = vmatpush1.msra.mxu0 %v3561
    %3808 = vmatprep.subr.mxu0 0.0
    %3809 = vmatpush1.msra.mxu0 %v3560
    %3810 = vmatprep.subr.mxu0 0.0
    %3811 = vmatpush1.msra.mxu0 %v3559
    %3812 = vmatprep.subr.mxu0 0.0
    %3813 = vmatpush1.msra.mxu0 %v3558
    %3814 = vmatprep.subr.mxu0 0.0
    %3815 = vmatpush2.msra.mxu0 0.0
    %3816 = vmatprep.subr.mxu0 0.0
    %3817 = vmatpush2.msra.mxu0 0.0
    %3818 = vmatprep.subr.mxu0 0.0
    %3819 = vmatpush2.msra.mxu0 0.0
    %3820 = vmatprep.subr.mxu0 0.0
    %3821 = vmatpush2.msra.mxu0 0.0
    %3822 = vmatprep.subr.mxu0 0.0
    %3823 = vmatpush2.msra.mxu0 0.0
    %3824 = vmatprep.subr.mxu0 0.0
    %3825 = vmatpush2.msra.mxu0 0.0
    %3826 = vmatprep.subr.mxu0 0.0
    %3827 = vmatpush2.msra.mxu0 0.0
    %3828 = vmatprep.subr.mxu0 0.0
    %3829 = vmatpush2.msra.mxu0 0.0
    %3830 = vmatprep.subr.mxu0 0.0
    %3831 = vmatpush2.msra.mxu0 0.0
    %3832 = vmatprep.subr.mxu0 0.0
    %3833 = vmatpush2.msra.mxu0 0.0
    %3834 = vmatprep.subr.mxu0 0.0
    %3835 = vmatpush2.msra.mxu0 0.0
    %3836 = vmatprep.subr.mxu0 0.0
    %3837 = vmatpush2.msra.mxu0 %v3780
    %3838 = vmatprep.subr.mxu0 0.0
    %3839 = vmatpush2.msra.mxu0 %v3577
    %3840 = vmatprep.subr.mxu0 0.0
    %3841 = vmatpush2.msra.mxu0 %v3576
    %3842 = vmatprep.subr.mxu0 0.0
    %3843 = vmatpush2.msra.mxu0 %v3575
    %3844 = vmatprep.subr.mxu0 0.0
    %3845 = vmatpush2.msra.mxu0 %v3574
    %3846 = vmatprep.mubr.f32.mxu0 %v630
    %3847 = vmatmul.mubr.f32.gmra.mxu0 %v626
    %v3848 = vpop.f32.mrf.mxu0
    %v3849 = vadd.f32 0.0, %v3848
    %v3850 = vpop.f32.mrf.mxu0
    %3851 = vdwg.mxu0
    %v3852 = vld [vmem:[%s11] sm:$0x3]
    %v3853 = vld [vmem:[%s12] sm:$0x3]
    %v3854 = vlaneseq
    %v3855 = vshrl.u32 %v3854, 7
    %v3856 = vsub.s32 0, %v3855
    %v3857 = vrot.slane %v3852, %v3856
    %v3858 = vmul.f32 %v3849, %v3857
    %v3859 = vsel %vm441, %v3858, 0.0
    %3860 = vadd.xlane.f32.xlu0 %v3859
    %v3861 = vpop.xlane.xlu0 %3860
    %v3862 = vmax.f32 %v3861, 0.0
    %v3863 = vlaneseq
    %v3864 = vshrl.u32 %v3863, 7
    %v3865 = vsub.s32 0, %v3864
    %v3866 = vrot.slane %v3853, %v3865
    %v3867 = vmul.f32 %v3862, %v3866
    %v3868 = vadd.f32 %v3867, 0.0
    %v3869 = vlaneseq
    %v3870 = vshrl.u32 %v3869, 7
    %v3871 = vsub.s32 1, %v3870
    %v3872 = vrot.slane %v3852, %v3871
    %v3873 = vmul.f32 %v3849, %v3872
    %v3874 = vsel %vm441, %v3873, 0.0
    %3875 = vadd.xlane.f32.xlu0 %v3874
    %v3876 = vpop.xlane.xlu0 %3875
    %v3877 = vmax.f32 %v3876, 0.0
    %v3878 = vlaneseq
    %v3879 = vshrl.u32 %v3878, 7
    %v3880 = vsub.s32 1, %v3879
    %v3881 = vrot.slane %v3853, %v3880
    %v3882 = vmul.f32 %v3877, %v3881
    %v3883 = vadd.f32 %v3868, %v3882
    %v3884 = vsub.f32 0.0, %v3883
    %v3885 = vmul.f32 %v3884, 1.442695
    %v3886 = vpow.pop %v3885
    %v3887 = vadd.f32 %v3886, 1.0
    %v3888 = vrcp.pop %v3887
    %v3890 = vsel %vm632, %v3888, 0
    %3892 = vmatprep.subr.mxu0 0.0
    %3893 = vmatpush1.msra.mxu0 0.0
    %3894 = vmatprep.subr.mxu0 0.0
    %3895 = vmatpush1.msra.mxu0 0.0
    %3896 = vmatprep.subr.mxu0 0.0
    %3897 = vmatpush1.msra.mxu0 0.0
    %3898 = vmatprep.subr.mxu0 0.0
    %3899 = vmatpush1.msra.mxu0 0.0
    %3900 = vmatprep.subr.mxu0 0.0
    %3901 = vmatpush1.msra.mxu0 0.0
    %3902 = vmatprep.subr.mxu0 0.0
    %3903 = vmatpush1.msra.mxu0 0.0
    %3904 = vmatprep.subr.mxu0 0.0
    %3905 = vmatpush1.msra.mxu0 0.0
    %3906 = vmatprep.subr.mxu0 0.0
    %3907 = vmatpush1.msra.mxu0 0.0
    %3908 = vmatprep.subr.mxu0 0.0
    %3909 = vmatpush1.msra.mxu0 0.0
    %3910 = vmatprep.subr.mxu0 0.0
    %3911 = vmatpush1.msra.mxu0 0.0
    %3912 = vmatprep.subr.mxu0 0.0
    %3913 = vmatpush1.msra.mxu0 0.0
    %3914 = vmatprep.subr.mxu0 0.0
    %3915 = vmatpush1.msra.mxu0 0.0
    %3916 = vmatprep.subr.mxu0 0.0
    %3917 = vmatpush1.msra.mxu0 0.0
    %3918 = vmatprep.subr.mxu0 0.0
    %3919 = vmatpush1.msra.mxu0 0.0
    %3920 = vmatprep.subr.mxu0 0.0
    %3921 = vmatpush1.msra.mxu0 0.0
    %3922 = vmatprep.subr.mxu0 0.0
    %3923 = vmatpush1.msra.mxu0 %v3890
    %3924 = vmatprep.subr.mxu0 0.0
    %3925 = vmatpush2.msra.mxu0 0.0
    %3926 = vmatprep.subr.mxu0 0.0
    %3927 = vmatpush2.msra.mxu0 0.0
    %3928 = vmatprep.subr.mxu0 0.0
    %3929 = vmatpush2.msra.mxu0 0.0
    %3930 = vmatprep.subr.mxu0 0.0
    %3931 = vmatpush2.msra.mxu0 0.0
    %3932 = vmatprep.subr.mxu0 0.0
    %3933 = vmatpush2.msra.mxu0 0.0
    %3934 = vmatprep.subr.mxu0 0.0
    %3935 = vmatpush2.msra.mxu0 0.0
    %3936 = vmatprep.subr.mxu0 0.0
    %3937 = vmatpush2.msra.mxu0 0.0
    %3938 = vmatprep.subr.mxu0 0.0
    %3939 = vmatpush2.msra.mxu0 0.0
    %3940 = vmatprep.subr.mxu0 0.0
    %3941 = vmatpush2.msra.mxu0 0.0
    %3942 = vmatprep.subr.mxu0 0.0
    %3943 = vmatpush2.msra.mxu0 0.0
    %3944 = vmatprep.subr.mxu0 0.0
    %3945 = vmatpush2.msra.mxu0 0.0
    %3946 = vmatprep.subr.mxu0 0.0
    %3947 = vmatpush2.msra.mxu0 0.0
    %3948 = vmatprep.subr.mxu0 0.0
    %3949 = vmatpush2.msra.mxu0 0.0
    %3950 = vmatprep.subr.mxu0 0.0
    %3951 = vmatpush2.msra.mxu0 0.0
    %3952 = vmatprep.subr.mxu0 0.0
    %3953 = vmatpush2.msra.mxu0 0.0
    %3954 = vmatprep.subr.mxu0 0.0
    %3955 = vmatpush2.msra.mxu0 0.0
    %3956 = vmatprep.mubr.f32.mxu0 0.0
    %3957 = vmatmul.mubr.f32.gmra.mxu0 %v735
    %v3958 = vpop.f32.mrf.mxu0
    %v3959 = vadd.f32 0.0, %v3958
    %v3960 = vpop.f32.mrf.mxu0
    %3961 = vmatprep.mubr.f32.mxu0 0.0
    %3962 = vmatmul.mubr.f32.gmra.mxu0 %v738
    %v3963 = vpop.f32.mrf.mxu0
    %v3964 = vadd.f32 0.0, %v3963
    %v3965 = vpop.f32.mrf.mxu0
    %3966 = vmatprep.mubr.f32.mxu0 0.0
    %3967 = vmatmul.mubr.f32.gmra.mxu0 %v741
    %v3968 = vpop.f32.mrf.mxu0
    %v3969 = vadd.f32 0.0, %v3968
    %v3970 = vpop.f32.mrf.mxu0
    %3971 = vmatprep.mubr.f32.mxu0 0.0
    %3972 = vmatmul.mubr.f32.gmra.mxu0 %v744
    %v3973 = vpop.f32.mrf.mxu0
    %v3974 = vadd.f32 0.0, %v3973
    %v3975 = vpop.f32.mrf.mxu0
    %3976 = vmatprep.mubr.f32.mxu0 0.0
    %3977 = vmatmul.mubr.f32.gmra.mxu0 %v747
    %v3978 = vpop.f32.mrf.mxu0
    %v3979 = vadd.f32 0.0, %v3978
    %v3980 = vpop.f32.mrf.mxu0
    %3981 = vmatprep.mubr.f32.mxu0 0.0
    %3982 = vmatmul.mubr.f32.gmra.mxu0 %v750
    %v3983 = vpop.f32.mrf.mxu0
    %v3984 = vadd.f32 0.0, %v3983
    %v3985 = vpop.f32.mrf.mxu0
    %3986 = vmatprep.mubr.f32.mxu0 0.0
    %3987 = vmatmul.mubr.f32.gmra.mxu0 %v753
    %v3988 = vpop.f32.mrf.mxu0
    %v3989 = vadd.f32 0.0, %v3988
    %v3990 = vpop.f32.mrf.mxu0
    %3991 = vmatprep.mubr.f32.mxu0 0.0
    %3992 = vmatmul.mubr.f32.gmra.mxu0 %v756
    %v3993 = vpop.f32.mrf.mxu0
    %v3994 = vadd.f32 0.0, %v3993
    %v3995 = vpop.f32.mrf.mxu0
    %3996 = vmatprep.mubr.f32.mxu0 0.0
    %3997 = vmatmul.mubr.f32.gmra.mxu0 %v759
    %v3998 = vpop.f32.mrf.mxu0
    %v3999 = vadd.f32 0.0, %v3998
    %v4000 = vpop.f32.mrf.mxu0
    %4001 = vmatprep.mubr.f32.mxu0 0.0
    %4002 = vmatmul.mubr.f32.gmra.mxu0 %v762
    %v4003 = vpop.f32.mrf.mxu0
    %v4004 = vadd.f32 0.0, %v4003
    %v4005 = vpop.f32.mrf.mxu0
    %4006 = vmatprep.mubr.f32.mxu0 0.0
    %4007 = vmatmul.mubr.f32.gmra.mxu0 %v765
    %v4008 = vpop.f32.mrf.mxu0
    %v4009 = vadd.f32 0.0, %v4008
    %v4010 = vpop.f32.mrf.mxu0
    %4011 = vmatprep.mubr.f32.mxu0 0.0
    %4012 = vmatmul.mubr.f32.gmra.mxu0 %v768
    %v4013 = vpop.f32.mrf.mxu0
    %v4014 = vadd.f32 0.0, %v4013
    %v4015 = vpop.f32.mrf.mxu0
    %4016 = vmatprep.mubr.f32.mxu0 0.0
    %4017 = vmatmul.mubr.f32.gmra.mxu0 %v771
    %v4018 = vpop.f32.mrf.mxu0
    %v4019 = vadd.f32 0.0, %v4018
    %v4020 = vpop.f32.mrf.mxu0
    %4021 = vmatprep.mubr.f32.mxu0 0.0
    %4022 = vmatmul.mubr.f32.gmra.mxu0 %v774
    %v4023 = vpop.f32.mrf.mxu0
    %v4024 = vadd.f32 0.0, %v4023
    %v4025 = vpop.f32.mrf.mxu0
    %4026 = vmatprep.mubr.f32.mxu0 0.0
    %4027 = vmatmul.mubr.f32.gmra.mxu0 %v777
    %v4028 = vpop.f32.mrf.mxu0
    %v4029 = vadd.f32 0.0, %v4028
    %v4030 = vpop.f32.mrf.mxu0
    %4031 = vmatprep.mubr.f32.mxu0 0.0
    %4032 = vmatmul.mubr.f32.gmra.mxu0 %v780
    %v4033 = vpop.f32.mrf.mxu0
    %v4034 = vadd.f32 0.0, %v4033
    %v4035 = vpop.f32.mrf.mxu0
    %4036 = vmatprep.mubr.f32.mxu0 0.0
    %4037 = vmatmul.mubr.f32.gmra.mxu0 %v783
    %v4038 = vpop.f32.mrf.mxu0
    %v4039 = vadd.f32 0.0, %v4038
    %v4040 = vpop.f32.mrf.mxu0
    %4041 = vmatprep.mubr.f32.mxu0 0.0
    %4042 = vmatmul.mubr.f32.gmra.mxu0 %v786
    %v4043 = vpop.f32.mrf.mxu0
    %v4044 = vadd.f32 0.0, %v4043
    %v4045 = vpop.f32.mrf.mxu0
    %4046 = vmatprep.mubr.f32.mxu0 0.0
    %4047 = vmatmul.mubr.f32.gmra.mxu0 %v789
    %v4048 = vpop.f32.mrf.mxu0
    %v4049 = vadd.f32 0.0, %v4048
    %v4050 = vpop.f32.mrf.mxu0
    %4051 = vmatprep.mubr.f32.mxu0 0.0
    %4052 = vmatmul.mubr.f32.gmra.mxu0 %v792
    %v4053 = vpop.f32.mrf.mxu0
    %v4054 = vadd.f32 0.0, %v4053
    %v4055 = vpop.f32.mrf.mxu0
    %4056 = vmatprep.mubr.f32.mxu0 0.0
    %4057 = vmatmul.mubr.f32.gmra.mxu0 %v795
    %v4058 = vpop.f32.mrf.mxu0
    %v4059 = vadd.f32 0.0, %v4058
    %v4060 = vpop.f32.mrf.mxu0
    %4061 = vdwg.mxu0
    %v4062 = vmul.f32 %v3558, %v3959
    %v4063 = vmul.f32 %v3559, %v3964
    %v4064 = vmul.f32 %v3560, %v3969
    %v4065 = vmul.f32 %v3561, %v3974
    %v4066 = vmul.f32 %v3562, %v3979
    %v4067 = vmul.f32 %v3563, %v3984
    %v4068 = vmul.f32 %v3564, %v3989
    %v4069 = vmul.f32 %v3565, %v3994
    %v4070 = vmul.f32 %v3566, %v3999
    %v4071 = vmul.f32 %v3567, %v4004
    %v4072 = vmul.f32 %v3568, %v4009
    %v4073 = vmul.f32 %v3569, %v4014
    %v4074 = vmul.f32 %v3570, %v4019
    %v4075 = vmul.f32 %v3571, %v4024
    %v4076 = vmul.f32 %v3572, %v4029
    %v4077 = vmul.f32 %v3573, %v4034
    %v4078 = vmul.f32 %v3574, %v4039
    %v4079 = vmul.f32 %v3575, %v4044
    %v4080 = vmul.f32 %v3576, %v4049
    %v4081 = vmul.f32 %v3577, %v4054
    %v4082 = vmul.f32 %v3578, %v4059
    %v4083 = vadd.f32 %v4062, %v3758
    %v4084 = vadd.f32 %v4063, %v3759
    %v4085 = vadd.f32 %v4064, %v3760
    %v4086 = vadd.f32 %v4065, %v3761
    %v4087 = vadd.f32 %v4066, %v3762
    %v4088 = vadd.f32 %v4067, %v3763
    %v4089 = vadd.f32 %v4068, %v3764
    %v4090 = vadd.f32 %v4069, %v3765
    %v4091 = vadd.f32 %v4070, %v3766
    %v4092 = vadd.f32 %v4071, %v3767
    %v4093 = vadd.f32 %v4072, %v3768
    %v4094 = vadd.f32 %v4073, %v3769
    %v4095 = vadd.f32 %v4074, %v3770
    %v4096 = vadd.f32 %v4075, %v3771
    %v4097 = vadd.f32 %v4076, %v3772
    %v4098 = vadd.f32 %v4077, %v3773
    %v4099 = vadd.f32 %v4078, %v3774
    %v4100 = vadd.f32 %v4079, %v3775
    %v4101 = vadd.f32 %v4080, %v3776
    %v4102 = vadd.f32 %v4081, %v3777
    %v4103 = vadd.f32 %v4082, %v3778
    %v4105 = vsel %vm632, %v4103, 0
    %4107 = vmatprep.subr.mxu0 0.0
    %4108 = vmatpush1.msra.mxu0 %v4098
    %4109 = vmatprep.subr.mxu0 0.0
    %4110 = vmatpush1.msra.mxu0 %v4097
    %4111 = vmatprep.subr.mxu0 0.0
    %4112 = vmatpush1.msra.mxu0 %v4096
    %4113 = vmatprep.subr.mxu0 0.0
    %4114 = vmatpush1.msra.mxu0 %v4095
    %4115 = vmatprep.subr.mxu0 0.0
    %4116 = vmatpush1.msra.mxu0 %v4094
    %4117 = vmatprep.subr.mxu0 0.0
    %4118 = vmatpush1.msra.mxu0 %v4093
    %4119 = vmatprep.subr.mxu0 0.0
    %4120 = vmatpush1.msra.mxu0 %v4092
    %4121 = vmatprep.subr.mxu0 0.0
    %4122 = vmatpush1.msra.mxu0 %v4091
    %4123 = vmatprep.subr.mxu0 0.0
    %4124 = vmatpush1.msra.mxu0 %v4090
    %4125 = vmatprep.subr.mxu0 0.0
    %4126 = vmatpush1.msra.mxu0 %v4089
    %4127 = vmatprep.subr.mxu0 0.0
    %4128 = vmatpush1.msra.mxu0 %v4088
    %4129 = vmatprep.subr.mxu0 0.0
    %4130 = vmatpush1.msra.mxu0 %v4087
    %4131 = vmatprep.subr.mxu0 0.0
    %4132 = vmatpush1.msra.mxu0 %v4086
    %4133 = vmatprep.subr.mxu0 0.0
    %4134 = vmatpush1.msra.mxu0 %v4085
    %4135 = vmatprep.subr.mxu0 0.0
    %4136 = vmatpush1.msra.mxu0 %v4084
    %4137 = vmatprep.subr.mxu0 0.0
    %4138 = vmatpush1.msra.mxu0 %v4083
    %4139 = vmatprep.subr.mxu0 0.0
    %4140 = vmatpush2.msra.mxu0 0.0
    %4141 = vmatprep.subr.mxu0 0.0
    %4142 = vmatpush2.msra.mxu0 0.0
    %4143 = vmatprep.subr.mxu0 0.0
    %4144 = vmatpush2.msra.mxu0 0.0
    %4145 = vmatprep.subr.mxu0 0.0
    %4146 = vmatpush2.msra.mxu0 0.0
    %4147 = vmatprep.subr.mxu0 0.0
    %4148 = vmatpush2.msra.mxu0 0.0
    %4149 = vmatprep.subr.mxu0 0.0
    %4150 = vmatpush2.msra.mxu0 0.0
    %4151 = vmatprep.subr.mxu0 0.0
    %4152 = vmatpush2.msra.mxu0 0.0
    %4153 = vmatprep.subr.mxu0 0.0
    %4154 = vmatpush2.msra.mxu0 0.0
    %4155 = vmatprep.subr.mxu0 0.0
    %4156 = vmatpush2.msra.mxu0 0.0
    %4157 = vmatprep.subr.mxu0 0.0
    %4158 = vmatpush2.msra.mxu0 0.0
    %4159 = vmatprep.subr.mxu0 0.0
    %4160 = vmatpush2.msra.mxu0 0.0
    %4161 = vmatprep.subr.mxu0 0.0
    %4162 = vmatpush2.msra.mxu0 %v4105
    %4163 = vmatprep.subr.mxu0 0.0
    %4164 = vmatpush2.msra.mxu0 %v4102
    %4165 = vmatprep.subr.mxu0 0.0
    %4166 = vmatpush2.msra.mxu0 %v4101
    %4167 = vmatprep.subr.mxu0 0.0
    %4168 = vmatpush2.msra.mxu0 %v4100
    %4169 = vmatprep.subr.mxu0 0.0
    %4170 = vmatpush2.msra.mxu0 %v4099
    %4171 = vmatprep.mubr.f32.mxu0 %v630
    %4172 = vmatmul.mubr.f32.gmra.mxu0 %v626
    %v4173 = vpop.f32.mrf.mxu0
    %v4174 = vadd.f32 0.0, %v4173
    %v4175 = vpop.f32.mrf.mxu0
    %4176 = vdwg.mxu0
    %v4177 = vld [vmem:[%s18] sm:$0xff]
    %v4178 = vld [vmem:[%s18 + $0x8] sm:$0xff]
    %v4179 = vld [vmem:[%s18 + $0x10] sm:$0xff]
    %v4180 = vld [vmem:[%s18 + $0x18] sm:$0xff]
    %v4181 = vld [vmem:[%s18 + $0x20] sm:$0xf]
    %v4182 = vld [vmem:[%s19] sm:$0x1]
    %v4184 = vlaneseq
    %v4185 = vshrl.u32 %v4184, 7
    %v4186 = vsub.s32 0, %v4185
    %v4187 = vrot.slane %v4182, %v4186
    %v4190 = vsel %vm401, %v4174, 0
    %vm4192 = vcmask 1043456
    %v4194 = vsel %vm4192, %v4181, 0
    %4196 = vmatprep.subr.mxu0 0.0
    %4197 = vmatpush1.msra.mxu0 0.0
    %4198 = vmatprep.subr.mxu0 0.0
    %4199 = vmatpush1.msra.mxu0 0.0
    %4200 = vmatprep.subr.mxu0 0.0
    %4201 = vmatpush1.msra.mxu0 0.0
    %4202 = vmatprep.subr.mxu0 0.0
    %4203 = vmatpush1.msra.mxu0 0.0
    %4204 = vmatprep.subr.mxu0 0.0
    %4205 = vmatpush1.msra.mxu0 0.0
    %4206 = vmatprep.subr.mxu0 0.0
    %4207 = vmatpush1.msra.mxu0 0.0
    %4208 = vmatprep.subr.mxu0 0.0
    %4209 = vmatpush1.msra.mxu0 0.0
    %4210 = vmatprep.subr.mxu0 0.0
    %4211 = vmatpush1.msra.mxu0 0.0
    %4212 = vmatprep.subr.mxu0 0.0
    %4213 = vmatpush1.msra.mxu0 0.0
    %4214 = vmatprep.subr.mxu0 0.0
    %4215 = vmatpush1.msra.mxu0 0.0
    %4216 = vmatprep.subr.mxu0 0.0
    %4217 = vmatpush1.msra.mxu0 0.0
    %4218 = vmatprep.subr.mxu0 0.0
    %4219 = vmatpush1.msra.mxu0 %v4194
    %4220 = vmatprep.subr.mxu0 0.0
    %4221 = vmatpush1.msra.mxu0 %v4180
    %4222 = vmatprep.subr.mxu0 0.0
    %4223 = vmatpush1.msra.mxu0 %v4179
    %4224 = vmatprep.subr.mxu0 0.0
    %4225 = vmatpush1.msra.mxu0 %v4178
    %4226 = vmatprep.subr.mxu0 0.0
    %4227 = vmatpush1.msra.mxu0 %v4177
    %4228 = vmatprep.subr.mxu0 0.0
    %4229 = vmatpush2.msra.mxu0 0.0
    %4230 = vmatprep.subr.mxu0 0.0
    %4231 = vmatpush2.msra.mxu0 0.0
    %4232 = vmatprep.subr.mxu0 0.0
    %4233 = vmatpush2.msra.mxu0 0.0
    %4234 = vmatprep.subr.mxu0 0.0
    %4235 = vmatpush2.msra.mxu0 0.0
    %4236 = vmatprep.subr.mxu0 0.0
    %4237 = vmatpush2.msra.mxu0 0.0
    %4238 = vmatprep.subr.mxu0 0.0
    %4239 = vmatpush2.msra.mxu0 0.0
    %4240 = vmatprep.subr.mxu0 0.0
    %4241 = vmatpush2.msra.mxu0 0.0
    %4242 = vmatprep.subr.mxu0 0.0
    %4243 = vmatpush2.msra.mxu0 0.0
    %4244 = vmatprep.subr.mxu0 0.0
    %4245 = vmatpush2.msra.mxu0 0.0
    %4246 = vmatprep.subr.mxu0 0.0
    %4247 = vmatpush2.msra.mxu0 0.0
    %4248 = vmatprep.subr.mxu0 0.0
    %4249 = vmatpush2.msra.mxu0 0.0
    %4250 = vmatprep.subr.mxu0 0.0
    %4251 = vmatpush2.msra.mxu0 0.0
    %4252 = vmatprep.subr.mxu0 0.0
    %4253 = vmatpush2.msra.mxu0 0.0
    %4254 = vmatprep.subr.mxu0 0.0
    %4255 = vmatpush2.msra.mxu0 0.0
    %4256 = vmatprep.subr.mxu0 0.0
    %4257 = vmatpush2.msra.mxu0 0.0
    %4258 = vmatprep.subr.mxu0 0.0
    %4259 = vmatpush2.msra.mxu0 0.0
    %4260 = vmatprep.mubr.f32.mxu0 0.0
    %4261 = vmatmul.mubr.f32.gmra.mxu0 %v4190
    %v4262 = vpop.f32.mrf.mxu0
    %v4263 = vadd.f32 %v4187, %v4262
    %v4264 = vpop.f32.mrf.mxu0
    %4265 = vdwg.mxu0
    %vm4266 = vcmask 9216
    %4267 = vst.msk [vmem:[#allocation3] sm:$0x3] %vm4266, %v4263
    // Predicated region
    $region82: #{unet_forward.1} parent=1 // pred_check
      _
    $region83: #{unet_forward.1} parent=1 // pred_check_branch
      %4269 = sbr.rel (0) target = $region85
    $region84: #{unet_forward.1} parent=1 // pred_region
      %s4271 = ssub.s32 32, 32
      %4272 = vsyncadd [#allocation4], %s4271
      %s4274 = sshll.u32 [#allocation3], 4
      %s4275 = int_to_ptr.vmem [resolvable:$true] %s4274
      %4277 = dma.vmem_to_hbm [thread:$0]  %s4275, 32, %s20, [#allocation4]
    $region85: #{unet_forward.1} parent=1 // pred_fallthru
      _
    // Predicated region
    $region86: #{unet_forward.1} parent=1 // pred_check
      _
    $region87: #{unet_forward.1} parent=1 // pred_check_branch
      %4279 = sbr.rel (0) target = $region89
    $region88: #{unet_forward.1} parent=1 // pred_region
      %4280 = dma.done [#allocation4], 32
    $region89: #{unet_forward.1} parent=1 // pred_fallthru
      _
    %4281 = vsyncpa [#allocation4], 1

</llo_original>
